<compile_context>
chip_gen: v7x
topology: tpu7x:2x2x1
jax: 0.10.0
libtpu: 0.0.40
codegen_flags: <defaults>
</compile_context>

<pallas_src>
import functools

import jax
import jax.numpy as jnp
import numpy as np
from jax.experimental import pallas as pl
from jax.experimental.pallas import tpu as pltpu

BN_EPS = 1e-5
LEAKY_SLOPE = 0.1
LANE = 128
VMEM_LIMIT = 48 * 1024 * 1024  # stays under v7x's 64 MiB physical VMEM; fine on v5e/v6e


def _round_up(x, m):
    return (x + m - 1) // m * m


def _pad_to(a, shape):
    return jnp.pad(a, [(0, s - d) for d, s in zip(a.shape, shape)])


# --------------------------------------------------------------------------- kernels
def matmul_stats_kernel(x_ref, w_ref, y_ref, stats_ref):
    """y = x @ w (bf16 in, fp32 accum); emit per-tile per-channel sum / sum-of-squares."""
    y = jnp.dot(x_ref[...], w_ref[...], preferred_element_type=jnp.float32)
    y_ref[...] = y
    cp = y.shape[1]
    s = jnp.sum(y, axis=0, keepdims=True)
    ss = jnp.sum(y * y, axis=0, keepdims=True)
    blk = jnp.concatenate([s, ss, jnp.zeros((6, cp), jnp.float32)], axis=0)
    stats_ref[...] = blk[None]


def conv3x3_stats_kernel(x_ref, w_ref, y_ref, stats_ref, *, th, w_img):
    """3x3 / stride 1 / pad 1 conv as 9 shifted MXU dots on a VMEM-resident padded image."""
    # x_ref : (H+2, W+2, Cmid_p) bf16, resident across the row-block grid axis
    # w_ref : (9, Cmid_p, Cin_p) bf16
    # y_ref : (th*w_img, Cin_p) fp32 pre-BN output rows for this row block
    rows, cin_p = y_ref.shape
    row0 = pl.multiple_of(pl.program_id(1) * th, th)
    xwin = x_ref[pl.ds(row0, th + 2), :, :]                  # (th+2, W+2, Cmid_p)
    acc = jnp.zeros((rows, cin_p), jnp.float32)
    for dy in range(3):
        for dx in range(3):
            patch = xwin[dy:dy + th, dx:dx + w_img, :].reshape(rows, -1)
            acc = acc + jnp.dot(patch, w_ref[dy * 3 + dx],
                                preferred_element_type=jnp.float32)
    y_ref[...] = acc
    s = jnp.sum(acc, axis=0, keepdims=True)
    ss = jnp.sum(acc * acc, axis=0, keepdims=True)
    blk = jnp.concatenate([s, ss, jnp.zeros((6, cin_p), jnp.float32)], axis=0)
    stats_ref[...] = blk[None]


def bn_lrelu_kernel(y_ref, scale_ref, shift_ref, o_ref):
    z = y_ref[...] * scale_ref[...] + shift_ref[...]          # fp32 elementwise (v5e-safe)
    o_ref[...] = jnp.where(z >= 0, z, LEAKY_SLOPE * z).astype(o_ref.dtype)


def bn_lrelu_residual_kernel(y_ref, scale_ref, shift_ref, res_ref, o_ref):
    z = y_ref[...] * scale_ref[...] + shift_ref[...]
    a = jnp.where(z >= 0, z, LEAKY_SLOPE * z)
    o_ref[...] = (res_ref[...] + a).astype(o_ref.dtype)


# ------------------------------------------------------------------ pallas_call wrappers
def _compiler_params(sem):
    return pltpu.CompilerParams(dimension_semantics=sem, vmem_limit_bytes=VMEM_LIMIT)


def conv1x1_with_stats(x2d, wmat, tm):
    """x2d: (Mp, Kp) bf16; wmat: (Kp, Cp) bf16 -> y (Mp, Cp) f32, stats (Mp//tm, 8, Cp)."""
    mp, kp = x2d.shape
    cp = wmat.shape[1]
    nblk = mp // tm
    cost = pl.CostEstimate(
        flops=2 * mp * kp * cp + 3 * mp * cp, transcendentals=0,
        bytes_accessed=mp * kp * 2 + kp * cp * 2 + mp * cp * 4 + nblk * 8 * cp * 4)
    return pl.pallas_call(
        matmul_stats_kernel,
        out_shape=(jax.ShapeDtypeStruct((mp, cp), jnp.float32),
                   jax.ShapeDtypeStruct((nblk, 8, cp), jnp.float32)),
        grid_spec=pltpu.PrefetchScalarGridSpec(
            num_scalar_prefetch=0,
            grid=(nblk,),
            in_specs=[pl.BlockSpec((tm, kp), lambda i: (i, 0)),
                      pl.BlockSpec((kp, cp), lambda i: (0, 0))],
            out_specs=[pl.BlockSpec((tm, cp), lambda i: (i, 0)),
                       pl.BlockSpec((1, 8, cp), lambda i: (i, 0, 0))]),
        compiler_params=_compiler_params(("parallel",)),
        cost_estimate=cost,
    )(x2d, wmat)


def conv3x3_with_stats(a_pad, w2mat, th):
    """a_pad: (N, H+2, W+2, Cmid_p) bf16; w2mat: (9, Cmid_p, Cin_p) bf16."""
    n, hp2, wp2, cmid_p = a_pad.shape
    h, w = hp2 - 2, wp2 - 2
    cin_p = w2mat.shape[-1]
    nrb = h // th
    m = n * h * w
    kern = functools.partial(conv3x3_stats_kernel, th=th, w_img=w)
    cost = pl.CostEstimate(
        flops=2 * m * 9 * cmid_p * cin_p + 3 * m * cin_p, transcendentals=0,
        bytes_accessed=(n * hp2 * wp2 * cmid_p * 2 + 9 * cmid_p * cin_p * 2
                        + m * cin_p * 4 + n * nrb * 8 * cin_p * 4))
    return pl.pallas_call(
        kern,
        out_shape=(jax.ShapeDtypeStruct((m, cin_p), jnp.float32),
                   jax.ShapeDtypeStruct((n * nrb, 8, cin_p), jnp.float32)),
        grid_spec=pltpu.PrefetchScalarGridSpec(
            num_scalar_prefetch=0,
            grid=(n, nrb),
            in_specs=[pl.BlockSpec((None, hp2, wp2, cmid_p),
                                   lambda i, r: (i, 0, 0, 0)),
                      pl.BlockSpec((9, cmid_p, cin_p), lambda i, r: (0, 0, 0))],
            out_specs=[pl.BlockSpec((th * w, cin_p), lambda i, r: (i * nrb + r, 0)),
                       pl.BlockSpec((1, 8, cin_p), lambda i, r: (i * nrb + r, 0, 0))]),
        compiler_params=_compiler_params(("parallel", "parallel")),
        cost_estimate=cost,
    )(a_pad, w2mat)


def bn_lrelu(y, scale, shift, tm, out_dtype):
    mp, cp = y.shape
    nblk = mp // tm
    cost = pl.CostEstimate(
        flops=4 * mp * cp, transcendentals=0,
        bytes_accessed=mp * cp * 4 + mp * cp * jnp.dtype(out_dtype).itemsize)
    return pl.pallas_call(
        bn_lrelu_kernel,
        out_shape=jax.ShapeDtypeStruct((mp, cp), out_dtype),
        grid_spec=pltpu.PrefetchScalarGridSpec(
            num_scalar_prefetch=0,
            grid=(nblk,),
            in_specs=[pl.BlockSpec((tm, cp), lambda i: (i, 0)),
                      pl.BlockSpec((1, cp), lambda i: (0, 0)),
                      pl.BlockSpec((1, cp), lambda i: (0, 0))],
            out_specs=pl.BlockSpec((tm, cp), lambda i: (i, 0))),
        compiler_params=_compiler_params(("parallel",)),
        cost_estimate=cost,
    )(y, scale, shift)


def bn_lrelu_residual(y, scale, shift, res, tm, out_dtype):
    mp, cp = y.shape
    nblk = mp // tm
    cost = pl.CostEstimate(
        flops=5 * mp * cp, transcendentals=0,
        bytes_accessed=2 * mp * cp * 4 + mp * cp * jnp.dtype(out_dtype).itemsize)
    return pl.pallas_call(
        bn_lrelu_residual_kernel,
        out_shape=jax.ShapeDtypeStruct((mp, cp), out_dtype),
        grid_spec=pltpu.PrefetchScalarGridSpec(
            num_scalar_prefetch=0,
            grid=(nblk,),
            in_specs=[pl.BlockSpec((tm, cp), lambda i: (i, 0)),
                      pl.BlockSpec((1, cp), lambda i: (0, 0)),
                      pl.BlockSpec((1, cp), lambda i: (0, 0)),
                      pl.BlockSpec((tm, cp), lambda i: (i, 0))],
            out_specs=pl.BlockSpec((tm, cp), lambda i: (i, 0))),
        compiler_params=_compiler_params(("parallel",)),
        cost_estimate=cost,
    )(y, scale, shift, res)


# --------------------------------------------------------------------------- wrapper
def finalize_bn(stats, gamma_p, beta_p, m_true):
    """Combine per-tile (sum, sumsq) -> folded per-channel scale/shift (fp32, tiny)."""
    tot = jnp.sum(stats, axis=0)                                  # (8, Cp)
    mean = tot[0] / m_true
    var = jnp.maximum(tot[1] / m_true - mean * mean, 0.0)         # biased var, clamp
    scale = gamma_p * jax.lax.rsqrt(var + BN_EPS)
    shift = beta_p - mean * scale
    return scale.reshape(1, -1), shift.reshape(1, -1)


def _choose_tm(m):
    # 256 rows matches the v6e/v7x 256-wide MXU; with Cp,Kp <= ~1152 the double-buffered
    # working set stays well under the v7x 64 MiB VMEM (halve here if channels grow).
    return 256 if m >= 256 else _round_up(m, 8)


def _choose_th(h, w):
    th = 8 if h % 8 == 0 else h
    # TODO(synk): support widths that are not a multiple of 8 (needs M-row padding in K3).
    assert (th * w) % 8 == 0, "th*W must be a multiple of 8 for the output tiling"
    return th


def residual_layer_forward(x_nchw, params):
    n, cin, h, w = x_nchw.shape
    cmid = cin // 2
    cin_p, cmid_p = _round_up(cin, LANE), _round_up(cmid, LANE)
    m = n * h * w
    tm = _choose_tm(m)
    mp = _round_up(m, tm)
    th = _choose_th(h, w)

    # parameter prep: torch layout -> lane-padded matmul form, bf16 for the MXU
    w1mat = _pad_to(jnp.transpose(params["w1"][:, :, 0, 0], (1, 0)),
                    (cin_p, cmid_p)).astype(jnp.bfloat16)
    w2mat = _pad_to(jnp.transpose(params["w2"], (2, 3, 1, 0)).reshape(9, cmid, cin),
                    (9, cmid_p, cin_p)).astype(jnp.bfloat16)
    g1 = _pad_to(params["gamma1"], (cmid_p,))
    b1 = _pad_to(params["beta1"], (cmid_p,))
    g2 = _pad_to(params["gamma2"], (cin_p,))
    b2 = _pad_to(params["beta2"], (cin_p,))

    # ---- layer 1: 1x1 conv -> BN(batch stats) -> LeakyReLU ----
    x_nhwc = jnp.transpose(x_nchw, (0, 2, 3, 1))                  # NCHW -> NHWC
    x2d = _pad_to(x_nhwc.reshape(m, cin), (mp, cin_p))            # fp32, also residual
    y1, st1 = conv1x1_with_stats(x2d.astype(jnp.bfloat16), w1mat, tm)
    scale1, shift1 = finalize_bn(st1, g1, b1, m)
    a1 = bn_lrelu(y1, scale1, shift1, tm, jnp.bfloat16)           # (mp, cmid_p) bf16
    a1 = a1[:m].reshape(n, h, w, cmid_p)
    a1 = jnp.pad(a1, ((0, 0), (1, 1), (1, 1), (0, 0)))            # zero-pad for 3x3 conv

    # ---- layer 2: 3x3 conv (pad 1) -> BN -> LeakyReLU, then residual add ----
    y2, st2 = conv3x3_with_stats(a1, w2mat, th)                   # (m, cin_p) fp32
    scale2, shift2 = finalize_bn(st2, g2, b2, m)
    y2 = _pad_to(y2, (mp, cin_p))
    out2d = bn_lrelu_residual(y2, scale2, shift2, x2d, tm, jnp.float32)

    out = out2d[:m].reshape(n, h, w, cin_p)[..., :cin]
    return jnp.transpose(out, (0, 3, 1, 2))                       # NHWC -> NCHW


def init_params(key, in_channels):
    cmid = in_channels // 2
    k1, k2, k3, k4, k5, k6 = jax.random.split(key, 6)
    # Conv biases omitted: training-mode BatchNorm's batch-mean subtraction cancels them.
    return dict(
        w1=jax.random.normal(k1, (cmid, in_channels, 1, 1), jnp.float32)
        / np.sqrt(in_channels),
        gamma1=1.0 + 0.1 * jax.random.normal(k2, (cmid,), jnp.float32),
        beta1=0.1 * jax.random.normal(k3, (cmid,), jnp.float32),
        w2=jax.random.normal(k4, (in_channels, cmid, 3, 3), jnp.float32)
        / np.sqrt(9 * cmid),
        gamma2=1.0 + 0.1 * jax.random.normal(k5, (in_channels,), jnp.float32),
        beta2=0.1 * jax.random.normal(k6, (in_channels,), jnp.float32),
    )


# ------------------------------------------------------------------ pure-JAX reference
def _bn_lrelu_ref(y, gamma, beta):
    mean = jnp.mean(y, axis=(0, 1, 2))
    var = jnp.mean(jnp.square(y - mean), axis=(0, 1, 2))          # biased (training BN)
    z = (y - mean) * jax.lax.rsqrt(var + BN_EPS) * gamma + beta
    return jnp.where(z >= 0, z, LEAKY_SLOPE * z)


def reference_forward(x_nchw, params):
    """Plain-JAX reference at the same (bf16 matmul, fp32 accumulate) precision."""
    x = jnp.transpose(x_nchw, (0, 2, 3, 1))
    dn = ("NHWC", "HWIO", "NHWC")
    w1 = jnp.transpose(params["w1"], (2, 3, 1, 0)).astype(jnp.bfloat16)
    y1 = jax.lax.conv_general_dilated(x.astype(jnp.bfloat16), w1, (1, 1), "VALID",
                                      dimension_numbers=dn,
                                      preferred_element_type=jnp.float32)
    a1 = _bn_lrelu_ref(y1, params["gamma1"], params["beta1"])
    w2 = jnp.transpose(params["w2"], (2, 3, 1, 0)).astype(jnp.bfloat16)
    y2 = jax.lax.conv_general_dilated(a1.astype(jnp.bfloat16), w2, (1, 1),
                                      ((1, 1), (1, 1)), dimension_numbers=dn,
                                      preferred_element_type=jnp.float32)
    a2 = _bn_lrelu_ref(y2, params["gamma2"], params["beta2"])
    return jnp.transpose(x + a2, (0, 3, 1, 2))


if __name__ == "__main__":
    key = jax.random.PRNGKey(0)
    kx, kp = jax.random.split(key)

    N, C, H, W = 2, 4, 16, 16          # ResidualLayer(in_channels=4)
    x = jax.random.normal(kx, (N, C, H, W), jnp.float32)
    params = init_params(kp, C)

    fwd = jax.jit(residual_layer_forward)
    y = jax.block_until_ready(fwd(x, params))

    assert y.shape == (N, C, H, W), y.shape
    assert bool(jnp.all(jnp.isfinite(y)))

    y_ref = jax.block_until_ready(reference_forward(x, params))
    np.testing.assert_allclose(np.asarray(y), np.asarray(y_ref), rtol=5e-3, atol=5e-3)

    print("KERNEL_OK")
</pallas_src>

<mosaic_0001>
module attributes {stable_mosaic.version = 11 : i64} {
  func.func @matmul_stats_kernel(%arg0: i32, %arg1: memref<256x128xbf16, #tpu.memory_space<vmem>>, %arg2: memref<128x128xbf16, #tpu.memory_space<vmem>>, %arg3: memref<256x128xf32, #tpu.memory_space<vmem>>, %arg4: memref<1x8x128xf32, #tpu.memory_space<vmem>>) attributes {dimension_semantics = [#tpu.dimension_semantics<parallel>], iteration_bounds = array<i64: 2>, scalar_prefetch = 0 : i64, scratch_operands = 0 : i64, tpu.core_type = #tpu.core_type<tc>, window_params = [{transform_indices = @transform_0, window_bounds = array<i64: 256, 128>}, {pipeline_mode = #tpu.pipeline_mode<synchronous>, transform_indices = @transform_1, window_bounds = array<i64: 128, 128>}, {transform_indices = @transform_2, window_bounds = array<i64: 256, 128>}, {transform_indices = @transform_3, window_bounds = array<i64: 1, 8, 128>}]} {
    %c0 = arith.constant 0 : index
    %c0_0 = arith.constant 0 : index
    %0 = vector.load %arg1[%c0, %c0_0] : memref<256x128xbf16, #tpu.memory_space<vmem>>, vector<256x128xbf16>
    %c0_1 = arith.constant 0 : index
    %c0_2 = arith.constant 0 : index
    %1 = vector.load %arg2[%c0_1, %c0_2] : memref<128x128xbf16, #tpu.memory_space<vmem>>, vector<128x128xbf16>
    %cst = arith.constant dense<0.000000e+00> : vector<256x128xf32>
    %2 = tpu.matmul %0, %1, %cst {dimension_numbers = #tpu.dot_dimension_numbers<[1], [0], [0], [1], [0, 0, 1, 1], [], []>} : vector<256x128xbf16>, vector<128x128xbf16>, vector<256x128xf32> -> vector<256x128xf32>
    %c0_3 = arith.constant 0 : index
    %c0_4 = arith.constant 0 : index
    %3 = vector.load %arg3[%c0_3, %c0_4] : memref<256x128xf32, #tpu.memory_space<vmem>>, vector<256x128xf32>
    tpu.vector_store %arg3[%c0_3, %c0_4], %2 {strides = array<i32>} : memref<256x128xf32, #tpu.memory_space<vmem>>, vector<256x128xf32>,
    %cst_5 = arith.constant dense<0.000000e+00> : vector<128xf32>
    %4 = vector.multi_reduction <add>, %2, %cst_5 [0] : vector<256x128xf32> to vector<128xf32>
    %5 = vector.shape_cast %4 : vector<128xf32> to vector<1x128xf32>
    %6 = arith.mulf %2, %2 : vector<256x128xf32>
    %cst_6 = arith.constant dense<0.000000e+00> : vector<128xf32>
    %7 = vector.multi_reduction <add>, %6, %cst_6 [0] : vector<256x128xf32> to vector<128xf32>
    %8 = vector.shape_cast %7 : vector<128xf32> to vector<1x128xf32>
    %cst_7 = arith.constant 0.000000e+00 : f32
    %9 = vector.broadcast %cst_7 : f32 to vector<6x128xf32>
    %10 = tpu.concatenate %5, %8, %9 in 0 : vector<1x128xf32>, vector<1x128xf32>, vector<6x128xf32> -> vector<8x128xf32>
    %11 = vector.shape_cast %10 : vector<8x128xf32> to vector<1x8x128xf32>
    %c0_8 = arith.constant 0 : index
    %c0_9 = arith.constant 0 : index
    %c0_10 = arith.constant 0 : index
    %12 = vector.load %arg4[%c0_8, %c0_9, %c0_10] : memref<1x8x128xf32, #tpu.memory_space<vmem>>, vector<1x8x128xf32>
    tpu.vector_store %arg4[%c0_8, %c0_9, %c0_10], %11 {strides = array<i32>} : memref<1x8x128xf32, #tpu.memory_space<vmem>>, vector<1x8x128xf32>,
    return
  }
  func.func @transform_0(%arg0: i32) -> (i32, i32) {
    %c0_i32 = arith.constant 0 : i32
    %c0_i32_0 = arith.constant 0 : i32
    return %arg0, %c0_i32 : i32, i32
  }
  func.func @transform_1(%arg0: i32) -> (i32, i32) {
    %c0_i32 = arith.constant 0 : i32
    %c0_i32_0 = arith.constant 0 : i32
    %c0_i32_1 = arith.constant 0 : i32
    return %c0_i32, %c0_i32_0 : i32, i32
  }
  func.func @transform_2(%arg0: i32) -> (i32, i32) {
    %c0_i32 = arith.constant 0 : i32
    %c0_i32_0 = arith.constant 0 : i32
    return %arg0, %c0_i32 : i32, i32
  }
  func.func @transform_3(%arg0: i32) -> (i32, i32, i32) {
    %c0_i32 = arith.constant 0 : i32
    %c0_i32_0 = arith.constant 0 : i32
    %c0_i32_1 = arith.constant 0 : i32
    return %arg0, %c0_i32, %c0_i32_0 : i32, i32, i32
  }
}

module attributes {stable_mosaic.version = 11 : i64} {
  func.func @bn_lrelu_kernel(%arg0: i32, %arg1: memref<256x128xf32, #tpu.memory_space<vmem>>, %arg2: memref<1x128xf32, #tpu.memory_space<vmem>>, %arg3: memref<1x128xf32, #tpu.memory_space<vmem>>, %arg4: memref<256x128xbf16, #tpu.memory_space<vmem>>) attributes {dimension_semantics = [#tpu.dimension_semantics<parallel>], iteration_bounds = array<i64: 2>, scalar_prefetch = 0 : i64, scratch_operands = 0 : i64, tpu.core_type = #tpu.core_type<tc>, window_params = [{transform_indices = @transform_0, window_bounds = array<i64: 256, 128>}, {pipeline_mode = #tpu.pipeline_mode<synchronous>, transform_indices = @transform_1, window_bounds = array<i64: 1, 128>}, {pipeline_mode = #tpu.pipeline_mode<synchronous>, transform_indices = @transform_2, window_bounds = array<i64: 1, 128>}, {transform_indices = @transform_3, window_bounds = array<i64: 256, 128>}]} {
    %c0 = arith.constant 0 : index
    %c0_0 = arith.constant 0 : index
    %0 = vector.load %arg1[%c0, %c0_0] : memref<256x128xf32, #tpu.memory_space<vmem>>, vector<256x128xf32>
    %c0_1 = arith.constant 0 : index
    %c0_2 = arith.constant 0 : index
    %1 = vector.load %arg2[%c0_1, %c0_2] : memref<1x128xf32, #tpu.memory_space<vmem>>, vector<1x128xf32>
    %2 = vector.broadcast %1 : vector<1x128xf32> to vector<256x128xf32>
    %3 = arith.mulf %0, %2 : vector<256x128xf32>
    %c0_3 = arith.constant 0 : index
    %c0_4 = arith.constant 0 : index
    %4 = vector.load %arg3[%c0_3, %c0_4] : memref<1x128xf32, #tpu.memory_space<vmem>>, vector<1x128xf32>
    %5 = vector.broadcast %4 : vector<1x128xf32> to vector<256x128xf32>
    %6 = arith.addf %3, %5 : vector<256x128xf32>
    %cst = arith.constant 0.000000e+00 : f32
    %7 = vector.broadcast %cst : f32 to vector<256x128xf32>
    %8 = arith.cmpf oge, %6, %7 : vector<256x128xf32>
    %cst_5 = arith.constant 1.000000e-01 : f32
    %9 = vector.broadcast %cst_5 : f32 to vector<256x128xf32>
    %10 = arith.mulf %9, %6 : vector<256x128xf32>
    %11 = arith.select %8, %6, %10 : vector<256x128xi1>, vector<256x128xf32>
    %12 = arith.truncf %11 : vector<256x128xf32> to vector<256x128xbf16>
    %c0_6 = arith.constant 0 : index
    %c0_7 = arith.constant 0 : index
    %13 = vector.load %arg4[%c0_6, %c0_7] : memref<256x128xbf16, #tpu.memory_space<vmem>>, vector<256x128xbf16>
    tpu.vector_store %arg4[%c0_6, %c0_7], %12 {strides = array<i32>} : memref<256x128xbf16, #tpu.memory_space<vmem>>, vector<256x128xbf16>,
    return
  }
  func.func @transform_0(%arg0: i32) -> (i32, i32) {
    %c0_i32 = arith.constant 0 : i32
    %c0_i32_0 = arith.constant 0 : i32
    return %arg0, %c0_i32 : i32, i32
  }
  func.func @transform_1(%arg0: i32) -> (i32, i32) {
    %c0_i32 = arith.constant 0 : i32
    %c0_i32_0 = arith.constant 0 : i32
    %c0_i32_1 = arith.constant 0 : i32
    return %c0_i32, %c0_i32_0 : i32, i32
  }
  func.func @transform_2(%arg0: i32) -> (i32, i32) {
    %c0_i32 = arith.constant 0 : i32
    %c0_i32_0 = arith.constant 0 : i32
    %c0_i32_1 = arith.constant 0 : i32
    return %c0_i32, %c0_i32_0 : i32, i32
  }
  func.func @transform_3(%arg0: i32) -> (i32, i32) {
    %c0_i32 = arith.constant 0 : i32
    %c0_i32_0 = arith.constant 0 : i32
    return %arg0, %c0_i32 : i32, i32
  }
}

module attributes {stable_mosaic.version = 11 : i64} {
  func.func @conv3x3_stats_kernel(%arg0: i32, %arg1: i32, %arg2: memref<1x18x18x128xbf16, #tpu.memory_space<vmem>>, %arg3: memref<9x128x128xbf16, #tpu.memory_space<vmem>>, %arg4: memref<128x128xf32, #tpu.memory_space<vmem>>, %arg5: memref<1x8x128xf32, #tpu.memory_space<vmem>>) attributes {dimension_semantics = [#tpu.dimension_semantics<parallel>, #tpu.dimension_semantics<parallel>], iteration_bounds = array<i64: 2, 2>, scalar_prefetch = 0 : i64, scratch_operands = 0 : i64, tpu.core_type = #tpu.core_type<tc>, window_params = [{transform_indices = @transform_0, window_bounds = array<i64: 1, 18, 18, 128>}, {pipeline_mode = #tpu.pipeline_mode<synchronous>, transform_indices = @transform_1, window_bounds = array<i64: 9, 128, 128>}, {transform_indices = @transform_2, window_bounds = array<i64: 128, 128>}, {transform_indices = @transform_3, window_bounds = array<i64: 1, 8, 128>}]} {
    %c8_i32 = arith.constant 8 : i32
    %0 = arith.muli %arg1, %c8_i32 : i32
    %1 = tpu.assume_multiple %0, 8 : i32
    %c0 = arith.constant 0 : index
    %2 = arith.index_cast %1 : i32 to index
    %c0_0 = arith.constant 0 : index
    %c0_1 = arith.constant 0 : index
    %3 = vector.load %arg2[%c0, %2, %c0_0, %c0_1] : memref<1x18x18x128xbf16, #tpu.memory_space<vmem>>, vector<1x10x18x128xbf16>
    %4 = vector.shape_cast %3 : vector<1x10x18x128xbf16> to vector<10x18x128xbf16>
    %cst = arith.constant 0.000000e+00 : f32
    %5 = vector.broadcast %cst : f32 to vector<128x128xf32>
    %6 = vector.extract_strided_slice %4 {offsets = [0, 0, 0], sizes = [8, 16, 128], strides = [1, 1, 1]} : vector<10x18x128xbf16> to vector<8x16x128xbf16>
    %7 = vector.shape_cast %6 : vector<8x16x128xbf16> to vector<128x128xbf16>
    %c0_2 = arith.constant 0 : index
    %c0_3 = arith.constant 0 : index
    %c0_4 = arith.constant 0 : index
    %8 = vector.load %arg3[%c0_2, %c0_3, %c0_4] : memref<9x128x128xbf16, #tpu.memory_space<vmem>>, vector<1x128x128xbf16>
    %9 = vector.shape_cast %8 : vector<1x128x128xbf16> to vector<128x128xbf16>
    %cst_5 = arith.constant dense<0.000000e+00> : vector<128x128xf32>
    %10 = tpu.matmul %7, %9, %cst_5 {dimension_numbers = #tpu.dot_dimension_numbers<[1], [0], [0], [1], [0, 0, 1, 1], [], []>} : vector<128x128xbf16>, vector<128x128xbf16>, vector<128x128xf32> -> vector<128x128xf32>
    %11 = arith.addf %5, %10 : vector<128x128xf32>
    %12 = vector.extract_strided_slice %4 {offsets = [0, 1, 0], sizes = [8, 16, 128], strides = [1, 1, 1]} : vector<10x18x128xbf16> to vector<8x16x128xbf16>
    %13 = vector.shape_cast %12 : vector<8x16x128xbf16> to vector<128x128xbf16>
    %c1 = arith.constant 1 : index
    %c0_6 = arith.constant 0 : index
    %c0_7 = arith.constant 0 : index
    %14 = vector.load %arg3[%c1, %c0_6, %c0_7] : memref<9x128x128xbf16, #tpu.memory_space<vmem>>, vector<1x128x128xbf16>
    %15 = vector.shape_cast %14 : vector<1x128x128xbf16> to vector<128x128xbf16>
    %cst_8 = arith.constant dense<0.000000e+00> : vector<128x128xf32>
    %16 = tpu.matmul %13, %15, %cst_8 {dimension_numbers = #tpu.dot_dimension_numbers<[1], [0], [0], [1], [0, 0, 1, 1], [], []>} : vector<128x128xbf16>, vector<128x128xbf16>, vector<128x128xf32> -> vector<128x128xf32>
    %17 = arith.addf %11, %16 : vector<128x128xf32>
    %18 = vector.extract_strided_slice %4 {offsets = [0, 2, 0], sizes = [8, 16, 128], strides = [1, 1, 1]} : vector<10x18x128xbf16> to vector<8x16x128xbf16>
    %19 = vector.shape_cast %18 : vector<8x16x128xbf16> to vector<128x128xbf16>
    %c2 = arith.constant 2 : index
    %c0_9 = arith.constant 0 : index
    %c0_10 = arith.constant 0 : index
    %20 = vector.load %arg3[%c2, %c0_9, %c0_10] : memref<9x128x128xbf16, #tpu.memory_space<vmem>>, vector<1x128x128xbf16>
    %21 = vector.shape_cast %20 : vector<1x128x128xbf16> to vector<128x128xbf16>
    %cst_11 = arith.constant dense<0.000000e+00> : vector<128x128xf32>
    %22 = tpu.matmul %19, %21, %cst_11 {dimension_numbers = #tpu.dot_dimension_numbers<[1], [0], [0], [1], [0, 0, 1, 1], [], []>} : vector<128x128xbf16>, vector<128x128xbf16>, vector<128x128xf32> -> vector<128x128xf32>
    %23 = arith.addf %17, %22 : vector<128x128xf32>
    %24 = vector.extract_strided_slice %4 {offsets = [1, 0, 0], sizes = [8, 16, 128], strides = [1, 1, 1]} : vector<10x18x128xbf16> to vector<8x16x128xbf16>
    %25 = vector.shape_cast %24 : vector<8x16x128xbf16> to vector<128x128xbf16>
    %c3 = arith.constant 3 : index
    %c0_12 = arith.constant 0 : index
    %c0_13 = arith.constant 0 : index
    %26 = vector.load %arg3[%c3, %c0_12, %c0_13] : memref<9x128x128xbf16, #tpu.memory_space<vmem>>, vector<1x128x128xbf16>
    %27 = vector.shape_cast %26 : vector<1x128x128xbf16> to vector<128x128xbf16>
    %cst_14 = arith.constant dense<0.000000e+00> : vector<128x128xf32>
    %28 = tpu.matmul %25, %27, %cst_14 {dimension_numbers = #tpu.dot_dimension_numbers<[1], [0], [0], [1], [0, 0, 1, 1], [], []>} : vector<128x128xbf16>, vector<128x128xbf16>, vector<128x128xf32> -> vector<128x128xf32>
    %29 = arith.addf %23, %28 : vector<128x128xf32>
    %30 = vector.extract_strided_slice %4 {offsets = [1, 1, 0], sizes = [8, 16, 128], strides = [1, 1, 1]} : vector<10x18x128xbf16> to vector<8x16x128xbf16>
    %31 = vector.shape_cast %30 : vector<8x16x128xbf16> to vector<128x128xbf16>
    %c4 = arith.constant 4 : index
    %c0_15 = arith.constant 0 : index
    %c0_16 = arith.constant 0 : index
    %32 = vector.load %arg3[%c4, %c0_15, %c0_16] : memref<9x128x128xbf16, #tpu.memory_space<vmem>>, vector<1x128x128xbf16>
    %33 = vector.shape_cast %32 : vector<1x128x128xbf16> to vector<128x128xbf16>
    %cst_17 = arith.constant dense<0.000000e+00> : vector<128x128xf32>
    %34 = tpu.matmul %31, %33, %cst_17 {dimension_numbers = #tpu.dot_dimension_numbers<[1], [0], [0], [1], [0, 0, 1, 1], [], []>} : vector<128x128xbf16>, vector<128x128xbf16>, vector<128x128xf32> -> vector<128x128xf32>
    %35 = arith.addf %29, %34 : vector<128x128xf32>
    %36 = vector.extract_strided_slice %4 {offsets = [1, 2, 0], sizes = [8, 16, 128], strides = [1, 1, 1]} : vector<10x18x128xbf16> to vector<8x16x128xbf16>
    %37 = vector.shape_cast %36 : vector<8x16x128xbf16> to vector<128x128xbf16>
    %c5 = arith.constant 5 : index
    %c0_18 = arith.constant 0 : index
    %c0_19 = arith.constant 0 : index
    %38 = vector.load %arg3[%c5, %c0_18, %c0_19] : memref<9x128x128xbf16, #tpu.memory_space<vmem>>, vector<1x128x128xbf16>
    %39 = vector.shape_cast %38 : vector<1x128x128xbf16> to vector<128x128xbf16>
    %cst_20 = arith.constant dense<0.000000e+00> : vector<128x128xf32>
    %40 = tpu.matmul %37, %39, %cst_20 {dimension_numbers = #tpu.dot_dimension_numbers<[1], [0], [0], [1], [0, 0, 1, 1], [], []>} : vector<128x128xbf16>, vector<128x128xbf16>, vector<128x128xf32> -> vector<128x128xf32>
    %41 = arith.addf %35, %40 : vector<128x128xf32>
    %42 = vector.extract_strided_slice %4 {offsets = [2, 0, 0], sizes = [8, 16, 128], strides = [1, 1, 1]} : vector<10x18x128xbf16> to vector<8x16x128xbf16>
    %43 = vector.shape_cast %42 : vector<8x16x128xbf16> to vector<128x128xbf16>
    %c6 = arith.constant 6 : index
    %c0_21 = arith.constant 0 : index
    %c0_22 = arith.constant 0 : index
    %44 = vector.load %arg3[%c6, %c0_21, %c0_22] : memref<9x128x128xbf16, #tpu.memory_space<vmem>>, vector<1x128x128xbf16>
    %45 = vector.shape_cast %44 : vector<1x128x128xbf16> to vector<128x128xbf16>
    %cst_23 = arith.constant dense<0.000000e+00> : vector<128x128xf32>
    %46 = tpu.matmul %43, %45, %cst_23 {dimension_numbers = #tpu.dot_dimension_numbers<[1], [0], [0], [1], [0, 0, 1, 1], [], []>} : vector<128x128xbf16>, vector<128x128xbf16>, vector<128x128xf32> -> vector<128x128xf32>
    %47 = arith.addf %41, %46 : vector<128x128xf32>
    %48 = vector.extract_strided_slice %4 {offsets = [2, 1, 0], sizes = [8, 16, 128], strides = [1, 1, 1]} : vector<10x18x128xbf16> to vector<8x16x128xbf16>
    %49 = vector.shape_cast %48 : vector<8x16x128xbf16> to vector<128x128xbf16>
    %c7 = arith.constant 7 : index
    %c0_24 = arith.constant 0 : index
    %c0_25 = arith.constant 0 : index
    %50 = vector.load %arg3[%c7, %c0_24, %c0_25] : memref<9x128x128xbf16, #tpu.memory_space<vmem>>, vector<1x128x128xbf16>
    %51 = vector.shape_cast %50 : vector<1x128x128xbf16> to vector<128x128xbf16>
    %cst_26 = arith.constant dense<0.000000e+00> : vector<128x128xf32>
    %52 = tpu.matmul %49, %51, %cst_26 {dimension_numbers = #tpu.dot_dimension_numbers<[1], [0], [0], [1], [0, 0, 1, 1], [], []>} : vector<128x128xbf16>, vector<128x128xbf16>, vector<128x128xf32> -> vector<128x128xf32>
    %53 = arith.addf %47, %52 : vector<128x128xf32>
    %54 = vector.extract_strided_slice %4 {offsets = [2, 2, 0], sizes = [8, 16, 128], strides = [1, 1, 1]} : vector<10x18x128xbf16> to vector<8x16x128xbf16>
    %55 = vector.shape_cast %54 : vector<8x16x128xbf16> to vector<128x128xbf16>
    %c8 = arith.constant 8 : index
    %c0_27 = arith.constant 0 : index
    %c0_28 = arith.constant 0 : index
    %56 = vector.load %arg3[%c8, %c0_27, %c0_28] : memref<9x128x128xbf16, #tpu.memory_space<vmem>>, vector<1x128x128xbf16>
    %57 = vector.shape_cast %56 : vector<1x128x128xbf16> to vector<128x128xbf16>
    %cst_29 = arith.constant dense<0.000000e+00> : vector<128x128xf32>
    %58 = tpu.matmul %55, %57, %cst_29 {dimension_numbers = #tpu.dot_dimension_numbers<[1], [0], [0], [1], [0, 0, 1, 1], [], []>} : vector<128x128xbf16>, vector<128x128xbf16>, vector<128x128xf32> -> vector<128x128xf32>
    %59 = arith.addf %53, %58 : vector<128x128xf32>
    %c0_30 = arith.constant 0 : index
    %c0_31 = arith.constant 0 : index
    %60 = vector.load %arg4[%c0_30, %c0_31] : memref<128x128xf32, #tpu.memory_space<vmem>>, vector<128x128xf32>
    tpu.vector_store %arg4[%c0_30, %c0_31], %59 {strides = array<i32>} : memref<128x128xf32, #tpu.memory_space<vmem>>, vector<128x128xf32>,
    %cst_32 = arith.constant dense<0.000000e+00> : vector<128xf32>
    %61 = vector.multi_reduction <add>, %59, %cst_32 [0] : vector<128x128xf32> to vector<128xf32>
    %62 = vector.shape_cast %61 : vector<128xf32> to vector<1x128xf32>
    %63 = arith.mulf %59, %59 : vector<128x128xf32>
    %cst_33 = arith.constant dense<0.000000e+00> : vector<128xf32>
    %64 = vector.multi_reduction <add>, %63, %cst_33 [0] : vector<128x128xf32> to vector<128xf32>
    %65 = vector.shape_cast %64 : vector<128xf32> to vector<1x128xf32>
    %cst_34 = arith.constant 0.000000e+00 : f32
    %66 = vector.broadcast %cst_34 : f32 to vector<6x128xf32>
    %67 = tpu.concatenate %62, %65, %66 in 0 : vector<1x128xf32>, vector<1x128xf32>, vector<6x128xf32> -> vector<8x128xf32>
    %68 = vector.shape_cast %67 : vector<8x128xf32> to vector<1x8x128xf32>
    %c0_35 = arith.constant 0 : index
    %c0_36 = arith.constant 0 : index
    %c0_37 = arith.constant 0 : index
    %69 = vector.load %arg5[%c0_35, %c0_36, %c0_37] : memref<1x8x128xf32, #tpu.memory_space<vmem>>, vector<1x8x128xf32>
    tpu.vector_store %arg5[%c0_35, %c0_36, %c0_37], %68 {strides = array<i32>} : memref<1x8x128xf32, #tpu.memory_space<vmem>>, vector<1x8x128xf32>,
    return
  }
  func.func @transform_0(%arg0: i32, %arg1: i32) -> (i32, i32, i32, i32) {
    %c0_i32 = arith.constant 0 : i32
    %c0_i32_0 = arith.constant 0 : i32
    %c0_i32_1 = arith.constant 0 : i32
    %c0_i32_2 = arith.constant 0 : i32
    return %arg0, %c0_i32, %c0_i32_0, %c0_i32_1 : i32, i32, i32, i32
  }
  func.func @transform_1(%arg0: i32, %arg1: i32) -> (i32, i32, i32) {
    %c0_i32 = arith.constant 0 : i32
    %c0_i32_0 = arith.constant 0 : i32
    %c0_i32_1 = arith.constant 0 : i32
    %c0_i32_2 = arith.constant 0 : i32
    return %c0_i32, %c0_i32_0, %c0_i32_1 : i32, i32, i32
  }
  func.func @transform_2(%arg0: i32, %arg1: i32) -> (i32, i32) {
    %c2_i32 = arith.constant 2 : i32
    %0 = arith.muli %arg0, %c2_i32 : i32
    %1 = arith.addi %0, %arg1 : i32
    %c0_i32 = arith.constant 0 : i32
    %c0_i32_0 = arith.constant 0 : i32
    return %1, %c0_i32 : i32, i32
  }
  func.func @transform_3(%arg0: i32, %arg1: i32) -> (i32, i32, i32) {
    %c2_i32 = arith.constant 2 : i32
    %0 = arith.muli %arg0, %c2_i32 : i32
    %1 = arith.addi %0, %arg1 : i32
    %c0_i32 = arith.constant 0 : i32
    %c0_i32_0 = arith.constant 0 : i32
    %c0_i32_1 = arith.constant 0 : i32
    return %1, %c0_i32, %c0_i32_0 : i32, i32, i32
  }
}

module attributes {stable_mosaic.version = 11 : i64} {
  func.func @bn_lrelu_residual_kernel(%arg0: i32, %arg1: memref<256x128xf32, #tpu.memory_space<vmem>>, %arg2: memref<1x128xf32, #tpu.memory_space<vmem>>, %arg3: memref<1x128xf32, #tpu.memory_space<vmem>>, %arg4: memref<256x128xf32, #tpu.memory_space<vmem>>, %arg5: memref<256x128xf32, #tpu.memory_space<vmem>>) attributes {dimension_semantics = [#tpu.dimension_semantics<parallel>], iteration_bounds = array<i64: 2>, scalar_prefetch = 0 : i64, scratch_operands = 0 : i64, tpu.core_type = #tpu.core_type<tc>, window_params = [{transform_indices = @transform_0, window_bounds = array<i64: 256, 128>}, {pipeline_mode = #tpu.pipeline_mode<synchronous>, transform_indices = @transform_1, window_bounds = array<i64: 1, 128>}, {pipeline_mode = #tpu.pipeline_mode<synchronous>, transform_indices = @transform_2, window_bounds = array<i64: 1, 128>}, {transform_indices = @transform_3, window_bounds = array<i64: 256, 128>}, {transform_indices = @transform_4, window_bounds = array<i64: 256, 128>}]} {
    %c0 = arith.constant 0 : index
    %c0_0 = arith.constant 0 : index
    %0 = vector.load %arg1[%c0, %c0_0] : memref<256x128xf32, #tpu.memory_space<vmem>>, vector<256x128xf32>
    %c0_1 = arith.constant 0 : index
    %c0_2 = arith.constant 0 : index
    %1 = vector.load %arg2[%c0_1, %c0_2] : memref<1x128xf32, #tpu.memory_space<vmem>>, vector<1x128xf32>
    %2 = vector.broadcast %1 : vector<1x128xf32> to vector<256x128xf32>
    %3 = arith.mulf %0, %2 : vector<256x128xf32>
    %c0_3 = arith.constant 0 : index
    %c0_4 = arith.constant 0 : index
    %4 = vector.load %arg3[%c0_3, %c0_4] : memref<1x128xf32, #tpu.memory_space<vmem>>, vector<1x128xf32>
    %5 = vector.broadcast %4 : vector<1x128xf32> to vector<256x128xf32>
    %6 = arith.addf %3, %5 : vector<256x128xf32>
    %cst = arith.constant 0.000000e+00 : f32
    %7 = vector.broadcast %cst : f32 to vector<256x128xf32>
    %8 = arith.cmpf oge, %6, %7 : vector<256x128xf32>
    %cst_5 = arith.constant 1.000000e-01 : f32
    %9 = vector.broadcast %cst_5 : f32 to vector<256x128xf32>
    %10 = arith.mulf %9, %6 : vector<256x128xf32>
    %11 = arith.select %8, %6, %10 : vector<256x128xi1>, vector<256x128xf32>
    %c0_6 = arith.constant 0 : index
    %c0_7 = arith.constant 0 : index
    %12 = vector.load %arg4[%c0_6, %c0_7] : memref<256x128xf32, #tpu.memory_space<vmem>>, vector<256x128xf32>
    %13 = arith.addf %12, %11 : vector<256x128xf32>
    %c0_8 = arith.constant 0 : index
    %c0_9 = arith.constant 0 : index
    %14 = vector.load %arg5[%c0_8, %c0_9] : memref<256x128xf32, #tpu.memory_space<vmem>>, vector<256x128xf32>
    tpu.vector_store %arg5[%c0_8, %c0_9], %13 {strides = array<i32>} : memref<256x128xf32, #tpu.memory_space<vmem>>, vector<256x128xf32>,
    return
  }
  func.func @transform_0(%arg0: i32) -> (i32, i32) {
    %c0_i32 = arith.constant 0 : i32
    %c0_i32_0 = arith.constant 0 : i32
    return %arg0, %c0_i32 : i32, i32
  }
  func.func @transform_1(%arg0: i32) -> (i32, i32) {
    %c0_i32 = arith.constant 0 : i32
    %c0_i32_0 = arith.constant 0 : i32
    %c0_i32_1 = arith.constant 0 : i32
    return %c0_i32, %c0_i32_0 : i32, i32
  }
  func.func @transform_2(%arg0: i32) -> (i32, i32) {
    %c0_i32 = arith.constant 0 : i32
    %c0_i32_0 = arith.constant 0 : i32
    %c0_i32_1 = arith.constant 0 : i32
    return %c0_i32, %c0_i32_0 : i32, i32
  }
  func.func @transform_3(%arg0: i32) -> (i32, i32) {
    %c0_i32 = arith.constant 0 : i32
    %c0_i32_0 = arith.constant 0 : i32
    return %arg0, %c0_i32 : i32, i32
  }
  func.func @transform_4(%arg0: i32) -> (i32, i32) {
    %c0_i32 = arith.constant 0 : i32
    %c0_i32_0 = arith.constant 0 : i32
    return %arg0, %c0_i32 : i32, i32
  }
}

</mosaic_0001>

<llo_original>
// kernel: residual_layer_forward.4
$region0: #{residual_layer_forward.4}
  #allocation0 [shape = 'u32[]', space=smem, size = 0x4, offset = 0x4, fixed_abs, tag = 'smem constant byte address 0x4 - core index']
  #allocation1 [shape = 'u32[144,128]{1,0:T(1,128)}', space=vmem, size = 0x12000, scoped, tag = 'internal scratch']
  %s0 = inlined_call_operand.vmem [shape: bf16[512,128], index: 0, kind: input, shape index: {}]
  %s1 = inlined_call_operand.vmem [shape: bf16[128,128], index: 1, kind: input, shape index: {}]
  %s2 = inlined_call_operand.vmem [shape: f32[512,128], index: 2, kind: output, shape index: {0}]
  %s3 = inlined_call_operand.vmem [shape: f32[2,8,128], index: 3, kind: output, shape index: {1}]
  %4 = xla_tuple %s2, %s3
  %s5 = sld [smem:[#allocation0]]
  $region49: #{residual_layer_forward.4} parent=0
    _
  %s7 = ssub.s32 1, %s5
  %s8 = scalar_select 0, %s7, %s5
  loop: start=0, step=1, limit=4
  $region2: #{residual_layer_forward.4} parent=0 // loop_pre_header
    _
  $region3: #{residual_layer_forward.4} parent=0 // loop_header
    %s10 = sphi 0, %s14
    %p11 = scmp.ge.s32.totalorder %s10, 4
    %s20 = sphi 0, %s22
    %s23 = sphi 0, %s20
    %s24 = sphi 0, %s23
    %s40 = sphi 0, %s24
    %s44 = sphi 0, %s44
    %s46 = sphi 0, %s44
    %s47 = sphi 0, %s46
    %s61 = sphi 0, %s47
    %s67 = sphi 0, %s69
    %s70 = sphi 0, %s67
    %s71 = sphi 0, %s70
    %s87 = sphi 0, %s71
    %s93 = sphi 0, %s95
    %s96 = sphi 0, %s93
    %s97 = sphi 0, %s96
    %s113 = sphi 0, %s97
  $region4: #{residual_layer_forward.4} parent=0 // loop_header_branch
    %13 = sbr.rel (%p11) target = $region8
  $region5: #{residual_layer_forward.4} parent=0 // loop_body
    %s15 = ssub.s32 %s10, 1
    %s16 = ssub.s32 %s10, 2
    %s17 = sadd.s32 %s10, 1
    %s18 = ssub.s32 %s10, %s17
    %p19 = scmp.eq.s32.totalorder %s18, 0
    %s21 = sadd.s32 %s20, 1
    %s22 = scalar_select %p19, %s20, %s21
    %p25 = pneg %p19
    %p26 = scmp.eq.s32.totalorder %s10, 1
    %p27 = por %p25, %p26
    %p28 = scmp.ne.s32.totalorder %s20, %s23
    %p29 = scmp.eq.s32.totalorder %s10, 0
    %p30 = por %p28, %p29
    %p31 = scmp.ne.s32.totalorder %s20, %s23
    %p32 = scmp.eq.s32.totalorder %s15, 1
    %p33 = por %p31, %p32
    %p34 = scmp.ne.s32.totalorder %s23, %s24
    %p35 = scmp.eq.s32.totalorder %s15, 0
    %p36 = por %p34, %p35
    %p37 = scmp.ne.s32.totalorder %s23, %s24
    %p38 = scmp.eq.s32.totalorder %s16, 1
    %p39 = por %p37, %p38
    %p41 = scmp.ne.s32.totalorder %s24, %s40
    %p42 = scmp.eq.s32.totalorder %s16, 0
    %p43 = por %p41, %p42
    %s45 = sadd.s32 %s44, 1
    %p48 = scmp.eq.s32.totalorder %s10, 1
    %p49 = scmp.ne.s32.totalorder %s44, %s46
    %p50 = scmp.eq.s32.totalorder %s10, 0
    %p51 = por %p49, %p50
    %p52 = scmp.ne.s32.totalorder %s44, %s46
    %p53 = scmp.eq.s32.totalorder %s15, 1
    %p54 = por %p52, %p53
    %p55 = scmp.ne.s32.totalorder %s46, %s47
    %p56 = scmp.eq.s32.totalorder %s15, 0
    %p57 = por %p55, %p56
    %p58 = scmp.ne.s32.totalorder %s46, %s47
    %p59 = scmp.eq.s32.totalorder %s16, 1
    %p60 = por %p58, %p59
    %p62 = scmp.ne.s32.totalorder %s47, %s61
    %p63 = scmp.eq.s32.totalorder %s16, 0
    %p64 = por %p62, %p63
    %s65 = ssub.s32 %s10, %s17
    %p66 = scmp.eq.s32.totalorder %s65, 0
    %s68 = sadd.s32 %s67, 1
    %s69 = scalar_select %p66, %s67, %s68
    %p72 = pneg %p66
    %p73 = scmp.eq.s32.totalorder %s10, 1
    %p74 = por %p72, %p73
    %p75 = scmp.ne.s32.totalorder %s67, %s70
    %p76 = scmp.eq.s32.totalorder %s10, 0
    %p77 = por %p75, %p76
    %p78 = scmp.ne.s32.totalorder %s67, %s70
    %p79 = scmp.eq.s32.totalorder %s15, 1
    %p80 = por %p78, %p79
    %p81 = scmp.ne.s32.totalorder %s70, %s71
    %p82 = scmp.eq.s32.totalorder %s15, 0
    %p83 = por %p81, %p82
    %p84 = scmp.ne.s32.totalorder %s70, %s71
    %p85 = scmp.eq.s32.totalorder %s16, 1
    %p86 = por %p84, %p85
    %p88 = scmp.ne.s32.totalorder %s71, %s87
    %p89 = scmp.eq.s32.totalorder %s16, 0
    %p90 = por %p88, %p89
    %s91 = ssub.s32 %s10, %s17
    %p92 = scmp.eq.s32.totalorder %s91, 0
    %s94 = sadd.s32 %s93, 1
    %s95 = scalar_select %p92, %s93, %s94
    %p98 = pneg %p92
    %p99 = scmp.eq.s32.totalorder %s10, 1
    %p100 = por %p98, %p99
    %p101 = scmp.ne.s32.totalorder %s93, %s96
    %p102 = scmp.eq.s32.totalorder %s10, 0
    %p103 = por %p101, %p102
    %p104 = scmp.ne.s32.totalorder %s93, %s96
    %p105 = scmp.eq.s32.totalorder %s15, 1
    %p106 = por %p104, %p105
    %p107 = scmp.ne.s32.totalorder %s96, %s97
    %p108 = scmp.eq.s32.totalorder %s15, 0
    %p109 = por %p107, %p108
    %p110 = scmp.ne.s32.totalorder %s96, %s97
    %p111 = scmp.eq.s32.totalorder %s16, 1
    %p112 = por %p110, %p111
    %p114 = scmp.ne.s32.totalorder %s97, %s113
    %p115 = scmp.eq.s32.totalorder %s16, 0
    %p116 = por %p114, %p115
    %p117 = scmp.le.s32.totalorder 1, %s10
    %p118 = scmp.lt.s32.totalorder %s10, 3
    %p119 = pnand %p117, %p118
    %p120 = pneg %p119
    // Predicated region
    $region9: #{residual_layer_forward.4} parent=5 // pred_check
      _
    $region10: #{residual_layer_forward.4} parent=5 // pred_check_branch
      %122 = sbr.rel (%p119) target = $region12
    $region11: #{residual_layer_forward.4} parent=5 // pred_region
      %s123 = ssub.s32 %s10, 1
      // Predicated region
      $region13: #{residual_layer_forward.4} parent=11 // pred_check
        %p124 = pneg %p57
      $region14: #{residual_layer_forward.4} parent=11 // pred_check_branch
        %126 = sbr.rel (%p124) target = $region16
      $region15: #{residual_layer_forward.4} parent=11 // pred_region
        _
      $region16: #{residual_layer_forward.4} parent=11 // pred_fallthru
        _
    $region12: #{residual_layer_forward.4} parent=5 // pred_fallthru
      _
    %p127 = scmp.lt.s32.totalorder %s10, 2
    // Predicated region
    $region17: #{residual_layer_forward.4} parent=5 // pred_check
      %p128 = pneg %p127
    $region18: #{residual_layer_forward.4} parent=5 // pred_check_branch
      %130 = sbr.rel (%p128) target = $region20
    $region19: #{residual_layer_forward.4} parent=5 // pred_region
      // Predicated region
      $region21: #{residual_layer_forward.4} parent=19 // pred_check
        %p131 = pneg %p30
      $region22: #{residual_layer_forward.4} parent=19 // pred_check_branch
        %133 = sbr.rel (%p131) target = $region24
      $region23: #{residual_layer_forward.4} parent=19 // pred_region
        %s134 = smul.u32 32, %s10
        %p135 = scmp.lt.s32.totalorder %s134, 63
        %s136 = scalar_select %p135, %s134, 63
        %s137 = smul.addr %s136, 4
        %s138 = scalar_lea.vmem %s0, %s137
        %s139 = smul.u32 32, %s10
      $region24: #{residual_layer_forward.4} parent=19 // pred_fallthru
        _
    $region20: #{residual_layer_forward.4} parent=5 // pred_fallthru
      _
    %p140 = scmp.le.s32.totalorder 1, %s10
    %p141 = scmp.lt.s32.totalorder %s10, 3
    %p142 = pnand %p140, %p141
    %p143 = pneg %p142
    // Predicated region
    $region25: #{residual_layer_forward.4} parent=5 // pred_check
      _
    $region26: #{residual_layer_forward.4} parent=5 // pred_check_branch
      %145 = sbr.rel (%p142) target = $region28
    $region27: #{residual_layer_forward.4} parent=5 // pred_region
      %s146 = ssub.s32 %s10, 1
      %s147 = smul.u32 32, %s15
      %p148 = scmp.lt.s32.totalorder %s147, 63
      %s149 = scalar_select %p148, %s147, 63
      %s150 = smul.addr %s149, 4
      %s151 = scalar_lea.vmem %s0, %s150
      %p152 = pneg %p36
      %p153 = pneg %p33
      %p154 = pneg %p57
      %p155 = pneg %p54
      %p156 = pneg %p83
      %p157 = pneg %p80
      %s158 = smul.u32 32, %s15
      %p159 = scmp.lt.s32.totalorder %s158, 63
      %s160 = scalar_select %p159, %s158, 63
      %s161 = smul.addr %s160, 8
      %s162 = scalar_lea.vmem %s2, %s161
      %p163 = pneg %p109
      %p164 = pneg %p106
      %p165 = scmp.lt.s32.totalorder %s15, 1
      %s166 = scalar_select %p165, %s15, 1
      %s167 = smul.addr %s166, 8
      %s168 = scalar_lea.vmem %s3, %s167
      %s169 = smul.u32 32, %s15
      %p170 = scmp.lt.s32.totalorder %s169, 63
      %s171 = scalar_select %p170, %s169, 63
      %s172 = smul.addr %s171, 4
      %s173 = scalar_lea.vmem %s0, %s172
      %s174 = smul.u32 32, %s15
      %s175 = smul.u32 32, %s15
      %p176 = scmp.lt.s32.totalorder %s175, 63
      %s177 = scalar_select %p176, %s175, 63
      %s178 = smul.addr %s177, 8
      %s179 = scalar_lea.vmem %s2, %s178
      %s180 = smul.u32 32, %s15
      %p181 = scmp.lt.s32.totalorder %s15, 1
      %s182 = scalar_select %p181, %s15, 1
      %s183 = smul.addr %s182, 8
      %s184 = scalar_lea.vmem %s3, %s183
      %v186 = vld [vmem:[%s173] sm:$0xf]
      %v187 = vld [vmem:[%s173 + $0x4] sm:$0xf]
      %v188 = vld [vmem:[%s173 + $0x8] sm:$0xf]
      %v189 = vld [vmem:[%s173 + $0xc] sm:$0xf]
      %v190 = vld [vmem:[%s173 + $0x10] sm:$0xf]
      %v191 = vld [vmem:[%s173 + $0x14] sm:$0xf]
      %v192 = vld [vmem:[%s173 + $0x18] sm:$0xf]
      %v193 = vld [vmem:[%s173 + $0x1c] sm:$0xf]
      %v194 = vld [vmem:[%s173 + $0x20] sm:$0xf]
      %v195 = vld [vmem:[%s173 + $0x24] sm:$0xf]
      %v196 = vld [vmem:[%s173 + $0x28] sm:$0xf]
      %v197 = vld [vmem:[%s173 + $0x2c] sm:$0xf]
      %v198 = vld [vmem:[%s173 + $0x30] sm:$0xf]
      %v199 = vld [vmem:[%s173 + $0x34] sm:$0xf]
      %v200 = vld [vmem:[%s173 + $0x38] sm:$0xf]
      %v201 = vld [vmem:[%s173 + $0x3c] sm:$0xf]
      %v202 = vld [vmem:[%s173 + $0x40] sm:$0xf]
      %v203 = vld [vmem:[%s173 + $0x44] sm:$0xf]
      %v204 = vld [vmem:[%s173 + $0x48] sm:$0xf]
      %v205 = vld [vmem:[%s173 + $0x4c] sm:$0xf]
      %v206 = vld [vmem:[%s173 + $0x50] sm:$0xf]
      %v207 = vld [vmem:[%s173 + $0x54] sm:$0xf]
      %v208 = vld [vmem:[%s173 + $0x58] sm:$0xf]
      %v209 = vld [vmem:[%s173 + $0x5c] sm:$0xf]
      %v210 = vld [vmem:[%s173 + $0x60] sm:$0xf]
      %v211 = vld [vmem:[%s173 + $0x64] sm:$0xf]
      %v212 = vld [vmem:[%s173 + $0x68] sm:$0xf]
      %v213 = vld [vmem:[%s173 + $0x6c] sm:$0xf]
      %v214 = vld [vmem:[%s173 + $0x70] sm:$0xf]
      %v215 = vld [vmem:[%s173 + $0x74] sm:$0xf]
      %v216 = vld [vmem:[%s173 + $0x78] sm:$0xf]
      %v217 = vld [vmem:[%s173 + $0x7c] sm:$0xf]
      %v218 = vld [vmem:[%s1] sm:$0xf]
      %v219 = vld [vmem:[%s1 + $0x4] sm:$0xf]
      %v220 = vld [vmem:[%s1 + $0x8] sm:$0xf]
      %v221 = vld [vmem:[%s1 + $0xc] sm:$0xf]
      %v222 = vld [vmem:[%s1 + $0x10] sm:$0xf]
      %v223 = vld [vmem:[%s1 + $0x14] sm:$0xf]
      %v224 = vld [vmem:[%s1 + $0x18] sm:$0xf]
      %v225 = vld [vmem:[%s1 + $0x1c] sm:$0xf]
      %v226 = vld [vmem:[%s1 + $0x20] sm:$0xf]
      %v227 = vld [vmem:[%s1 + $0x24] sm:$0xf]
      %v228 = vld [vmem:[%s1 + $0x28] sm:$0xf]
      %v229 = vld [vmem:[%s1 + $0x2c] sm:$0xf]
      %v230 = vld [vmem:[%s1 + $0x30] sm:$0xf]
      %v231 = vld [vmem:[%s1 + $0x34] sm:$0xf]
      %v232 = vld [vmem:[%s1 + $0x38] sm:$0xf]
      %v233 = vld [vmem:[%s1 + $0x3c] sm:$0xf]
      %v266 = vunpack.c.l.b16 %v186
      %v267 = vunpack.c.l.b16 %v187
      %v268 = vunpack.c.l.b16 %v188
      %v269 = vunpack.c.l.b16 %v189
      %v270 = vunpack.c.l.b16 %v190
      %v271 = vunpack.c.l.b16 %v191
      %v272 = vunpack.c.l.b16 %v192
      %v273 = vunpack.c.l.b16 %v193
      %v274 = vunpack.c.l.b16 %v194
      %v275 = vunpack.c.l.b16 %v195
      %v276 = vunpack.c.l.b16 %v196
      %v277 = vunpack.c.l.b16 %v197
      %v278 = vunpack.c.l.b16 %v198
      %v279 = vunpack.c.l.b16 %v199
      %v280 = vunpack.c.l.b16 %v200
      %v281 = vunpack.c.l.b16 %v201
      %v282 = vunpack.c.l.b16 %v202
      %v283 = vunpack.c.l.b16 %v203
      %v284 = vunpack.c.l.b16 %v204
      %v285 = vunpack.c.l.b16 %v205
      %v286 = vunpack.c.l.b16 %v206
      %v287 = vunpack.c.l.b16 %v207
      %v288 = vunpack.c.l.b16 %v208
      %v289 = vunpack.c.l.b16 %v209
      %v290 = vunpack.c.l.b16 %v210
      %v291 = vunpack.c.l.b16 %v211
      %v292 = vunpack.c.l.b16 %v212
      %v293 = vunpack.c.l.b16 %v213
      %v294 = vunpack.c.l.b16 %v214
      %v295 = vunpack.c.l.b16 %v215
      %v296 = vunpack.c.l.b16 %v216
      %v297 = vunpack.c.l.b16 %v217
      %v298 = vpack.c.b16 %v267, %v266
      %v299 = vpack.c.b16 %v269, %v268
      %v300 = vpack.c.b16 %v271, %v270
      %v301 = vpack.c.b16 %v273, %v272
      %v302 = vpack.c.b16 %v275, %v274
      %v303 = vpack.c.b16 %v277, %v276
      %v304 = vpack.c.b16 %v279, %v278
      %v305 = vpack.c.b16 %v281, %v280
      %v306 = vpack.c.b16 %v283, %v282
      %v307 = vpack.c.b16 %v285, %v284
      %v308 = vpack.c.b16 %v287, %v286
      %v309 = vpack.c.b16 %v289, %v288
      %v310 = vpack.c.b16 %v291, %v290
      %v311 = vpack.c.b16 %v293, %v292
      %v312 = vpack.c.b16 %v295, %v294
      %v313 = vpack.c.b16 %v297, %v296
      %v346 = vunpack.c.l.b16 %v218
      %v347 = vunpack.c.l.b16 %v219
      %v348 = vunpack.c.l.b16 %v220
      %v349 = vunpack.c.l.b16 %v221
      %v350 = vunpack.c.l.b16 %v222
      %v351 = vunpack.c.l.b16 %v223
      %v352 = vunpack.c.l.b16 %v224
      %v353 = vunpack.c.l.b16 %v225
      %v354 = vunpack.c.l.b16 %v226
      %v355 = vunpack.c.l.b16 %v227
      %v356 = vunpack.c.l.b16 %v228
      %v357 = vunpack.c.l.b16 %v229
      %v358 = vunpack.c.l.b16 %v230
      %v359 = vunpack.c.l.b16 %v231
      %v360 = vunpack.c.l.b16 %v232
      %v361 = vunpack.c.l.b16 %v233
      %v362 = vpack.c.b16 %v347, %v346
      %v363 = vpack.c.b16 %v349, %v348
      %v364 = vpack.c.b16 %v351, %v350
      %v365 = vpack.c.b16 %v353, %v352
      %v366 = vpack.c.b16 %v355, %v354
      %v367 = vpack.c.b16 %v357, %v356
      %v368 = vpack.c.b16 %v359, %v358
      %v369 = vpack.c.b16 %v361, %v360
      %378 = vmatprep.subr.bf16.mxu0 0
      %379 = vmatpush1.bf16.msra.mxu0 %v362
      %380 = vmatprep.subr.bf16.mxu0 0
      %381 = vmatpush1.bf16.msra.mxu0 %v363
      %382 = vmatprep.subr.bf16.mxu0 0
      %383 = vmatpush1.bf16.msra.mxu0 %v364
      %384 = vmatprep.subr.bf16.mxu0 0
      %385 = vmatpush1.bf16.msra.mxu0 %v365
      %386 = vmatprep.subr.bf16.mxu0 0
      %387 = vmatpush1.bf16.msra.mxu0 %v366
      %388 = vmatprep.subr.bf16.mxu0 0
      %389 = vmatpush1.bf16.msra.mxu0 %v367
      %390 = vmatprep.subr.bf16.mxu0 0
      %391 = vmatpush1.bf16.msra.mxu0 %v368
      %392 = vmatprep.subr.bf16.mxu0 0
      %393 = vmatpush1.bf16.msra.mxu0 %v369
      %394 = vmatprep.subr.bf16.mxu0 0
      %395 = vmatpush1.bf16.msra.mxu0 0
      %396 = vmatprep.subr.bf16.mxu0 0
      %397 = vmatpush1.bf16.msra.mxu0 0
      %398 = vmatprep.subr.bf16.mxu0 0
      %399 = vmatpush1.bf16.msra.mxu0 0
      %400 = vmatprep.subr.bf16.mxu0 0
      %401 = vmatpush1.bf16.msra.mxu0 0
      %402 = vmatprep.subr.bf16.mxu0 0
      %403 = vmatpush1.bf16.msra.mxu0 0
      %404 = vmatprep.subr.bf16.mxu0 0
      %405 = vmatpush1.bf16.msra.mxu0 0
      %406 = vmatprep.subr.bf16.mxu0 0
      %407 = vmatpush1.bf16.msra.mxu0 0
      %408 = vmatprep.subr.bf16.mxu0 0
      %409 = vmatpush1.bf16.msra.mxu0 0
      %410 = vmatprep.mubr.bf16.mxu0 0
      %411 = vmatmul.mubr.bf16.gmra.mrb[0].mxu0 %v298
      %v412 = vpop.f32.mrb[0].mxu0
      %v413 = vadd.f32 0.0, %v412
      %v414 = vpop.f32.mrb[0].mxu0
      %v415 = vpop.f32.mrb[0].mxu0
      %v416 = vadd.f32 0.0, %v415
      %v417 = vpop.f32.mrb[0].mxu0
      %418 = vmatprep.mubr.bf16.mxu0 0
      %419 = vmatmul.mubr.bf16.gmra.mrb[0].mxu0 %v299
      %v420 = vpop.f32.mrb[0].mxu0
      %v421 = vadd.f32 0.0, %v420
      %v422 = vpop.f32.mrb[0].mxu0
      %v423 = vpop.f32.mrb[0].mxu0
      %v424 = vadd.f32 0.0, %v423
      %v425 = vpop.f32.mrb[0].mxu0
      %426 = vmatprep.mubr.bf16.mxu0 0
      %427 = vmatmul.mubr.bf16.gmra.mrb[0].mxu0 %v300
      %v428 = vpop.f32.mrb[0].mxu0
      %v429 = vadd.f32 0.0, %v428
      %v430 = vpop.f32.mrb[0].mxu0
      %v431 = vpop.f32.mrb[0].mxu0
      %v432 = vadd.f32 0.0, %v431
      %v433 = vpop.f32.mrb[0].mxu0
      %434 = vmatprep.mubr.bf16.mxu0 0
      %435 = vmatmul.mubr.bf16.gmra.mrb[0].mxu0 %v301
      %v436 = vpop.f32.mrb[0].mxu0
      %v437 = vadd.f32 0.0, %v436
      %v438 = vpop.f32.mrb[0].mxu0
      %v439 = vpop.f32.mrb[0].mxu0
      %v440 = vadd.f32 0.0, %v439
      %v441 = vpop.f32.mrb[0].mxu0
      %442 = vmatprep.mubr.bf16.mxu0 0
      %443 = vmatmul.mubr.bf16.gmra.mrb[0].mxu0 %v302
      %v444 = vpop.f32.mrb[0].mxu0
      %v445 = vadd.f32 0.0, %v444
      %v446 = vpop.f32.mrb[0].mxu0
      %v447 = vpop.f32.mrb[0].mxu0
      %v448 = vadd.f32 0.0, %v447
      %v449 = vpop.f32.mrb[0].mxu0
      %450 = vmatprep.mubr.bf16.mxu0 0
      %451 = vmatmul.mubr.bf16.gmra.mrb[0].mxu0 %v303
      %v452 = vpop.f32.mrb[0].mxu0
      %v453 = vadd.f32 0.0, %v452
      %v454 = vpop.f32.mrb[0].mxu0
      %v455 = vpop.f32.mrb[0].mxu0
      %v456 = vadd.f32 0.0, %v455
      %v457 = vpop.f32.mrb[0].mxu0
      %458 = vmatprep.mubr.bf16.mxu0 0
      %459 = vmatmul.mubr.bf16.gmra.mrb[0].mxu0 %v304
      %v460 = vpop.f32.mrb[0].mxu0
      %v461 = vadd.f32 0.0, %v460
      %v462 = vpop.f32.mrb[0].mxu0
      %v463 = vpop.f32.mrb[0].mxu0
      %v464 = vadd.f32 0.0, %v463
      %v465 = vpop.f32.mrb[0].mxu0
      %466 = vmatprep.mubr.bf16.mxu0 0
      %467 = vmatmul.mubr.bf16.gmra.mrb[0].mxu0 %v305
      %v468 = vpop.f32.mrb[0].mxu0
      %v469 = vadd.f32 0.0, %v468
      %v470 = vpop.f32.mrb[0].mxu0
      %v471 = vpop.f32.mrb[0].mxu0
      %v472 = vadd.f32 0.0, %v471
      %v473 = vpop.f32.mrb[0].mxu0
      %474 = vmatprep.mubr.bf16.mxu0 0
      %475 = vmatmul.mubr.bf16.gmra.mrb[0].mxu0 %v306
      %v476 = vpop.f32.mrb[0].mxu0
      %v477 = vadd.f32 0.0, %v476
      %v478 = vpop.f32.mrb[0].mxu0
      %v479 = vpop.f32.mrb[0].mxu0
      %v480 = vadd.f32 0.0, %v479
      %v481 = vpop.f32.mrb[0].mxu0
      %482 = vmatprep.mubr.bf16.mxu0 0
      %483 = vmatmul.mubr.bf16.gmra.mrb[0].mxu0 %v307
      %v484 = vpop.f32.mrb[0].mxu0
      %v485 = vadd.f32 0.0, %v484
      %v486 = vpop.f32.mrb[0].mxu0
      %v487 = vpop.f32.mrb[0].mxu0
      %v488 = vadd.f32 0.0, %v487
      %v489 = vpop.f32.mrb[0].mxu0
      %490 = vmatprep.mubr.bf16.mxu0 0
      %491 = vmatmul.mubr.bf16.gmra.mrb[0].mxu0 %v308
      %v492 = vpop.f32.mrb[0].mxu0
      %v493 = vadd.f32 0.0, %v492
      %v494 = vpop.f32.mrb[0].mxu0
      %v495 = vpop.f32.mrb[0].mxu0
      %v496 = vadd.f32 0.0, %v495
      %v497 = vpop.f32.mrb[0].mxu0
      %498 = vmatprep.mubr.bf16.mxu0 0
      %499 = vmatmul.mubr.bf16.gmra.mrb[0].mxu0 %v309
      %v500 = vpop.f32.mrb[0].mxu0
      %v501 = vadd.f32 0.0, %v500
      %v502 = vpop.f32.mrb[0].mxu0
      %v503 = vpop.f32.mrb[0].mxu0
      %v504 = vadd.f32 0.0, %v503
      %v505 = vpop.f32.mrb[0].mxu0
      %506 = vmatprep.mubr.bf16.mxu0 0
      %507 = vmatmul.mubr.bf16.gmra.mrb[0].mxu0 %v310
      %v508 = vpop.f32.mrb[0].mxu0
      %v509 = vadd.f32 0.0, %v508
      %v510 = vpop.f32.mrb[0].mxu0
      %v511 = vpop.f32.mrb[0].mxu0
      %v512 = vadd.f32 0.0, %v511
      %v513 = vpop.f32.mrb[0].mxu0
      %514 = vmatprep.mubr.bf16.mxu0 0
      %515 = vmatmul.mubr.bf16.gmra.mrb[0].mxu0 %v311
      %v516 = vpop.f32.mrb[0].mxu0
      %v517 = vadd.f32 0.0, %v516
      %v518 = vpop.f32.mrb[0].mxu0
      %v519 = vpop.f32.mrb[0].mxu0
      %v520 = vadd.f32 0.0, %v519
      %v521 = vpop.f32.mrb[0].mxu0
      %522 = vmatprep.mubr.bf16.mxu0 0
      %523 = vmatmul.mubr.bf16.gmra.mrb[0].mxu0 %v312
      %v524 = vpop.f32.mrb[0].mxu0
      %v525 = vadd.f32 0.0, %v524
      %v526 = vpop.f32.mrb[0].mxu0
      %v527 = vpop.f32.mrb[0].mxu0
      %v528 = vadd.f32 0.0, %v527
      %v529 = vpop.f32.mrb[0].mxu0
      %530 = vmatprep.mubr.bf16.mxu0 0
      %531 = vmatmul.mubr.bf16.gmra.mrb[0].mxu0 %v313
      %v532 = vpop.f32.mrb[0].mxu0
      %v533 = vadd.f32 0.0, %v532
      %v534 = vpop.f32.mrb[0].mxu0
      %v535 = vpop.f32.mrb[0].mxu0
      %v536 = vadd.f32 0.0, %v535
      %v537 = vpop.f32.mrb[0].mxu0
      %538 = vdwg.mxu0
      %539 = vst [vmem:[%s179] sm:$0xff] %v413
      %540 = vst [vmem:[%s179 + $0x8] sm:$0xff] %v416
      %541 = vst [vmem:[%s179 + $0x10] sm:$0xff] %v421
      %542 = vst [vmem:[%s179 + $0x18] sm:$0xff] %v424
      %543 = vst [vmem:[%s179 + $0x20] sm:$0xff] %v429
      %544 = vst [vmem:[%s179 + $0x28] sm:$0xff] %v432
      %545 = vst [vmem:[%s179 + $0x30] sm:$0xff] %v437
      %546 = vst [vmem:[%s179 + $0x38] sm:$0xff] %v440
      %547 = vst [vmem:[%s179 + $0x40] sm:$0xff] %v445
      %548 = vst [vmem:[%s179 + $0x48] sm:$0xff] %v448
      %549 = vst [vmem:[%s179 + $0x50] sm:$0xff] %v453
      %550 = vst [vmem:[%s179 + $0x58] sm:$0xff] %v456
      %551 = vst [vmem:[%s179 + $0x60] sm:$0xff] %v461
      %552 = vst [vmem:[%s179 + $0x68] sm:$0xff] %v464
      %553 = vst [vmem:[%s179 + $0x70] sm:$0xff] %v469
      %554 = vst [vmem:[%s179 + $0x78] sm:$0xff] %v472
      %555 = vst [vmem:[%s179 + $0x80] sm:$0xff] %v477
      %556 = vst [vmem:[%s179 + $0x88] sm:$0xff] %v480
      %557 = vst [vmem:[%s179 + $0x90] sm:$0xff] %v485
      %558 = vst [vmem:[%s179 + $0x98] sm:$0xff] %v488
      %559 = vst [vmem:[%s179 + $0xa0] sm:$0xff] %v493
      %560 = vst [vmem:[%s179 + $0xa8] sm:$0xff] %v496
      %561 = vst [vmem:[%s179 + $0xb0] sm:$0xff] %v501
      %562 = vst [vmem:[%s179 + $0xb8] sm:$0xff] %v504
      %563 = vst [vmem:[%s179 + $0xc0] sm:$0xff] %v509
      %564 = vst [vmem:[%s179 + $0xc8] sm:$0xff] %v512
      %565 = vst [vmem:[%s179 + $0xd0] sm:$0xff] %v517
      %566 = vst [vmem:[%s179 + $0xd8] sm:$0xff] %v520
      %567 = vst [vmem:[%s179 + $0xe0] sm:$0xff] %v525
      %568 = vst [vmem:[%s179 + $0xe8] sm:$0xff] %v528
      %569 = vst [vmem:[%s179 + $0xf0] sm:$0xff] %v533
      %570 = vst [vmem:[%s179 + $0xf8] sm:$0xff] %v536
      %v571 = vadd.f32 %v413, %v416
      %v572 = vadd.f32 %v571, %v421
      %v573 = vadd.f32 %v572, %v424
      %v574 = vadd.f32 %v573, %v429
      %v575 = vadd.f32 %v574, %v432
      %v576 = vadd.f32 %v575, %v437
      %v577 = vadd.f32 %v576, %v440
      %v578 = vadd.f32 %v577, %v445
      %v579 = vadd.f32 %v578, %v448
      %v580 = vadd.f32 %v579, %v453
      %v581 = vadd.f32 %v580, %v456
      %v582 = vadd.f32 %v581, %v461
      %v583 = vadd.f32 %v582, %v464
      %v584 = vadd.f32 %v583, %v469
      %v585 = vadd.f32 %v584, %v472
      %v586 = vadd.f32 %v585, %v477
      %v587 = vadd.f32 %v586, %v480
      %v588 = vadd.f32 %v587, %v485
      %v589 = vadd.f32 %v588, %v488
      %v590 = vadd.f32 %v589, %v493
      %v591 = vadd.f32 %v590, %v496
      %v592 = vadd.f32 %v591, %v501
      %v593 = vadd.f32 %v592, %v504
      %v594 = vadd.f32 %v593, %v509
      %v595 = vadd.f32 %v594, %v512
      %v596 = vadd.f32 %v595, %v517
      %v597 = vadd.f32 %v596, %v520
      %v598 = vadd.f32 %v597, %v525
      %v599 = vadd.f32 %v598, %v528
      %v600 = vadd.f32 %v599, %v533
      %v601 = vadd.f32 %v600, %v536
      %v602 = vrot.slane %v601, 4
      %v603 = vadd.f32 %v601, %v602
      %v604 = vrot.slane %v603, 2
      %v605 = vadd.f32 %v603, %v604
      %v606 = vrot.slane %v605, 1
      %v607 = vadd.f32 %v605, %v606
      %v608 = vmul.f32 %v413, %v413
      %v609 = vmul.f32 %v416, %v416
      %v610 = vmul.f32 %v421, %v421
      %v611 = vmul.f32 %v424, %v424
      %v612 = vmul.f32 %v429, %v429
      %v613 = vmul.f32 %v432, %v432
      %v614 = vmul.f32 %v437, %v437
      %v615 = vmul.f32 %v440, %v440
      %v616 = vmul.f32 %v445, %v445
      %v617 = vmul.f32 %v448, %v448
      %v618 = vmul.f32 %v453, %v453
      %v619 = vmul.f32 %v456, %v456
      %v620 = vmul.f32 %v461, %v461
      %v621 = vmul.f32 %v464, %v464
      %v622 = vmul.f32 %v469, %v469
      %v623 = vmul.f32 %v472, %v472
      %v624 = vmul.f32 %v477, %v477
      %v625 = vmul.f32 %v480, %v480
      %v626 = vmul.f32 %v485, %v485
      %v627 = vmul.f32 %v488, %v488
      %v628 = vmul.f32 %v493, %v493
      %v629 = vmul.f32 %v496, %v496
      %v630 = vmul.f32 %v501, %v501
      %v631 = vmul.f32 %v504, %v504
      %v632 = vmul.f32 %v509, %v509
      %v633 = vmul.f32 %v512, %v512
      %v634 = vmul.f32 %v517, %v517
      %v635 = vmul.f32 %v520, %v520
      %v636 = vmul.f32 %v525, %v525
      %v637 = vmul.f32 %v528, %v528
      %v638 = vmul.f32 %v533, %v533
      %v639 = vmul.f32 %v536, %v536
      %v640 = vadd.f32 %v608, %v609
      %v641 = vadd.f32 %v640, %v610
      %v642 = vadd.f32 %v641, %v611
      %v643 = vadd.f32 %v642, %v612
      %v644 = vadd.f32 %v643, %v613
      %v645 = vadd.f32 %v644, %v614
      %v646 = vadd.f32 %v645, %v615
      %v647 = vadd.f32 %v646, %v616
      %v648 = vadd.f32 %v647, %v617
      %v649 = vadd.f32 %v648, %v618
      %v650 = vadd.f32 %v649, %v619
      %v651 = vadd.f32 %v650, %v620
      %v652 = vadd.f32 %v651, %v621
      %v653 = vadd.f32 %v652, %v622
      %v654 = vadd.f32 %v653, %v623
      %v655 = vadd.f32 %v654, %v624
      %v656 = vadd.f32 %v655, %v625
      %v657 = vadd.f32 %v656, %v626
      %v658 = vadd.f32 %v657, %v627
      %v659 = vadd.f32 %v658, %v628
      %v660 = vadd.f32 %v659, %v629
      %v661 = vadd.f32 %v660, %v630
      %v662 = vadd.f32 %v661, %v631
      %v663 = vadd.f32 %v662, %v632
      %v664 = vadd.f32 %v663, %v633
      %v665 = vadd.f32 %v664, %v634
      %v666 = vadd.f32 %v665, %v635
      %v667 = vadd.f32 %v666, %v636
      %v668 = vadd.f32 %v667, %v637
      %v669 = vadd.f32 %v668, %v638
      %v670 = vadd.f32 %v669, %v639
      %v671 = vrot.slane %v670, 4
      %v672 = vadd.f32 %v670, %v671
      %v673 = vrot.slane %v672, 2
      %v674 = vadd.f32 %v672, %v673
      %v675 = vrot.slane %v674, 1
      %v676 = vadd.f32 %v674, %v675
      %vm677 = vcmask 1040384
      %v678 = vsel %vm677, %v607, %v676
      %vm679 = vcmask 1041408
      %v680 = vsel %vm679, %v678, 0.0
      %681 = vst [vmem:[%s184] sm:$0xff] %v680
      %s682 = smul.u32 32, %s15
      %p683 = scmp.lt.s32.totalorder %s682, 63
      %s684 = scalar_select %p683, %s682, 63
      %s685 = smul.addr %s684, 8
      %s686 = scalar_lea.vmem %s2, %s685
      %p687 = scmp.lt.s32.totalorder %s15, 1
      %s688 = scalar_select %p687, %s15, 1
      %s689 = smul.addr %s688, 8
      %s690 = scalar_lea.vmem %s3, %s689
      // Predicated region
      $region29: #{residual_layer_forward.4} parent=27 // pred_check
        %p691 = pneg %p80
      $region30: #{residual_layer_forward.4} parent=27 // pred_check_branch
        %693 = sbr.rel (%p691) target = $region32
      $region31: #{residual_layer_forward.4} parent=27 // pred_region
        %s694 = smul.u32 32, %s15
      $region32: #{residual_layer_forward.4} parent=27 // pred_fallthru
        _
      // Predicated region
      $region33: #{residual_layer_forward.4} parent=27 // pred_check
        %p695 = pneg %p106
      $region34: #{residual_layer_forward.4} parent=27 // pred_check_branch
        %697 = sbr.rel (%p695) target = $region36
      $region35: #{residual_layer_forward.4} parent=27 // pred_region
        _
      $region36: #{residual_layer_forward.4} parent=27 // pred_fallthru
        _
    $region28: #{residual_layer_forward.4} parent=5 // pred_fallthru
      _
    %p698 = scmp.le.s32.totalorder 2, %s10
    // Predicated region
    $region37: #{residual_layer_forward.4} parent=5 // pred_check
      %p699 = pneg %p698
    $region38: #{residual_layer_forward.4} parent=5 // pred_check_branch
      %701 = sbr.rel (%p699) target = $region40
    $region39: #{residual_layer_forward.4} parent=5 // pred_region
      %s702 = ssub.s32 %s10, 2
      // Predicated region
      $region41: #{residual_layer_forward.4} parent=39 // pred_check
        %p703 = pneg %p86
      $region42: #{residual_layer_forward.4} parent=39 // pred_check_branch
        %705 = sbr.rel (%p703) target = $region44
      $region43: #{residual_layer_forward.4} parent=39 // pred_region
        %s706 = smul.u32 32, %s16
        %p707 = scmp.lt.s32.totalorder %s706, 63
        %s708 = scalar_select %p707, %s706, 63
        %s709 = smul.addr %s708, 8
        %s710 = scalar_lea.vmem %s2, %s709
      $region44: #{residual_layer_forward.4} parent=39 // pred_fallthru
        _
      // Predicated region
      $region45: #{residual_layer_forward.4} parent=39 // pred_check
        %p711 = pneg %p112
      $region46: #{residual_layer_forward.4} parent=39 // pred_check_branch
        %713 = sbr.rel (%p711) target = $region48
      $region47: #{residual_layer_forward.4} parent=39 // pred_region
        %p714 = scmp.lt.s32.totalorder %s16, 1
        %s715 = scalar_select %p714, %s16, 1
        %s716 = smul.addr %s715, 8
        %s717 = scalar_lea.vmem %s3, %s716
      $region48: #{residual_layer_forward.4} parent=39 // pred_fallthru
        _
    $region40: #{residual_layer_forward.4} parent=5 // pred_fallthru
      _
  $region6: #{residual_layer_forward.4} parent=0 // loop_footer
    %s14 = sadd.s32 1, %s10
  $region7: #{residual_layer_forward.4} parent=0 // loop_footer_branch
    %9 = sbr.rel target = $region3
  $region8: #{residual_layer_forward.4} parent=0 // loop_exit
    _

// kernel: residual_layer_forward.5
$region0: #{residual_layer_forward.5}
  #allocation0 [shape = 'u32[]', space=smem, size = 0x4, offset = 0x4, fixed_abs, tag = 'smem constant byte address 0x4 - core index']
  #allocation1 [shape = 'u32[144,128]{1,0:T(1,128)}', space=vmem, size = 0x12000, scoped, tag = 'internal scratch']
  %s0 = inlined_call_operand.vmem [shape: f32[512,128], index: 0, kind: input, shape index: {}]
  %s1 = inlined_call_operand.vmem [shape: f32[1,128], index: 1, kind: input, shape index: {}]
  %s2 = inlined_call_operand.vmem [shape: f32[1,128], index: 2, kind: input, shape index: {}]
  %s3 = inlined_call_operand.vmem [shape: bf16[512,128], index: 3, kind: output, shape index: {}]
  %s4 = sld [smem:[#allocation0]]
  $region45: #{residual_layer_forward.5} parent=0
    _
  %s6 = ssub.s32 1, %s4
  %s7 = scalar_select 0, %s6, %s4
  loop: start=0, step=1, limit=4
  $region2: #{residual_layer_forward.5} parent=0 // loop_pre_header
    _
  $region3: #{residual_layer_forward.5} parent=0 // loop_header
    %s9 = sphi 0, %s13
    %p10 = scmp.ge.s32.totalorder %s9, 4
    %s19 = sphi 0, %s21
    %s22 = sphi 0, %s19
    %s23 = sphi 0, %s22
    %s39 = sphi 0, %s23
    %s43 = sphi 0, %s43
    %s45 = sphi 0, %s43
    %s46 = sphi 0, %s45
    %s60 = sphi 0, %s46
    %s64 = sphi 0, %s64
    %s66 = sphi 0, %s64
    %s67 = sphi 0, %s66
    %s81 = sphi 0, %s67
    %s87 = sphi 0, %s89
    %s90 = sphi 0, %s87
    %s91 = sphi 0, %s90
    %s107 = sphi 0, %s91
  $region4: #{residual_layer_forward.5} parent=0 // loop_header_branch
    %12 = sbr.rel (%p10) target = $region8
  $region5: #{residual_layer_forward.5} parent=0 // loop_body
    %s14 = ssub.s32 %s9, 1
    %s15 = ssub.s32 %s9, 2
    %s16 = sadd.s32 %s9, 1
    %s17 = ssub.s32 %s9, %s16
    %p18 = scmp.eq.s32.totalorder %s17, 0
    %s20 = sadd.s32 %s19, 1
    %s21 = scalar_select %p18, %s19, %s20
    %p24 = pneg %p18
    %p25 = scmp.eq.s32.totalorder %s9, 1
    %p26 = por %p24, %p25
    %p27 = scmp.ne.s32.totalorder %s19, %s22
    %p28 = scmp.eq.s32.totalorder %s9, 0
    %p29 = por %p27, %p28
    %p30 = scmp.ne.s32.totalorder %s19, %s22
    %p31 = scmp.eq.s32.totalorder %s14, 1
    %p32 = por %p30, %p31
    %p33 = scmp.ne.s32.totalorder %s22, %s23
    %p34 = scmp.eq.s32.totalorder %s14, 0
    %p35 = por %p33, %p34
    %p36 = scmp.ne.s32.totalorder %s22, %s23
    %p37 = scmp.eq.s32.totalorder %s15, 1
    %p38 = por %p36, %p37
    %p40 = scmp.ne.s32.totalorder %s23, %s39
    %p41 = scmp.eq.s32.totalorder %s15, 0
    %p42 = por %p40, %p41
    %s44 = sadd.s32 %s43, 1
    %p47 = scmp.eq.s32.totalorder %s9, 1
    %p48 = scmp.ne.s32.totalorder %s43, %s45
    %p49 = scmp.eq.s32.totalorder %s9, 0
    %p50 = por %p48, %p49
    %p51 = scmp.ne.s32.totalorder %s43, %s45
    %p52 = scmp.eq.s32.totalorder %s14, 1
    %p53 = por %p51, %p52
    %p54 = scmp.ne.s32.totalorder %s45, %s46
    %p55 = scmp.eq.s32.totalorder %s14, 0
    %p56 = por %p54, %p55
    %p57 = scmp.ne.s32.totalorder %s45, %s46
    %p58 = scmp.eq.s32.totalorder %s15, 1
    %p59 = por %p57, %p58
    %p61 = scmp.ne.s32.totalorder %s46, %s60
    %p62 = scmp.eq.s32.totalorder %s15, 0
    %p63 = por %p61, %p62
    %s65 = sadd.s32 %s64, 1
    %p68 = scmp.eq.s32.totalorder %s9, 1
    %p69 = scmp.ne.s32.totalorder %s64, %s66
    %p70 = scmp.eq.s32.totalorder %s9, 0
    %p71 = por %p69, %p70
    %p72 = scmp.ne.s32.totalorder %s64, %s66
    %p73 = scmp.eq.s32.totalorder %s14, 1
    %p74 = por %p72, %p73
    %p75 = scmp.ne.s32.totalorder %s66, %s67
    %p76 = scmp.eq.s32.totalorder %s14, 0
    %p77 = por %p75, %p76
    %p78 = scmp.ne.s32.totalorder %s66, %s67
    %p79 = scmp.eq.s32.totalorder %s15, 1
    %p80 = por %p78, %p79
    %p82 = scmp.ne.s32.totalorder %s67, %s81
    %p83 = scmp.eq.s32.totalorder %s15, 0
    %p84 = por %p82, %p83
    %s85 = ssub.s32 %s9, %s16
    %p86 = scmp.eq.s32.totalorder %s85, 0
    %s88 = sadd.s32 %s87, 1
    %s89 = scalar_select %p86, %s87, %s88
    %p92 = pneg %p86
    %p93 = scmp.eq.s32.totalorder %s9, 1
    %p94 = por %p92, %p93
    %p95 = scmp.ne.s32.totalorder %s87, %s90
    %p96 = scmp.eq.s32.totalorder %s9, 0
    %p97 = por %p95, %p96
    %p98 = scmp.ne.s32.totalorder %s87, %s90
    %p99 = scmp.eq.s32.totalorder %s14, 1
    %p100 = por %p98, %p99
    %p101 = scmp.ne.s32.totalorder %s90, %s91
    %p102 = scmp.eq.s32.totalorder %s14, 0
    %p103 = por %p101, %p102
    %p104 = scmp.ne.s32.totalorder %s90, %s91
    %p105 = scmp.eq.s32.totalorder %s15, 1
    %p106 = por %p104, %p105
    %p108 = scmp.ne.s32.totalorder %s91, %s107
    %p109 = scmp.eq.s32.totalorder %s15, 0
    %p110 = por %p108, %p109
    %p111 = scmp.le.s32.totalorder 1, %s9
    %p112 = scmp.lt.s32.totalorder %s9, 3
    %p113 = pnand %p111, %p112
    %p114 = pneg %p113
    // Predicated region
    $region9: #{residual_layer_forward.5} parent=5 // pred_check
      _
    $region10: #{residual_layer_forward.5} parent=5 // pred_check_branch
      %116 = sbr.rel (%p113) target = $region12
    $region11: #{residual_layer_forward.5} parent=5 // pred_region
      %s117 = ssub.s32 %s9, 1
      // Predicated region
      $region13: #{residual_layer_forward.5} parent=11 // pred_check
        %p118 = pneg %p56
      $region14: #{residual_layer_forward.5} parent=11 // pred_check_branch
        %120 = sbr.rel (%p118) target = $region16
      $region15: #{residual_layer_forward.5} parent=11 // pred_region
        _
      $region16: #{residual_layer_forward.5} parent=11 // pred_fallthru
        _
      // Predicated region
      $region17: #{residual_layer_forward.5} parent=11 // pred_check
        %p121 = pneg %p77
      $region18: #{residual_layer_forward.5} parent=11 // pred_check_branch
        %123 = sbr.rel (%p121) target = $region20
      $region19: #{residual_layer_forward.5} parent=11 // pred_region
        _
      $region20: #{residual_layer_forward.5} parent=11 // pred_fallthru
        _
    $region12: #{residual_layer_forward.5} parent=5 // pred_fallthru
      _
    %p124 = scmp.lt.s32.totalorder %s9, 2
    // Predicated region
    $region21: #{residual_layer_forward.5} parent=5 // pred_check
      %p125 = pneg %p124
    $region22: #{residual_layer_forward.5} parent=5 // pred_check_branch
      %127 = sbr.rel (%p125) target = $region24
    $region23: #{residual_layer_forward.5} parent=5 // pred_region
      // Predicated region
      $region25: #{residual_layer_forward.5} parent=23 // pred_check
        %p128 = pneg %p29
      $region26: #{residual_layer_forward.5} parent=23 // pred_check_branch
        %130 = sbr.rel (%p128) target = $region28
      $region27: #{residual_layer_forward.5} parent=23 // pred_region
        %s131 = smul.u32 32, %s9
        %p132 = scmp.lt.s32.totalorder %s131, 63
        %s133 = scalar_select %p132, %s131, 63
        %s134 = smul.addr %s133, 8
        %s135 = scalar_lea.vmem %s0, %s134
        %s136 = smul.u32 32, %s9
      $region28: #{residual_layer_forward.5} parent=23 // pred_fallthru
        _
    $region24: #{residual_layer_forward.5} parent=5 // pred_fallthru
      _
    %p137 = scmp.le.s32.totalorder 1, %s9
    %p138 = scmp.lt.s32.totalorder %s9, 3
    %p139 = pnand %p137, %p138
    %p140 = pneg %p139
    // Predicated region
    $region29: #{residual_layer_forward.5} parent=5 // pred_check
      _
    $region30: #{residual_layer_forward.5} parent=5 // pred_check_branch
      %142 = sbr.rel (%p139) target = $region32
    $region31: #{residual_layer_forward.5} parent=5 // pred_region
      %s143 = ssub.s32 %s9, 1
      %s144 = smul.u32 32, %s14
      %p145 = scmp.lt.s32.totalorder %s144, 63
      %s146 = scalar_select %p145, %s144, 63
      %s147 = smul.addr %s146, 8
      %s148 = scalar_lea.vmem %s0, %s147
      %p149 = pneg %p35
      %p150 = pneg %p32
      %p151 = pneg %p56
      %p152 = pneg %p53
      %p153 = pneg %p77
      %p154 = pneg %p74
      %p155 = pneg %p103
      %p156 = pneg %p100
      %s157 = smul.u32 32, %s14
      %p158 = scmp.lt.s32.totalorder %s157, 63
      %s159 = scalar_select %p158, %s157, 63
      %s160 = smul.addr %s159, 4
      %s161 = scalar_lea.vmem %s3, %s160
      %s162 = smul.u32 32, %s14
      %p163 = scmp.lt.s32.totalorder %s162, 63
      %s164 = scalar_select %p163, %s162, 63
      %s165 = smul.addr %s164, 8
      %s166 = scalar_lea.vmem %s0, %s165
      %s167 = smul.u32 32, %s14
      %s168 = smul.u32 32, %s14
      %p169 = scmp.lt.s32.totalorder %s168, 63
      %s170 = scalar_select %p169, %s168, 63
      %s171 = smul.addr %s170, 4
      %s172 = scalar_lea.vmem %s3, %s171
      %s173 = smul.u32 32, %s14
      %v174 = vld [vmem:[%s166] sm:$0xff]
      %v175 = vld [vmem:[%s166 + $0x8] sm:$0xff]
      %v176 = vld [vmem:[%s166 + $0x10] sm:$0xff]
      %v177 = vld [vmem:[%s166 + $0x18] sm:$0xff]
      %v178 = vld [vmem:[%s166 + $0x20] sm:$0xff]
      %v179 = vld [vmem:[%s166 + $0x28] sm:$0xff]
      %v180 = vld [vmem:[%s166 + $0x30] sm:$0xff]
      %v181 = vld [vmem:[%s166 + $0x38] sm:$0xff]
      %v182 = vld [vmem:[%s166 + $0x40] sm:$0xff]
      %v183 = vld [vmem:[%s166 + $0x48] sm:$0xff]
      %v184 = vld [vmem:[%s166 + $0x50] sm:$0xff]
      %v185 = vld [vmem:[%s166 + $0x58] sm:$0xff]
      %v186 = vld [vmem:[%s166 + $0x60] sm:$0xff]
      %v187 = vld [vmem:[%s166 + $0x68] sm:$0xff]
      %v188 = vld [vmem:[%s166 + $0x70] sm:$0xff]
      %v189 = vld [vmem:[%s166 + $0x78] sm:$0xff]
      %v190 = vld [vmem:[%s166 + $0x80] sm:$0xff]
      %v191 = vld [vmem:[%s166 + $0x88] sm:$0xff]
      %v192 = vld [vmem:[%s166 + $0x90] sm:$0xff]
      %v193 = vld [vmem:[%s166 + $0x98] sm:$0xff]
      %v194 = vld [vmem:[%s166 + $0xa0] sm:$0xff]
      %v195 = vld [vmem:[%s166 + $0xa8] sm:$0xff]
      %v196 = vld [vmem:[%s166 + $0xb0] sm:$0xff]
      %v197 = vld [vmem:[%s166 + $0xb8] sm:$0xff]
      %v198 = vld [vmem:[%s166 + $0xc0] sm:$0xff]
      %v199 = vld [vmem:[%s166 + $0xc8] sm:$0xff]
      %v200 = vld [vmem:[%s166 + $0xd0] sm:$0xff]
      %v201 = vld [vmem:[%s166 + $0xd8] sm:$0xff]
      %v202 = vld [vmem:[%s166 + $0xe0] sm:$0xff]
      %v203 = vld [vmem:[%s166 + $0xe8] sm:$0xff]
      %v204 = vld [vmem:[%s166 + $0xf0] sm:$0xff]
      %v205 = vld [vmem:[%s166 + $0xf8] sm:$0xff]
      %v206 = vld [vmem:[%s1] sm:$0x1]
      %v208 = vlaneseq
      %v209 = vshrl.u32 %v208, 7
      %v210 = vsub.s32 0, %v209
      %v211 = vrot.slane %v206, %v210
      %v213 = vmul.f32 %v174, %v211
      %v214 = vmul.f32 %v175, %v211
      %v215 = vmul.f32 %v176, %v211
      %v216 = vmul.f32 %v177, %v211
      %v217 = vmul.f32 %v178, %v211
      %v218 = vmul.f32 %v179, %v211
      %v219 = vmul.f32 %v180, %v211
      %v220 = vmul.f32 %v181, %v211
      %v221 = vmul.f32 %v182, %v211
      %v222 = vmul.f32 %v183, %v211
      %v223 = vmul.f32 %v184, %v211
      %v224 = vmul.f32 %v185, %v211
      %v225 = vmul.f32 %v186, %v211
      %v226 = vmul.f32 %v187, %v211
      %v227 = vmul.f32 %v188, %v211
      %v228 = vmul.f32 %v189, %v211
      %v229 = vmul.f32 %v190, %v211
      %v230 = vmul.f32 %v191, %v211
      %v231 = vmul.f32 %v192, %v211
      %v232 = vmul.f32 %v193, %v211
      %v233 = vmul.f32 %v194, %v211
      %v234 = vmul.f32 %v195, %v211
      %v235 = vmul.f32 %v196, %v211
      %v236 = vmul.f32 %v197, %v211
      %v237 = vmul.f32 %v198, %v211
      %v238 = vmul.f32 %v199, %v211
      %v239 = vmul.f32 %v200, %v211
      %v240 = vmul.f32 %v201, %v211
      %v241 = vmul.f32 %v202, %v211
      %v242 = vmul.f32 %v203, %v211
      %v243 = vmul.f32 %v204, %v211
      %v244 = vmul.f32 %v205, %v211
      %v245 = vld [vmem:[%s2] sm:$0x1]
      %v247 = vlaneseq
      %v248 = vshrl.u32 %v247, 7
      %v249 = vsub.s32 0, %v248
      %v250 = vrot.slane %v245, %v249
      %v252 = vadd.f32 %v213, %v250
      %v253 = vadd.f32 %v214, %v250
      %v254 = vadd.f32 %v215, %v250
      %v255 = vadd.f32 %v216, %v250
      %v256 = vadd.f32 %v217, %v250
      %v257 = vadd.f32 %v218, %v250
      %v258 = vadd.f32 %v219, %v250
      %v259 = vadd.f32 %v220, %v250
      %v260 = vadd.f32 %v221, %v250
      %v261 = vadd.f32 %v222, %v250
      %v262 = vadd.f32 %v223, %v250
      %v263 = vadd.f32 %v224, %v250
      %v264 = vadd.f32 %v225, %v250
      %v265 = vadd.f32 %v226, %v250
      %v266 = vadd.f32 %v227, %v250
      %v267 = vadd.f32 %v228, %v250
      %v268 = vadd.f32 %v229, %v250
      %v269 = vadd.f32 %v230, %v250
      %v270 = vadd.f32 %v231, %v250
      %v271 = vadd.f32 %v232, %v250
      %v272 = vadd.f32 %v233, %v250
      %v273 = vadd.f32 %v234, %v250
      %v274 = vadd.f32 %v235, %v250
      %v275 = vadd.f32 %v236, %v250
      %v276 = vadd.f32 %v237, %v250
      %v277 = vadd.f32 %v238, %v250
      %v278 = vadd.f32 %v239, %v250
      %v279 = vadd.f32 %v240, %v250
      %v280 = vadd.f32 %v241, %v250
      %v281 = vadd.f32 %v242, %v250
      %v282 = vadd.f32 %v243, %v250
      %v283 = vadd.f32 %v244, %v250
      %vm284 = vcmp.ge.f32.partialorder %v252, 0.0
      %vm285 = vcmp.ge.f32.partialorder %v253, 0.0
      %vm286 = vcmp.ge.f32.partialorder %v254, 0.0
      %vm287 = vcmp.ge.f32.partialorder %v255, 0.0
      %vm288 = vcmp.ge.f32.partialorder %v256, 0.0
      %vm289 = vcmp.ge.f32.partialorder %v257, 0.0
      %vm290 = vcmp.ge.f32.partialorder %v258, 0.0
      %vm291 = vcmp.ge.f32.partialorder %v259, 0.0
      %vm292 = vcmp.ge.f32.partialorder %v260, 0.0
      %vm293 = vcmp.ge.f32.partialorder %v261, 0.0
      %vm294 = vcmp.ge.f32.partialorder %v262, 0.0
      %vm295 = vcmp.ge.f32.partialorder %v263, 0.0
      %vm296 = vcmp.ge.f32.partialorder %v264, 0.0
      %vm297 = vcmp.ge.f32.partialorder %v265, 0.0
      %vm298 = vcmp.ge.f32.partialorder %v266, 0.0
      %vm299 = vcmp.ge.f32.partialorder %v267, 0.0
      %vm300 = vcmp.ge.f32.partialorder %v268, 0.0
      %vm301 = vcmp.ge.f32.partialorder %v269, 0.0
      %vm302 = vcmp.ge.f32.partialorder %v270, 0.0
      %vm303 = vcmp.ge.f32.partialorder %v271, 0.0
      %vm304 = vcmp.ge.f32.partialorder %v272, 0.0
      %vm305 = vcmp.ge.f32.partialorder %v273, 0.0
      %vm306 = vcmp.ge.f32.partialorder %v274, 0.0
      %vm307 = vcmp.ge.f32.partialorder %v275, 0.0
      %vm308 = vcmp.ge.f32.partialorder %v276, 0.0
      %vm309 = vcmp.ge.f32.partialorder %v277, 0.0
      %vm310 = vcmp.ge.f32.partialorder %v278, 0.0
      %vm311 = vcmp.ge.f32.partialorder %v279, 0.0
      %vm312 = vcmp.ge.f32.partialorder %v280, 0.0
      %vm313 = vcmp.ge.f32.partialorder %v281, 0.0
      %vm314 = vcmp.ge.f32.partialorder %v282, 0.0
      %vm315 = vcmp.ge.f32.partialorder %v283, 0.0
      %v316 = vmul.f32 %v252, 0.1
      %v317 = vmul.f32 %v253, 0.1
      %v318 = vmul.f32 %v254, 0.1
      %v319 = vmul.f32 %v255, 0.1
      %v320 = vmul.f32 %v256, 0.1
      %v321 = vmul.f32 %v257, 0.1
      %v322 = vmul.f32 %v258, 0.1
      %v323 = vmul.f32 %v259, 0.1
      %v324 = vmul.f32 %v260, 0.1
      %v325 = vmul.f32 %v261, 0.1
      %v326 = vmul.f32 %v262, 0.1
      %v327 = vmul.f32 %v263, 0.1
      %v328 = vmul.f32 %v264, 0.1
      %v329 = vmul.f32 %v265, 0.1
      %v330 = vmul.f32 %v266, 0.1
      %v331 = vmul.f32 %v267, 0.1
      %v332 = vmul.f32 %v268, 0.1
      %v333 = vmul.f32 %v269, 0.1
      %v334 = vmul.f32 %v270, 0.1
      %v335 = vmul.f32 %v271, 0.1
      %v336 = vmul.f32 %v272, 0.1
      %v337 = vmul.f32 %v273, 0.1
      %v338 = vmul.f32 %v274, 0.1
      %v339 = vmul.f32 %v275, 0.1
      %v340 = vmul.f32 %v276, 0.1
      %v341 = vmul.f32 %v277, 0.1
      %v342 = vmul.f32 %v278, 0.1
      %v343 = vmul.f32 %v279, 0.1
      %v344 = vmul.f32 %v280, 0.1
      %v345 = vmul.f32 %v281, 0.1
      %v346 = vmul.f32 %v282, 0.1
      %v347 = vmul.f32 %v283, 0.1
      %v348 = vsel %vm284, %v252, %v316
      %v349 = vsel %vm285, %v253, %v317
      %v350 = vsel %vm286, %v254, %v318
      %v351 = vsel %vm287, %v255, %v319
      %v352 = vsel %vm288, %v256, %v320
      %v353 = vsel %vm289, %v257, %v321
      %v354 = vsel %vm290, %v258, %v322
      %v355 = vsel %vm291, %v259, %v323
      %v356 = vsel %vm292, %v260, %v324
      %v357 = vsel %vm293, %v261, %v325
      %v358 = vsel %vm294, %v262, %v326
      %v359 = vsel %vm295, %v263, %v327
      %v360 = vsel %vm296, %v264, %v328
      %v361 = vsel %vm297, %v265, %v329
      %v362 = vsel %vm298, %v266, %v330
      %v363 = vsel %vm299, %v267, %v331
      %v364 = vsel %vm300, %v268, %v332
      %v365 = vsel %vm301, %v269, %v333
      %v366 = vsel %vm302, %v270, %v334
      %v367 = vsel %vm303, %v271, %v335
      %v368 = vsel %vm304, %v272, %v336
      %v369 = vsel %vm305, %v273, %v337
      %v370 = vsel %vm306, %v274, %v338
      %v371 = vsel %vm307, %v275, %v339
      %v372 = vsel %vm308, %v276, %v340
      %v373 = vsel %vm309, %v277, %v341
      %v374 = vsel %vm310, %v278, %v342
      %v375 = vsel %vm311, %v279, %v343
      %v376 = vsel %vm312, %v280, %v344
      %v377 = vsel %vm313, %v281, %v345
      %v378 = vsel %vm314, %v282, %v346
      %v379 = vsel %vm315, %v283, %v347
      %v380 = vpack.c.bf16 %v349, %v348
      %v381 = vpack.c.bf16 %v351, %v350
      %v382 = vpack.c.bf16 %v353, %v352
      %v383 = vpack.c.bf16 %v355, %v354
      %v384 = vpack.c.bf16 %v357, %v356
      %v385 = vpack.c.bf16 %v359, %v358
      %v386 = vpack.c.bf16 %v361, %v360
      %v387 = vpack.c.bf16 %v363, %v362
      %v388 = vpack.c.bf16 %v365, %v364
      %v389 = vpack.c.bf16 %v367, %v366
      %v390 = vpack.c.bf16 %v369, %v368
      %v391 = vpack.c.bf16 %v371, %v370
      %v392 = vpack.c.bf16 %v373, %v372
      %v393 = vpack.c.bf16 %v375, %v374
      %v394 = vpack.c.bf16 %v377, %v376
      %v395 = vpack.c.bf16 %v379, %v378
      %v412 = vunpack.c.l.b16 %v380
      %v413 = vunpack.c.h.b16 %v380
      %v414 = vunpack.c.l.b16 %v381
      %v415 = vunpack.c.h.b16 %v381
      %v416 = vunpack.c.l.b16 %v382
      %v417 = vunpack.c.h.b16 %v382
      %v418 = vunpack.c.l.b16 %v383
      %v419 = vunpack.c.h.b16 %v383
      %v420 = vunpack.c.l.b16 %v384
      %v421 = vunpack.c.h.b16 %v384
      %v422 = vunpack.c.l.b16 %v385
      %v423 = vunpack.c.h.b16 %v385
      %v424 = vunpack.c.l.b16 %v386
      %v425 = vunpack.c.h.b16 %v386
      %v426 = vunpack.c.l.b16 %v387
      %v427 = vunpack.c.h.b16 %v387
      %v428 = vunpack.c.l.b16 %v388
      %v429 = vunpack.c.h.b16 %v388
      %v430 = vunpack.c.l.b16 %v389
      %v431 = vunpack.c.h.b16 %v389
      %v432 = vunpack.c.l.b16 %v390
      %v433 = vunpack.c.h.b16 %v390
      %v434 = vunpack.c.l.b16 %v391
      %v435 = vunpack.c.h.b16 %v391
      %v436 = vunpack.c.l.b16 %v392
      %v437 = vunpack.c.h.b16 %v392
      %v438 = vunpack.c.l.b16 %v393
      %v439 = vunpack.c.h.b16 %v393
      %v440 = vunpack.c.l.b16 %v394
      %v441 = vunpack.c.h.b16 %v394
      %v442 = vunpack.c.l.b16 %v395
      %v443 = vunpack.c.h.b16 %v395
      %v444 = vpack.c.b16 %v412, %v412
      %v445 = vpack.c.b16 %v413, %v413
      %v446 = vpack.c.b16 %v414, %v414
      %v447 = vpack.c.b16 %v415, %v415
      %v448 = vpack.c.b16 %v416, %v416
      %v449 = vpack.c.b16 %v417, %v417
      %v450 = vpack.c.b16 %v418, %v418
      %v451 = vpack.c.b16 %v419, %v419
      %v452 = vpack.c.b16 %v420, %v420
      %v453 = vpack.c.b16 %v421, %v421
      %v454 = vpack.c.b16 %v422, %v422
      %v455 = vpack.c.b16 %v423, %v423
      %v456 = vpack.c.b16 %v424, %v424
      %v457 = vpack.c.b16 %v425, %v425
      %v458 = vpack.c.b16 %v426, %v426
      %v459 = vpack.c.b16 %v427, %v427
      %v460 = vpack.c.b16 %v428, %v428
      %v461 = vpack.c.b16 %v429, %v429
      %v462 = vpack.c.b16 %v430, %v430
      %v463 = vpack.c.b16 %v431, %v431
      %v464 = vpack.c.b16 %v432, %v432
      %v465 = vpack.c.b16 %v433, %v433
      %v466 = vpack.c.b16 %v434, %v434
      %v467 = vpack.c.b16 %v435, %v435
      %v468 = vpack.c.b16 %v436, %v436
      %v469 = vpack.c.b16 %v437, %v437
      %v470 = vpack.c.b16 %v438, %v438
      %v471 = vpack.c.b16 %v439, %v439
      %v472 = vpack.c.b16 %v440, %v440
      %v473 = vpack.c.b16 %v441, %v441
      %v474 = vpack.c.b16 %v442, %v442
      %v475 = vpack.c.b16 %v443, %v443
      %508 = vst [vmem:[%s172] sm:$0xf] %v444
      %509 = vst [vmem:[%s172 + $0x4] sm:$0xf] %v445
      %510 = vst [vmem:[%s172 + $0x8] sm:$0xf] %v446
      %511 = vst [vmem:[%s172 + $0xc] sm:$0xf] %v447
      %512 = vst [vmem:[%s172 + $0x10] sm:$0xf] %v448
      %513 = vst [vmem:[%s172 + $0x14] sm:$0xf] %v449
      %514 = vst [vmem:[%s172 + $0x18] sm:$0xf] %v450
      %515 = vst [vmem:[%s172 + $0x1c] sm:$0xf] %v451
      %516 = vst [vmem:[%s172 + $0x20] sm:$0xf] %v452
      %517 = vst [vmem:[%s172 + $0x24] sm:$0xf] %v453
      %518 = vst [vmem:[%s172 + $0x28] sm:$0xf] %v454
      %519 = vst [vmem:[%s172 + $0x2c] sm:$0xf] %v455
      %520 = vst [vmem:[%s172 + $0x30] sm:$0xf] %v456
      %521 = vst [vmem:[%s172 + $0x34] sm:$0xf] %v457
      %522 = vst [vmem:[%s172 + $0x38] sm:$0xf] %v458
      %523 = vst [vmem:[%s172 + $0x3c] sm:$0xf] %v459
      %524 = vst [vmem:[%s172 + $0x40] sm:$0xf] %v460
      %525 = vst [vmem:[%s172 + $0x44] sm:$0xf] %v461
      %526 = vst [vmem:[%s172 + $0x48] sm:$0xf] %v462
      %527 = vst [vmem:[%s172 + $0x4c] sm:$0xf] %v463
      %528 = vst [vmem:[%s172 + $0x50] sm:$0xf] %v464
      %529 = vst [vmem:[%s172 + $0x54] sm:$0xf] %v465
      %530 = vst [vmem:[%s172 + $0x58] sm:$0xf] %v466
      %531 = vst [vmem:[%s172 + $0x5c] sm:$0xf] %v467
      %532 = vst [vmem:[%s172 + $0x60] sm:$0xf] %v468
      %533 = vst [vmem:[%s172 + $0x64] sm:$0xf] %v469
      %534 = vst [vmem:[%s172 + $0x68] sm:$0xf] %v470
      %535 = vst [vmem:[%s172 + $0x6c] sm:$0xf] %v471
      %536 = vst [vmem:[%s172 + $0x70] sm:$0xf] %v472
      %537 = vst [vmem:[%s172 + $0x74] sm:$0xf] %v473
      %538 = vst [vmem:[%s172 + $0x78] sm:$0xf] %v474
      %539 = vst [vmem:[%s172 + $0x7c] sm:$0xf] %v475
      %s540 = smul.u32 32, %s14
      %p541 = scmp.lt.s32.totalorder %s540, 63
      %s542 = scalar_select %p541, %s540, 63
      %s543 = smul.addr %s542, 4
      %s544 = scalar_lea.vmem %s3, %s543
      // Predicated region
      $region33: #{residual_layer_forward.5} parent=31 // pred_check
        %p545 = pneg %p100
      $region34: #{residual_layer_forward.5} parent=31 // pred_check_branch
        %547 = sbr.rel (%p545) target = $region36
      $region35: #{residual_layer_forward.5} parent=31 // pred_region
        %s548 = smul.u32 32, %s14
      $region36: #{residual_layer_forward.5} parent=31 // pred_fallthru
        _
    $region32: #{residual_layer_forward.5} parent=5 // pred_fallthru
      _
    %p549 = scmp.le.s32.totalorder 2, %s9
    // Predicated region
    $region37: #{residual_layer_forward.5} parent=5 // pred_check
      %p550 = pneg %p549
    $region38: #{residual_layer_forward.5} parent=5 // pred_check_branch
      %552 = sbr.rel (%p550) target = $region40
    $region39: #{residual_layer_forward.5} parent=5 // pred_region
      %s553 = ssub.s32 %s9, 2
      // Predicated region
      $region41: #{residual_layer_forward.5} parent=39 // pred_check
        %p554 = pneg %p106
      $region42: #{residual_layer_forward.5} parent=39 // pred_check_branch
        %556 = sbr.rel (%p554) target = $region44
      $region43: #{residual_layer_forward.5} parent=39 // pred_region
        %s557 = smul.u32 32, %s15
        %p558 = scmp.lt.s32.totalorder %s557, 63
        %s559 = scalar_select %p558, %s557, 63
        %s560 = smul.addr %s559, 4
        %s561 = scalar_lea.vmem %s3, %s560
      $region44: #{residual_layer_forward.5} parent=39 // pred_fallthru
        _
    $region40: #{residual_layer_forward.5} parent=5 // pred_fallthru
      _
  $region6: #{residual_layer_forward.5} parent=0 // loop_footer
    %s13 = sadd.s32 1, %s9
  $region7: #{residual_layer_forward.5} parent=0 // loop_footer_branch
    %8 = sbr.rel target = $region3
  $region8: #{residual_layer_forward.5} parent=0 // loop_exit
    _

// kernel: residual_layer_forward.7
$region0: #{residual_layer_forward.7}
  #allocation0 [shape = 'u32[]', space=smem, size = 0x4, offset = 0x4, fixed_abs, tag = 'smem constant byte address 0x4 - core index']
  #allocation1 [shape = 'u32[144,128]{1,0:T(1,128)}', space=vmem, size = 0x12000, scoped, tag = 'internal scratch']
  %s0 = inlined_call_operand.vmem [shape: f32[512,128], index: 0, kind: input, shape index: {}]
  %s1 = inlined_call_operand.vmem [shape: f32[1,128], index: 1, kind: input, shape index: {}]
  %s2 = inlined_call_operand.vmem [shape: f32[1,128], index: 2, kind: input, shape index: {}]
  %s3 = inlined_call_operand.vmem [shape: f32[512,128], index: 3, kind: input, shape index: {}]
  %s4 = inlined_call_operand.vmem [shape: f32[512,128], index: 4, kind: output, shape index: {}]
  %s5 = sld [smem:[#allocation0]]
  $region49: #{residual_layer_forward.7} parent=0
    _
  %s7 = ssub.s32 1, %s5
  %s8 = scalar_select 0, %s7, %s5
  loop: start=0, step=1, limit=4
  $region2: #{residual_layer_forward.7} parent=0 // loop_pre_header
    _
  $region3: #{residual_layer_forward.7} parent=0 // loop_header
    %s10 = sphi 0, %s14
    %p11 = scmp.ge.s32.totalorder %s10, 4
    %s20 = sphi 0, %s22
    %s23 = sphi 0, %s20
    %s24 = sphi 0, %s23
    %s40 = sphi 0, %s24
    %s44 = sphi 0, %s44
    %s46 = sphi 0, %s44
    %s47 = sphi 0, %s46
    %s61 = sphi 0, %s47
    %s65 = sphi 0, %s65
    %s67 = sphi 0, %s65
    %s68 = sphi 0, %s67
    %s82 = sphi 0, %s68
    %s88 = sphi 0, %s90
    %s91 = sphi 0, %s88
    %s92 = sphi 0, %s91
    %s108 = sphi 0, %s92
    %s114 = sphi 0, %s116
    %s117 = sphi 0, %s114
    %s118 = sphi 0, %s117
    %s134 = sphi 0, %s118
  $region4: #{residual_layer_forward.7} parent=0 // loop_header_branch
    %13 = sbr.rel (%p11) target = $region8
  $region5: #{residual_layer_forward.7} parent=0 // loop_body
    %s15 = ssub.s32 %s10, 1
    %s16 = ssub.s32 %s10, 2
    %s17 = sadd.s32 %s10, 1
    %s18 = ssub.s32 %s10, %s17
    %p19 = scmp.eq.s32.totalorder %s18, 0
    %s21 = sadd.s32 %s20, 1
    %s22 = scalar_select %p19, %s20, %s21
    %p25 = pneg %p19
    %p26 = scmp.eq.s32.totalorder %s10, 1
    %p27 = por %p25, %p26
    %p28 = scmp.ne.s32.totalorder %s20, %s23
    %p29 = scmp.eq.s32.totalorder %s10, 0
    %p30 = por %p28, %p29
    %p31 = scmp.ne.s32.totalorder %s20, %s23
    %p32 = scmp.eq.s32.totalorder %s15, 1
    %p33 = por %p31, %p32
    %p34 = scmp.ne.s32.totalorder %s23, %s24
    %p35 = scmp.eq.s32.totalorder %s15, 0
    %p36 = por %p34, %p35
    %p37 = scmp.ne.s32.totalorder %s23, %s24
    %p38 = scmp.eq.s32.totalorder %s16, 1
    %p39 = por %p37, %p38
    %p41 = scmp.ne.s32.totalorder %s24, %s40
    %p42 = scmp.eq.s32.totalorder %s16, 0
    %p43 = por %p41, %p42
    %s45 = sadd.s32 %s44, 1
    %p48 = scmp.eq.s32.totalorder %s10, 1
    %p49 = scmp.ne.s32.totalorder %s44, %s46
    %p50 = scmp.eq.s32.totalorder %s10, 0
    %p51 = por %p49, %p50
    %p52 = scmp.ne.s32.totalorder %s44, %s46
    %p53 = scmp.eq.s32.totalorder %s15, 1
    %p54 = por %p52, %p53
    %p55 = scmp.ne.s32.totalorder %s46, %s47
    %p56 = scmp.eq.s32.totalorder %s15, 0
    %p57 = por %p55, %p56
    %p58 = scmp.ne.s32.totalorder %s46, %s47
    %p59 = scmp.eq.s32.totalorder %s16, 1
    %p60 = por %p58, %p59
    %p62 = scmp.ne.s32.totalorder %s47, %s61
    %p63 = scmp.eq.s32.totalorder %s16, 0
    %p64 = por %p62, %p63
    %s66 = sadd.s32 %s65, 1
    %p69 = scmp.eq.s32.totalorder %s10, 1
    %p70 = scmp.ne.s32.totalorder %s65, %s67
    %p71 = scmp.eq.s32.totalorder %s10, 0
    %p72 = por %p70, %p71
    %p73 = scmp.ne.s32.totalorder %s65, %s67
    %p74 = scmp.eq.s32.totalorder %s15, 1
    %p75 = por %p73, %p74
    %p76 = scmp.ne.s32.totalorder %s67, %s68
    %p77 = scmp.eq.s32.totalorder %s15, 0
    %p78 = por %p76, %p77
    %p79 = scmp.ne.s32.totalorder %s67, %s68
    %p80 = scmp.eq.s32.totalorder %s16, 1
    %p81 = por %p79, %p80
    %p83 = scmp.ne.s32.totalorder %s68, %s82
    %p84 = scmp.eq.s32.totalorder %s16, 0
    %p85 = por %p83, %p84
    %s86 = ssub.s32 %s10, %s17
    %p87 = scmp.eq.s32.totalorder %s86, 0
    %s89 = sadd.s32 %s88, 1
    %s90 = scalar_select %p87, %s88, %s89
    %p93 = pneg %p87
    %p94 = scmp.eq.s32.totalorder %s10, 1
    %p95 = por %p93, %p94
    %p96 = scmp.ne.s32.totalorder %s88, %s91
    %p97 = scmp.eq.s32.totalorder %s10, 0
    %p98 = por %p96, %p97
    %p99 = scmp.ne.s32.totalorder %s88, %s91
    %p100 = scmp.eq.s32.totalorder %s15, 1
    %p101 = por %p99, %p100
    %p102 = scmp.ne.s32.totalorder %s91, %s92
    %p103 = scmp.eq.s32.totalorder %s15, 0
    %p104 = por %p102, %p103
    %p105 = scmp.ne.s32.totalorder %s91, %s92
    %p106 = scmp.eq.s32.totalorder %s16, 1
    %p107 = por %p105, %p106
    %p109 = scmp.ne.s32.totalorder %s92, %s108
    %p110 = scmp.eq.s32.totalorder %s16, 0
    %p111 = por %p109, %p110
    %s112 = ssub.s32 %s10, %s17
    %p113 = scmp.eq.s32.totalorder %s112, 0
    %s115 = sadd.s32 %s114, 1
    %s116 = scalar_select %p113, %s114, %s115
    %p119 = pneg %p113
    %p120 = scmp.eq.s32.totalorder %s10, 1
    %p121 = por %p119, %p120
    %p122 = scmp.ne.s32.totalorder %s114, %s117
    %p123 = scmp.eq.s32.totalorder %s10, 0
    %p124 = por %p122, %p123
    %p125 = scmp.ne.s32.totalorder %s114, %s117
    %p126 = scmp.eq.s32.totalorder %s15, 1
    %p127 = por %p125, %p126
    %p128 = scmp.ne.s32.totalorder %s117, %s118
    %p129 = scmp.eq.s32.totalorder %s15, 0
    %p130 = por %p128, %p129
    %p131 = scmp.ne.s32.totalorder %s117, %s118
    %p132 = scmp.eq.s32.totalorder %s16, 1
    %p133 = por %p131, %p132
    %p135 = scmp.ne.s32.totalorder %s118, %s134
    %p136 = scmp.eq.s32.totalorder %s16, 0
    %p137 = por %p135, %p136
    %p138 = scmp.le.s32.totalorder 1, %s10
    %p139 = scmp.lt.s32.totalorder %s10, 3
    %p140 = pnand %p138, %p139
    %p141 = pneg %p140
    // Predicated region
    $region9: #{residual_layer_forward.7} parent=5 // pred_check
      _
    $region10: #{residual_layer_forward.7} parent=5 // pred_check_branch
      %143 = sbr.rel (%p140) target = $region12
    $region11: #{residual_layer_forward.7} parent=5 // pred_region
      %s144 = ssub.s32 %s10, 1
      // Predicated region
      $region13: #{residual_layer_forward.7} parent=11 // pred_check
        %p145 = pneg %p57
      $region14: #{residual_layer_forward.7} parent=11 // pred_check_branch
        %147 = sbr.rel (%p145) target = $region16
      $region15: #{residual_layer_forward.7} parent=11 // pred_region
        _
      $region16: #{residual_layer_forward.7} parent=11 // pred_fallthru
        _
      // Predicated region
      $region17: #{residual_layer_forward.7} parent=11 // pred_check
        %p148 = pneg %p78
      $region18: #{residual_layer_forward.7} parent=11 // pred_check_branch
        %150 = sbr.rel (%p148) target = $region20
      $region19: #{residual_layer_forward.7} parent=11 // pred_region
        _
      $region20: #{residual_layer_forward.7} parent=11 // pred_fallthru
        _
    $region12: #{residual_layer_forward.7} parent=5 // pred_fallthru
      _
    %p151 = scmp.lt.s32.totalorder %s10, 2
    // Predicated region
    $region21: #{residual_layer_forward.7} parent=5 // pred_check
      %p152 = pneg %p151
    $region22: #{residual_layer_forward.7} parent=5 // pred_check_branch
      %154 = sbr.rel (%p152) target = $region24
    $region23: #{residual_layer_forward.7} parent=5 // pred_region
      // Predicated region
      $region25: #{residual_layer_forward.7} parent=23 // pred_check
        %p155 = pneg %p30
      $region26: #{residual_layer_forward.7} parent=23 // pred_check_branch
        %157 = sbr.rel (%p155) target = $region28
      $region27: #{residual_layer_forward.7} parent=23 // pred_region
        %s158 = smul.u32 32, %s10
        %p159 = scmp.lt.s32.totalorder %s158, 63
        %s160 = scalar_select %p159, %s158, 63
        %s161 = smul.addr %s160, 8
        %s162 = scalar_lea.vmem %s0, %s161
        %s163 = smul.u32 32, %s10
      $region28: #{residual_layer_forward.7} parent=23 // pred_fallthru
        _
      // Predicated region
      $region29: #{residual_layer_forward.7} parent=23 // pred_check
        %p164 = pneg %p98
      $region30: #{residual_layer_forward.7} parent=23 // pred_check_branch
        %166 = sbr.rel (%p164) target = $region32
      $region31: #{residual_layer_forward.7} parent=23 // pred_region
        %s167 = smul.u32 32, %s10
        %p168 = scmp.lt.s32.totalorder %s167, 63
        %s169 = scalar_select %p168, %s167, 63
        %s170 = smul.addr %s169, 8
        %s171 = scalar_lea.vmem %s3, %s170
        %s172 = smul.u32 32, %s10
      $region32: #{residual_layer_forward.7} parent=23 // pred_fallthru
        _
    $region24: #{residual_layer_forward.7} parent=5 // pred_fallthru
      _
    %p173 = scmp.le.s32.totalorder 1, %s10
    %p174 = scmp.lt.s32.totalorder %s10, 3
    %p175 = pnand %p173, %p174
    %p176 = pneg %p175
    // Predicated region
    $region33: #{residual_layer_forward.7} parent=5 // pred_check
      _
    $region34: #{residual_layer_forward.7} parent=5 // pred_check_branch
      %178 = sbr.rel (%p175) target = $region36
    $region35: #{residual_layer_forward.7} parent=5 // pred_region
      %s179 = ssub.s32 %s10, 1
      %s180 = smul.u32 32, %s15
      %p181 = scmp.lt.s32.totalorder %s180, 63
      %s182 = scalar_select %p181, %s180, 63
      %s183 = smul.addr %s182, 8
      %s184 = scalar_lea.vmem %s0, %s183
      %p185 = pneg %p36
      %p186 = pneg %p33
      %p187 = pneg %p57
      %p188 = pneg %p54
      %p189 = pneg %p78
      %p190 = pneg %p75
      %s191 = smul.u32 32, %s15
      %p192 = scmp.lt.s32.totalorder %s191, 63
      %s193 = scalar_select %p192, %s191, 63
      %s194 = smul.addr %s193, 8
      %s195 = scalar_lea.vmem %s3, %s194
      %p196 = pneg %p104
      %p197 = pneg %p101
      %p198 = pneg %p130
      %p199 = pneg %p127
      %s200 = smul.u32 32, %s15
      %p201 = scmp.lt.s32.totalorder %s200, 63
      %s202 = scalar_select %p201, %s200, 63
      %s203 = smul.addr %s202, 8
      %s204 = scalar_lea.vmem %s4, %s203
      %s205 = smul.u32 32, %s15
      %p206 = scmp.lt.s32.totalorder %s205, 63
      %s207 = scalar_select %p206, %s205, 63
      %s208 = smul.addr %s207, 8
      %s209 = scalar_lea.vmem %s0, %s208
      %s210 = smul.u32 32, %s15
      %s211 = smul.u32 32, %s15
      %p212 = scmp.lt.s32.totalorder %s211, 63
      %s213 = scalar_select %p212, %s211, 63
      %s214 = smul.addr %s213, 8
      %s215 = scalar_lea.vmem %s3, %s214
      %s216 = smul.u32 32, %s15
      %s217 = smul.u32 32, %s15
      %p218 = scmp.lt.s32.totalorder %s217, 63
      %s219 = scalar_select %p218, %s217, 63
      %s220 = smul.addr %s219, 8
      %s221 = scalar_lea.vmem %s4, %s220
      %s222 = smul.u32 32, %s15
      %v223 = vld [vmem:[%s209] sm:$0xff]
      %v224 = vld [vmem:[%s209 + $0x8] sm:$0xff]
      %v225 = vld [vmem:[%s209 + $0x10] sm:$0xff]
      %v226 = vld [vmem:[%s209 + $0x18] sm:$0xff]
      %v227 = vld [vmem:[%s209 + $0x20] sm:$0xff]
      %v228 = vld [vmem:[%s209 + $0x28] sm:$0xff]
      %v229 = vld [vmem:[%s209 + $0x30] sm:$0xff]
      %v230 = vld [vmem:[%s209 + $0x38] sm:$0xff]
      %v231 = vld [vmem:[%s209 + $0x40] sm:$0xff]
      %v232 = vld [vmem:[%s209 + $0x48] sm:$0xff]
      %v233 = vld [vmem:[%s209 + $0x50] sm:$0xff]
      %v234 = vld [vmem:[%s209 + $0x58] sm:$0xff]
      %v235 = vld [vmem:[%s209 + $0x60] sm:$0xff]
      %v236 = vld [vmem:[%s209 + $0x68] sm:$0xff]
      %v237 = vld [vmem:[%s209 + $0x70] sm:$0xff]
      %v238 = vld [vmem:[%s209 + $0x78] sm:$0xff]
      %v239 = vld [vmem:[%s209 + $0x80] sm:$0xff]
      %v240 = vld [vmem:[%s209 + $0x88] sm:$0xff]
      %v241 = vld [vmem:[%s209 + $0x90] sm:$0xff]
      %v242 = vld [vmem:[%s209 + $0x98] sm:$0xff]
      %v243 = vld [vmem:[%s209 + $0xa0] sm:$0xff]
      %v244 = vld [vmem:[%s209 + $0xa8] sm:$0xff]
      %v245 = vld [vmem:[%s209 + $0xb0] sm:$0xff]
      %v246 = vld [vmem:[%s209 + $0xb8] sm:$0xff]
      %v247 = vld [vmem:[%s209 + $0xc0] sm:$0xff]
      %v248 = vld [vmem:[%s209 + $0xc8] sm:$0xff]
      %v249 = vld [vmem:[%s209 + $0xd0] sm:$0xff]
      %v250 = vld [vmem:[%s209 + $0xd8] sm:$0xff]
      %v251 = vld [vmem:[%s209 + $0xe0] sm:$0xff]
      %v252 = vld [vmem:[%s209 + $0xe8] sm:$0xff]
      %v253 = vld [vmem:[%s209 + $0xf0] sm:$0xff]
      %v254 = vld [vmem:[%s209 + $0xf8] sm:$0xff]
      %v255 = vld [vmem:[%s1] sm:$0x1]
      %v257 = vlaneseq
      %v258 = vshrl.u32 %v257, 7
      %v259 = vsub.s32 0, %v258
      %v260 = vrot.slane %v255, %v259
      %v262 = vmul.f32 %v223, %v260
      %v263 = vmul.f32 %v224, %v260
      %v264 = vmul.f32 %v225, %v260
      %v265 = vmul.f32 %v226, %v260
      %v266 = vmul.f32 %v227, %v260
      %v267 = vmul.f32 %v228, %v260
      %v268 = vmul.f32 %v229, %v260
      %v269 = vmul.f32 %v230, %v260
      %v270 = vmul.f32 %v231, %v260
      %v271 = vmul.f32 %v232, %v260
      %v272 = vmul.f32 %v233, %v260
      %v273 = vmul.f32 %v234, %v260
      %v274 = vmul.f32 %v235, %v260
      %v275 = vmul.f32 %v236, %v260
      %v276 = vmul.f32 %v237, %v260
      %v277 = vmul.f32 %v238, %v260
      %v278 = vmul.f32 %v239, %v260
      %v279 = vmul.f32 %v240, %v260
      %v280 = vmul.f32 %v241, %v260
      %v281 = vmul.f32 %v242, %v260
      %v282 = vmul.f32 %v243, %v260
      %v283 = vmul.f32 %v244, %v260
      %v284 = vmul.f32 %v245, %v260
      %v285 = vmul.f32 %v246, %v260
      %v286 = vmul.f32 %v247, %v260
      %v287 = vmul.f32 %v248, %v260
      %v288 = vmul.f32 %v249, %v260
      %v289 = vmul.f32 %v250, %v260
      %v290 = vmul.f32 %v251, %v260
      %v291 = vmul.f32 %v252, %v260
      %v292 = vmul.f32 %v253, %v260
      %v293 = vmul.f32 %v254, %v260
      %v294 = vld [vmem:[%s2] sm:$0x1]
      %v296 = vlaneseq
      %v297 = vshrl.u32 %v296, 7
      %v298 = vsub.s32 0, %v297
      %v299 = vrot.slane %v294, %v298
      %v301 = vadd.f32 %v262, %v299
      %v302 = vadd.f32 %v263, %v299
      %v303 = vadd.f32 %v264, %v299
      %v304 = vadd.f32 %v265, %v299
      %v305 = vadd.f32 %v266, %v299
      %v306 = vadd.f32 %v267, %v299
      %v307 = vadd.f32 %v268, %v299
      %v308 = vadd.f32 %v269, %v299
      %v309 = vadd.f32 %v270, %v299
      %v310 = vadd.f32 %v271, %v299
      %v311 = vadd.f32 %v272, %v299
      %v312 = vadd.f32 %v273, %v299
      %v313 = vadd.f32 %v274, %v299
      %v314 = vadd.f32 %v275, %v299
      %v315 = vadd.f32 %v276, %v299
      %v316 = vadd.f32 %v277, %v299
      %v317 = vadd.f32 %v278, %v299
      %v318 = vadd.f32 %v279, %v299
      %v319 = vadd.f32 %v280, %v299
      %v320 = vadd.f32 %v281, %v299
      %v321 = vadd.f32 %v282, %v299
      %v322 = vadd.f32 %v283, %v299
      %v323 = vadd.f32 %v284, %v299
      %v324 = vadd.f32 %v285, %v299
      %v325 = vadd.f32 %v286, %v299
      %v326 = vadd.f32 %v287, %v299
      %v327 = vadd.f32 %v288, %v299
      %v328 = vadd.f32 %v289, %v299
      %v329 = vadd.f32 %v290, %v299
      %v330 = vadd.f32 %v291, %v299
      %v331 = vadd.f32 %v292, %v299
      %v332 = vadd.f32 %v293, %v299
      %vm333 = vcmp.ge.f32.partialorder %v301, 0.0
      %vm334 = vcmp.ge.f32.partialorder %v302, 0.0
      %vm335 = vcmp.ge.f32.partialorder %v303, 0.0
      %vm336 = vcmp.ge.f32.partialorder %v304, 0.0
      %vm337 = vcmp.ge.f32.partialorder %v305, 0.0
      %vm338 = vcmp.ge.f32.partialorder %v306, 0.0
      %vm339 = vcmp.ge.f32.partialorder %v307, 0.0
      %vm340 = vcmp.ge.f32.partialorder %v308, 0.0
      %vm341 = vcmp.ge.f32.partialorder %v309, 0.0
      %vm342 = vcmp.ge.f32.partialorder %v310, 0.0
      %vm343 = vcmp.ge.f32.partialorder %v311, 0.0
      %vm344 = vcmp.ge.f32.partialorder %v312, 0.0
      %vm345 = vcmp.ge.f32.partialorder %v313, 0.0
      %vm346 = vcmp.ge.f32.partialorder %v314, 0.0
      %vm347 = vcmp.ge.f32.partialorder %v315, 0.0
      %vm348 = vcmp.ge.f32.partialorder %v316, 0.0
      %vm349 = vcmp.ge.f32.partialorder %v317, 0.0
      %vm350 = vcmp.ge.f32.partialorder %v318, 0.0
      %vm351 = vcmp.ge.f32.partialorder %v319, 0.0
      %vm352 = vcmp.ge.f32.partialorder %v320, 0.0
      %vm353 = vcmp.ge.f32.partialorder %v321, 0.0
      %vm354 = vcmp.ge.f32.partialorder %v322, 0.0
      %vm355 = vcmp.ge.f32.partialorder %v323, 0.0
      %vm356 = vcmp.ge.f32.partialorder %v324, 0.0
      %vm357 = vcmp.ge.f32.partialorder %v325, 0.0
      %vm358 = vcmp.ge.f32.partialorder %v326, 0.0
      %vm359 = vcmp.ge.f32.partialorder %v327, 0.0
      %vm360 = vcmp.ge.f32.partialorder %v328, 0.0
      %vm361 = vcmp.ge.f32.partialorder %v329, 0.0
      %vm362 = vcmp.ge.f32.partialorder %v330, 0.0
      %vm363 = vcmp.ge.f32.partialorder %v331, 0.0
      %vm364 = vcmp.ge.f32.partialorder %v332, 0.0
      %v365 = vmul.f32 %v301, 0.1
      %v366 = vmul.f32 %v302, 0.1
      %v367 = vmul.f32 %v303, 0.1
      %v368 = vmul.f32 %v304, 0.1
      %v369 = vmul.f32 %v305, 0.1
      %v370 = vmul.f32 %v306, 0.1
      %v371 = vmul.f32 %v307, 0.1
      %v372 = vmul.f32 %v308, 0.1
      %v373 = vmul.f32 %v309, 0.1
      %v374 = vmul.f32 %v310, 0.1
      %v375 = vmul.f32 %v311, 0.1
      %v376 = vmul.f32 %v312, 0.1
      %v377 = vmul.f32 %v313, 0.1
      %v378 = vmul.f32 %v314, 0.1
      %v379 = vmul.f32 %v315, 0.1
      %v380 = vmul.f32 %v316, 0.1
      %v381 = vmul.f32 %v317, 0.1
      %v382 = vmul.f32 %v318, 0.1
      %v383 = vmul.f32 %v319, 0.1
      %v384 = vmul.f32 %v320, 0.1
      %v385 = vmul.f32 %v321, 0.1
      %v386 = vmul.f32 %v322, 0.1
      %v387 = vmul.f32 %v323, 0.1
      %v388 = vmul.f32 %v324, 0.1
      %v389 = vmul.f32 %v325, 0.1
      %v390 = vmul.f32 %v326, 0.1
      %v391 = vmul.f32 %v327, 0.1
      %v392 = vmul.f32 %v328, 0.1
      %v393 = vmul.f32 %v329, 0.1
      %v394 = vmul.f32 %v330, 0.1
      %v395 = vmul.f32 %v331, 0.1
      %v396 = vmul.f32 %v332, 0.1
      %v397 = vsel %vm333, %v301, %v365
      %v398 = vsel %vm334, %v302, %v366
      %v399 = vsel %vm335, %v303, %v367
      %v400 = vsel %vm336, %v304, %v368
      %v401 = vsel %vm337, %v305, %v369
      %v402 = vsel %vm338, %v306, %v370
      %v403 = vsel %vm339, %v307, %v371
      %v404 = vsel %vm340, %v308, %v372
      %v405 = vsel %vm341, %v309, %v373
      %v406 = vsel %vm342, %v310, %v374
      %v407 = vsel %vm343, %v311, %v375
      %v408 = vsel %vm344, %v312, %v376
      %v409 = vsel %vm345, %v313, %v377
      %v410 = vsel %vm346, %v314, %v378
      %v411 = vsel %vm347, %v315, %v379
      %v412 = vsel %vm348, %v316, %v380
      %v413 = vsel %vm349, %v317, %v381
      %v414 = vsel %vm350, %v318, %v382
      %v415 = vsel %vm351, %v319, %v383
      %v416 = vsel %vm352, %v320, %v384
      %v417 = vsel %vm353, %v321, %v385
      %v418 = vsel %vm354, %v322, %v386
      %v419 = vsel %vm355, %v323, %v387
      %v420 = vsel %vm356, %v324, %v388
      %v421 = vsel %vm357, %v325, %v389
      %v422 = vsel %vm358, %v326, %v390
      %v423 = vsel %vm359, %v327, %v391
      %v424 = vsel %vm360, %v328, %v392
      %v425 = vsel %vm361, %v329, %v393
      %v426 = vsel %vm362, %v330, %v394
      %v427 = vsel %vm363, %v331, %v395
      %v428 = vsel %vm364, %v332, %v396
      %v429 = vld [vmem:[%s215] sm:$0xff]
      %v430 = vld [vmem:[%s215 + $0x8] sm:$0xff]
      %v431 = vld [vmem:[%s215 + $0x10] sm:$0xff]
      %v432 = vld [vmem:[%s215 + $0x18] sm:$0xff]
      %v433 = vld [vmem:[%s215 + $0x20] sm:$0xff]
      %v434 = vld [vmem:[%s215 + $0x28] sm:$0xff]
      %v435 = vld [vmem:[%s215 + $0x30] sm:$0xff]
      %v436 = vld [vmem:[%s215 + $0x38] sm:$0xff]
      %v437 = vld [vmem:[%s215 + $0x40] sm:$0xff]
      %v438 = vld [vmem:[%s215 + $0x48] sm:$0xff]
      %v439 = vld [vmem:[%s215 + $0x50] sm:$0xff]
      %v440 = vld [vmem:[%s215 + $0x58] sm:$0xff]
      %v441 = vld [vmem:[%s215 + $0x60] sm:$0xff]
      %v442 = vld [vmem:[%s215 + $0x68] sm:$0xff]
      %v443 = vld [vmem:[%s215 + $0x70] sm:$0xff]
      %v444 = vld [vmem:[%s215 + $0x78] sm:$0xff]
      %v445 = vld [vmem:[%s215 + $0x80] sm:$0xff]
      %v446 = vld [vmem:[%s215 + $0x88] sm:$0xff]
      %v447 = vld [vmem:[%s215 + $0x90] sm:$0xff]
      %v448 = vld [vmem:[%s215 + $0x98] sm:$0xff]
      %v449 = vld [vmem:[%s215 + $0xa0] sm:$0xff]
      %v450 = vld [vmem:[%s215 + $0xa8] sm:$0xff]
      %v451 = vld [vmem:[%s215 + $0xb0] sm:$0xff]
      %v452 = vld [vmem:[%s215 + $0xb8] sm:$0xff]
      %v453 = vld [vmem:[%s215 + $0xc0] sm:$0xff]
      %v454 = vld [vmem:[%s215 + $0xc8] sm:$0xff]
      %v455 = vld [vmem:[%s215 + $0xd0] sm:$0xff]
      %v456 = vld [vmem:[%s215 + $0xd8] sm:$0xff]
      %v457 = vld [vmem:[%s215 + $0xe0] sm:$0xff]
      %v458 = vld [vmem:[%s215 + $0xe8] sm:$0xff]
      %v459 = vld [vmem:[%s215 + $0xf0] sm:$0xff]
      %v460 = vld [vmem:[%s215 + $0xf8] sm:$0xff]
      %v461 = vadd.f32 %v429, %v397
      %v462 = vadd.f32 %v430, %v398
      %v463 = vadd.f32 %v431, %v399
      %v464 = vadd.f32 %v432, %v400
      %v465 = vadd.f32 %v433, %v401
      %v466 = vadd.f32 %v434, %v402
      %v467 = vadd.f32 %v435, %v403
      %v468 = vadd.f32 %v436, %v404
      %v469 = vadd.f32 %v437, %v405
      %v470 = vadd.f32 %v438, %v406
      %v471 = vadd.f32 %v439, %v407
      %v472 = vadd.f32 %v440, %v408
      %v473 = vadd.f32 %v441, %v409
      %v474 = vadd.f32 %v442, %v410
      %v475 = vadd.f32 %v443, %v411
      %v476 = vadd.f32 %v444, %v412
      %v477 = vadd.f32 %v445, %v413
      %v478 = vadd.f32 %v446, %v414
      %v479 = vadd.f32 %v447, %v415
      %v480 = vadd.f32 %v448, %v416
      %v481 = vadd.f32 %v449, %v417
      %v482 = vadd.f32 %v450, %v418
      %v483 = vadd.f32 %v451, %v419
      %v484 = vadd.f32 %v452, %v420
      %v485 = vadd.f32 %v453, %v421
      %v486 = vadd.f32 %v454, %v422
      %v487 = vadd.f32 %v455, %v423
      %v488 = vadd.f32 %v456, %v424
      %v489 = vadd.f32 %v457, %v425
      %v490 = vadd.f32 %v458, %v426
      %v491 = vadd.f32 %v459, %v427
      %v492 = vadd.f32 %v460, %v428
      %493 = vst [vmem:[%s221] sm:$0xff] %v461
      %494 = vst [vmem:[%s221 + $0x8] sm:$0xff] %v462
      %495 = vst [vmem:[%s221 + $0x10] sm:$0xff] %v463
      %496 = vst [vmem:[%s221 + $0x18] sm:$0xff] %v464
      %497 = vst [vmem:[%s221 + $0x20] sm:$0xff] %v465
      %498 = vst [vmem:[%s221 + $0x28] sm:$0xff] %v466
      %499 = vst [vmem:[%s221 + $0x30] sm:$0xff] %v467
      %500 = vst [vmem:[%s221 + $0x38] sm:$0xff] %v468
      %501 = vst [vmem:[%s221 + $0x40] sm:$0xff] %v469
      %502 = vst [vmem:[%s221 + $0x48] sm:$0xff] %v470
      %503 = vst [vmem:[%s221 + $0x50] sm:$0xff] %v471
      %504 = vst [vmem:[%s221 + $0x58] sm:$0xff] %v472
      %505 = vst [vmem:[%s221 + $0x60] sm:$0xff] %v473
      %506 = vst [vmem:[%s221 + $0x68] sm:$0xff] %v474
      %507 = vst [vmem:[%s221 + $0x70] sm:$0xff] %v475
      %508 = vst [vmem:[%s221 + $0x78] sm:$0xff] %v476
      %509 = vst [vmem:[%s221 + $0x80] sm:$0xff] %v477
      %510 = vst [vmem:[%s221 + $0x88] sm:$0xff] %v478
      %511 = vst [vmem:[%s221 + $0x90] sm:$0xff] %v479
      %512 = vst [vmem:[%s221 + $0x98] sm:$0xff] %v480
      %513 = vst [vmem:[%s221 + $0xa0] sm:$0xff] %v481
      %514 = vst [vmem:[%s221 + $0xa8] sm:$0xff] %v482
      %515 = vst [vmem:[%s221 + $0xb0] sm:$0xff] %v483
      %516 = vst [vmem:[%s221 + $0xb8] sm:$0xff] %v484
      %517 = vst [vmem:[%s221 + $0xc0] sm:$0xff] %v485
      %518 = vst [vmem:[%s221 + $0xc8] sm:$0xff] %v486
      %519 = vst [vmem:[%s221 + $0xd0] sm:$0xff] %v487
      %520 = vst [vmem:[%s221 + $0xd8] sm:$0xff] %v488
      %521 = vst [vmem:[%s221 + $0xe0] sm:$0xff] %v489
      %522 = vst [vmem:[%s221 + $0xe8] sm:$0xff] %v490
      %523 = vst [vmem:[%s221 + $0xf0] sm:$0xff] %v491
      %524 = vst [vmem:[%s221 + $0xf8] sm:$0xff] %v492
      %s525 = smul.u32 32, %s15
      %p526 = scmp.lt.s32.totalorder %s525, 63
      %s527 = scalar_select %p526, %s525, 63
      %s528 = smul.addr %s527, 8
      %s529 = scalar_lea.vmem %s4, %s528
      // Predicated region
      $region37: #{residual_layer_forward.7} parent=35 // pred_check
        %p530 = pneg %p127
      $region38: #{residual_layer_forward.7} parent=35 // pred_check_branch
        %532 = sbr.rel (%p530) target = $region40
      $region39: #{residual_layer_forward.7} parent=35 // pred_region
        %s533 = smul.u32 32, %s15
      $region40: #{residual_layer_forward.7} parent=35 // pred_fallthru
        _
    $region36: #{residual_layer_forward.7} parent=5 // pred_fallthru
      _
    %p534 = scmp.le.s32.totalorder 2, %s10
    // Predicated region
    $region41: #{residual_layer_forward.7} parent=5 // pred_check
      %p535 = pneg %p534
    $region42: #{residual_layer_forward.7} parent=5 // pred_check_branch
      %537 = sbr.rel (%p535) target = $region44
    $region43: #{residual_layer_forward.7} parent=5 // pred_region
      %s538 = ssub.s32 %s10, 2
      // Predicated region
      $region45: #{residual_layer_forward.7} parent=43 // pred_check
        %p539 = pneg %p133
      $region46: #{residual_layer_forward.7} parent=43 // pred_check_branch
        %541 = sbr.rel (%p539) target = $region48
      $region47: #{residual_layer_forward.7} parent=43 // pred_region
        %s542 = smul.u32 32, %s16
        %p543 = scmp.lt.s32.totalorder %s542, 63
        %s544 = scalar_select %p543, %s542, 63
        %s545 = smul.addr %s544, 8
        %s546 = scalar_lea.vmem %s4, %s545
      $region48: #{residual_layer_forward.7} parent=43 // pred_fallthru
        _
    $region44: #{residual_layer_forward.7} parent=5 // pred_fallthru
      _
  $region6: #{residual_layer_forward.7} parent=0 // loop_footer
    %s14 = sadd.s32 1, %s10
  $region7: #{residual_layer_forward.7} parent=0 // loop_footer_branch
    %9 = sbr.rel target = $region3
  $region8: #{residual_layer_forward.7} parent=0 // loop_exit
    _

// kernel: residual_layer_forward.6
$region0: #{residual_layer_forward.6}
  #allocation0 [shape = 'u32[]', space=smem, size = 0x4, offset = 0x4, fixed_abs, tag = 'smem constant byte address 0x4 - core index']
  #allocation1 [shape = 'u32[144,128]{1,0:T(1,128)}', space=vmem, size = 0x12000, scoped, tag = 'internal scratch']
  %s0 = inlined_call_operand.vmem [shape: bf16[2,18,18,128], index: 0, kind: input, shape index: {}]
  %s1 = inlined_call_operand.vmem [shape: bf16[9,128,128], index: 1, kind: input, shape index: {}]
  %s2 = inlined_call_operand.vmem [shape: f32[512,128], index: 2, kind: output, shape index: {0}]
  %s3 = inlined_call_operand.vmem [shape: f32[4,8,128], index: 3, kind: output, shape index: {1}]
  %4 = xla_tuple %s2, %s3
  %s5 = sld [smem:[#allocation0]]
  $region49: #{residual_layer_forward.6} parent=0
    _
  %s7 = ssub.s32 1, %s5
  %s8 = scalar_select 0, %s7, %s5
  loop: start=0, step=1, limit=6
  $region2: #{residual_layer_forward.6} parent=0 // loop_pre_header
    _
  $region3: #{residual_layer_forward.6} parent=0 // loop_header
    %s10 = sphi 0, %s14
    %p11 = scmp.ge.s32.totalorder %s10, 6
    %s17 = sphi 0, %s29
    %s18 = sphi 0, %s25
    %s19 = sphi 0, %s17
    %s20 = sphi 0, %s18
    %s21 = sphi 0, %s19
    %s22 = sphi 0, %s20
    %s32 = sphi 0, %s34
    %s35 = sphi 0, %s32
    %s36 = sphi 0, %s35
    %s52 = sphi 0, %s36
    %s56 = sphi 0, %s56
    %s58 = sphi 0, %s56
    %s59 = sphi 0, %s58
    %s73 = sphi 0, %s59
    %s83 = sphi 0, %s85
    %s86 = sphi 0, %s83
    %s87 = sphi 0, %s86
    %s103 = sphi 0, %s87
    %s113 = sphi 0, %s115
    %s116 = sphi 0, %s113
    %s117 = sphi 0, %s116
    %s133 = sphi 0, %s117
  $region4: #{residual_layer_forward.6} parent=0 // loop_header_branch
    %13 = sbr.rel (%p11) target = $region8
  $region5: #{residual_layer_forward.6} parent=0 // loop_body
    %s15 = ssub.s32 %s10, 1
    %s16 = ssub.s32 %s10, 2
    %s23 = sadd.s32 1, %s18
    %p24 = scmp.ge.s32.totalorder %s23, 2
    %s25 = scalar_select %p24, 0, %s23
    %s26 = sadd.s32 1, %s17
    %s27 = scalar_select %p24, %s26, %s17
    %p28 = scmp.ge.s32.totalorder %s27, 2
    %s29 = scalar_select %p28, 0, %s27
    %s30 = ssub.s32 %s17, %s29
    %p31 = scmp.eq.s32.totalorder %s30, 0
    %s33 = sadd.s32 %s32, 1
    %s34 = scalar_select %p31, %s32, %s33
    %p37 = pneg %p31
    %p38 = scmp.eq.s32.totalorder %s10, 3
    %p39 = por %p37, %p38
    %p40 = scmp.ne.s32.totalorder %s32, %s35
    %p41 = scmp.eq.s32.totalorder %s10, 0
    %p42 = por %p40, %p41
    %p43 = scmp.ne.s32.totalorder %s32, %s35
    %p44 = scmp.eq.s32.totalorder %s15, 3
    %p45 = por %p43, %p44
    %p46 = scmp.ne.s32.totalorder %s35, %s36
    %p47 = scmp.eq.s32.totalorder %s15, 0
    %p48 = por %p46, %p47
    %p49 = scmp.ne.s32.totalorder %s35, %s36
    %p50 = scmp.eq.s32.totalorder %s16, 3
    %p51 = por %p49, %p50
    %p53 = scmp.ne.s32.totalorder %s36, %s52
    %p54 = scmp.eq.s32.totalorder %s16, 0
    %p55 = por %p53, %p54
    %s57 = sadd.s32 %s56, 1
    %p60 = scmp.eq.s32.totalorder %s10, 3
    %p61 = scmp.ne.s32.totalorder %s56, %s58
    %p62 = scmp.eq.s32.totalorder %s10, 0
    %p63 = por %p61, %p62
    %p64 = scmp.ne.s32.totalorder %s56, %s58
    %p65 = scmp.eq.s32.totalorder %s15, 3
    %p66 = por %p64, %p65
    %p67 = scmp.ne.s32.totalorder %s58, %s59
    %p68 = scmp.eq.s32.totalorder %s15, 0
    %p69 = por %p67, %p68
    %p70 = scmp.ne.s32.totalorder %s58, %s59
    %p71 = scmp.eq.s32.totalorder %s16, 3
    %p72 = por %p70, %p71
    %p74 = scmp.ne.s32.totalorder %s59, %s73
    %p75 = scmp.eq.s32.totalorder %s16, 0
    %p76 = por %p74, %p75
    %s77 = smul.u32 %s17, 2
    %s78 = sadd.s32 %s77, %s18
    %s79 = smul.u32 %s29, 2
    %s80 = sadd.s32 %s79, %s25
    %s81 = ssub.s32 %s78, %s80
    %p82 = scmp.eq.s32.totalorder %s81, 0
    %s84 = sadd.s32 %s83, 1
    %s85 = scalar_select %p82, %s83, %s84
    %p88 = pneg %p82
    %p89 = scmp.eq.s32.totalorder %s10, 3
    %p90 = por %p88, %p89
    %p91 = scmp.ne.s32.totalorder %s83, %s86
    %p92 = scmp.eq.s32.totalorder %s10, 0
    %p93 = por %p91, %p92
    %p94 = scmp.ne.s32.totalorder %s83, %s86
    %p95 = scmp.eq.s32.totalorder %s15, 3
    %p96 = por %p94, %p95
    %p97 = scmp.ne.s32.totalorder %s86, %s87
    %p98 = scmp.eq.s32.totalorder %s15, 0
    %p99 = por %p97, %p98
    %p100 = scmp.ne.s32.totalorder %s86, %s87
    %p101 = scmp.eq.s32.totalorder %s16, 3
    %p102 = por %p100, %p101
    %p104 = scmp.ne.s32.totalorder %s87, %s103
    %p105 = scmp.eq.s32.totalorder %s16, 0
    %p106 = por %p104, %p105
    %s107 = smul.u32 %s17, 2
    %s108 = sadd.s32 %s107, %s18
    %s109 = smul.u32 %s29, 2
    %s110 = sadd.s32 %s109, %s25
    %s111 = ssub.s32 %s108, %s110
    %p112 = scmp.eq.s32.totalorder %s111, 0
    %s114 = sadd.s32 %s113, 1
    %s115 = scalar_select %p112, %s113, %s114
    %p118 = pneg %p112
    %p119 = scmp.eq.s32.totalorder %s10, 3
    %p120 = por %p118, %p119
    %p121 = scmp.ne.s32.totalorder %s113, %s116
    %p122 = scmp.eq.s32.totalorder %s10, 0
    %p123 = por %p121, %p122
    %p124 = scmp.ne.s32.totalorder %s113, %s116
    %p125 = scmp.eq.s32.totalorder %s15, 3
    %p126 = por %p124, %p125
    %p127 = scmp.ne.s32.totalorder %s116, %s117
    %p128 = scmp.eq.s32.totalorder %s15, 0
    %p129 = por %p127, %p128
    %p130 = scmp.ne.s32.totalorder %s116, %s117
    %p131 = scmp.eq.s32.totalorder %s16, 3
    %p132 = por %p130, %p131
    %p134 = scmp.ne.s32.totalorder %s117, %s133
    %p135 = scmp.eq.s32.totalorder %s16, 0
    %p136 = por %p134, %p135
    %p137 = scmp.le.s32.totalorder 1, %s10
    %p138 = scmp.lt.s32.totalorder %s10, 5
    %p139 = pnand %p137, %p138
    %p140 = pneg %p139
    // Predicated region
    $region9: #{residual_layer_forward.6} parent=5 // pred_check
      _
    $region10: #{residual_layer_forward.6} parent=5 // pred_check_branch
      %142 = sbr.rel (%p139) target = $region12
    $region11: #{residual_layer_forward.6} parent=5 // pred_region
      %s143 = ssub.s32 %s10, 1
      // Predicated region
      $region13: #{residual_layer_forward.6} parent=11 // pred_check
        %p144 = pneg %p69
      $region14: #{residual_layer_forward.6} parent=11 // pred_check_branch
        %146 = sbr.rel (%p144) target = $region16
      $region15: #{residual_layer_forward.6} parent=11 // pred_region
        _
      $region16: #{residual_layer_forward.6} parent=11 // pred_fallthru
        _
    $region12: #{residual_layer_forward.6} parent=5 // pred_fallthru
      _
    %p147 = scmp.lt.s32.totalorder %s10, 4
    // Predicated region
    $region17: #{residual_layer_forward.6} parent=5 // pred_check
      %p148 = pneg %p147
    $region18: #{residual_layer_forward.6} parent=5 // pred_check_branch
      %150 = sbr.rel (%p148) target = $region20
    $region19: #{residual_layer_forward.6} parent=5 // pred_region
      // Predicated region
      $region21: #{residual_layer_forward.6} parent=19 // pred_check
        %p151 = pneg %p42
      $region22: #{residual_layer_forward.6} parent=19 // pred_check_branch
        %153 = sbr.rel (%p151) target = $region24
      $region23: #{residual_layer_forward.6} parent=19 // pred_region
        %p154 = scmp.lt.s32.totalorder %s17, 1
        %s155 = scalar_select %p154, %s17, 1
        %s156 = smul.addr %s155, 54
        %s157 = smul.addr %s156, 4
        %s158 = scalar_lea.vmem %s0, %s157
      $region24: #{residual_layer_forward.6} parent=19 // pred_fallthru
        _
    $region20: #{residual_layer_forward.6} parent=5 // pred_fallthru
      _
    %p159 = scmp.le.s32.totalorder 1, %s10
    %p160 = scmp.lt.s32.totalorder %s10, 5
    %p161 = pnand %p159, %p160
    %p162 = pneg %p161
    // Predicated region
    $region25: #{residual_layer_forward.6} parent=5 // pred_check
      _
    $region26: #{residual_layer_forward.6} parent=5 // pred_check_branch
      %164 = sbr.rel (%p161) target = $region28
    $region27: #{residual_layer_forward.6} parent=5 // pred_region
      %s165 = ssub.s32 %s10, 1
      %p166 = scmp.lt.s32.totalorder %s19, 1
      %s167 = scalar_select %p166, %s19, 1
      %s168 = smul.addr %s167, 54
      %s169 = smul.addr %s168, 4
      %s170 = scalar_lea.vmem %s0, %s169
      %p171 = pneg %p48
      %p172 = pneg %p45
      %p173 = pneg %p69
      %p174 = pneg %p66
      %p175 = pneg %p99
      %p176 = pneg %p96
      %s177 = smul.u32 %s19, 2
      %s178 = sadd.s32 %s177, %s20
      %s179 = smul.u32 16, %s178
      %p180 = scmp.lt.s32.totalorder %s179, 63
      %s181 = scalar_select %p180, %s179, 63
      %s182 = smul.addr %s181, 8
      %s183 = scalar_lea.vmem %s2, %s182
      %p184 = pneg %p129
      %p185 = pneg %p126
      %s186 = smul.u32 %s19, 2
      %s187 = sadd.s32 %s186, %s20
      %p188 = scmp.lt.s32.totalorder %s187, 3
      %s189 = scalar_select %p188, %s187, 3
      %s190 = smul.addr %s189, 8
      %s191 = scalar_lea.vmem %s3, %s190
      %p192 = scmp.lt.s32.totalorder %s19, 1
      %s193 = scalar_select %p192, %s19, 1
      %s194 = smul.addr %s193, 54
      %s195 = smul.addr %s194, 4
      %s196 = scalar_lea.vmem %s0, %s195
      %s197 = smul.u32 %s19, 2
      %s198 = sadd.s32 %s197, %s20
      %s199 = smul.u32 16, %s198
      %p200 = scmp.lt.s32.totalorder %s199, 63
      %s201 = scalar_select %p200, %s199, 63
      %s202 = smul.addr %s201, 8
      %s203 = scalar_lea.vmem %s2, %s202
      %s204 = smul.u32 %s19, 2
      %s205 = sadd.s32 %s204, %s20
      %s206 = smul.u32 16, %s205
      %s207 = smul.u32 %s19, 2
      %s208 = sadd.s32 %s207, %s20
      %p209 = scmp.lt.s32.totalorder %s208, 3
      %s210 = scalar_select %p209, %s208, 3
      %s211 = smul.addr %s210, 8
      %s212 = scalar_lea.vmem %s3, %s211
      %s213 = smul.u32 %s19, 2
      %s214 = sadd.s32 %s213, %s20
      %s216 = smul.u32 %s20, 8
      %s217 = smul.u32 %s216, 3
      %s218 = smul.addr %s217, 4
      %s219 = scalar_lea.vmem %s196, %s218
      %v220 = vld [vmem:[%s219] sm:$0xf]
      %v221 = vld [vmem:[%s219 + $0x4] sm:$0xf]
      %v222 = vld [vmem:[%s219 + $0x8] sm:$0x1]
      %v223 = vld [vmem:[%s219 + $0xc] sm:$0xf]
      %v224 = vld [vmem:[%s219 + $0x10] sm:$0xf]
      %v225 = vld [vmem:[%s219 + $0x14] sm:$0x1]
      %v226 = vld [vmem:[%s219 + $0x18] sm:$0xf]
      %v227 = vld [vmem:[%s219 + $0x1c] sm:$0xf]
      %v228 = vld [vmem:[%s219 + $0x20] sm:$0x1]
      %v229 = vld [vmem:[%s219 + $0x24] sm:$0xf]
      %v230 = vld [vmem:[%s219 + $0x28] sm:$0xf]
      %v231 = vld [vmem:[%s219 + $0x2c] sm:$0x1]
      %v232 = vld [vmem:[%s219 + $0x30] sm:$0xf]
      %v233 = vld [vmem:[%s219 + $0x34] sm:$0xf]
      %v234 = vld [vmem:[%s219 + $0x38] sm:$0x1]
      %v235 = vld [vmem:[%s219 + $0x3c] sm:$0xf]
      %v236 = vld [vmem:[%s219 + $0x40] sm:$0xf]
      %v237 = vld [vmem:[%s219 + $0x44] sm:$0x1]
      %v238 = vld [vmem:[%s219 + $0x48] sm:$0xf]
      %v239 = vld [vmem:[%s219 + $0x4c] sm:$0xf]
      %v240 = vld [vmem:[%s219 + $0x50] sm:$0x1]
      %v241 = vld [vmem:[%s219 + $0x54] sm:$0xf]
      %v242 = vld [vmem:[%s219 + $0x58] sm:$0xf]
      %v243 = vld [vmem:[%s219 + $0x5c] sm:$0x1]
      %v244 = vld [vmem:[%s219 + $0x60] sm:$0xf]
      %v245 = vld [vmem:[%s219 + $0x64] sm:$0xf]
      %v246 = vld [vmem:[%s219 + $0x68] sm:$0x1]
      %v247 = vld [vmem:[%s219 + $0x6c] sm:$0xf]
      %v248 = vld [vmem:[%s219 + $0x70] sm:$0xf]
      %v249 = vld [vmem:[%s219 + $0x74] sm:$0x1]
      %v250 = vld [vmem:[%s1] sm:$0xf]
      %v251 = vld [vmem:[%s1 + $0x4] sm:$0xf]
      %v252 = vld [vmem:[%s1 + $0x8] sm:$0xf]
      %v253 = vld [vmem:[%s1 + $0xc] sm:$0xf]
      %v254 = vld [vmem:[%s1 + $0x10] sm:$0xf]
      %v255 = vld [vmem:[%s1 + $0x14] sm:$0xf]
      %v256 = vld [vmem:[%s1 + $0x18] sm:$0xf]
      %v257 = vld [vmem:[%s1 + $0x1c] sm:$0xf]
      %v258 = vld [vmem:[%s1 + $0x20] sm:$0xf]
      %v259 = vld [vmem:[%s1 + $0x24] sm:$0xf]
      %v260 = vld [vmem:[%s1 + $0x28] sm:$0xf]
      %v261 = vld [vmem:[%s1 + $0x2c] sm:$0xf]
      %v262 = vld [vmem:[%s1 + $0x30] sm:$0xf]
      %v263 = vld [vmem:[%s1 + $0x34] sm:$0xf]
      %v264 = vld [vmem:[%s1 + $0x38] sm:$0xf]
      %v265 = vld [vmem:[%s1 + $0x3c] sm:$0xf]
      %vm266 = vsmask.f32 3328
      %vm267 = vsmask.f32 7440
      %vm268 = vmor %vm266, %vm267
      %v270 = vshrl.u32 %v220, 16
      %v272 = vrot.slane %v270, 4
      %v273 = vshll.u32 %v220, 16
      %v275 = vrot.slane %v273, 5
      %v276 = vor.u32 %v272, %v275
      %v277 = vrot.slane %v276, 4
      %v279 = vshll.u32 %v221, 16
      %v281 = vrot.slane %v279, 5
      %v282 = vsel %vm268, %v277, %v281
      %v283 = vshrl.u32 %v221, 16
      %v285 = vrot.slane %v283, 4
      %v286 = vor.u32 %v285, %v281
      %v287 = vrot.slane %v286, 4
      %v289 = vshll.u32 %v222, 16
      %v291 = vrot.slane %v289, 5
      %v292 = vsel %vm268, %v287, %v291
      %v294 = vshrl.u32 %v223, 16
      %v296 = vrot.slane %v294, 4
      %v297 = vshll.u32 %v223, 16
      %v299 = vrot.slane %v297, 5
      %v300 = vor.u32 %v296, %v299
      %v301 = vrot.slane %v300, 4
      %v303 = vshll.u32 %v224, 16
      %v305 = vrot.slane %v303, 5
      %v306 = vsel %vm268, %v301, %v305
      %v307 = vshrl.u32 %v224, 16
      %v309 = vrot.slane %v307, 4
      %v310 = vor.u32 %v309, %v305
      %v311 = vrot.slane %v310, 4
      %v313 = vshll.u32 %v225, 16
      %v315 = vrot.slane %v313, 5
      %v316 = vsel %vm268, %v311, %v315
      %v318 = vshrl.u32 %v226, 16
      %v320 = vrot.slane %v318, 4
      %v321 = vshll.u32 %v226, 16
      %v323 = vrot.slane %v321, 5
      %v324 = vor.u32 %v320, %v323
      %v325 = vrot.slane %v324, 4
      %v327 = vshll.u32 %v227, 16
      %v329 = vrot.slane %v327, 5
      %v330 = vsel %vm268, %v325, %v329
      %v331 = vshrl.u32 %v227, 16
      %v333 = vrot.slane %v331, 4
      %v334 = vor.u32 %v333, %v329
      %v335 = vrot.slane %v334, 4
      %v337 = vshll.u32 %v228, 16
      %v339 = vrot.slane %v337, 5
      %v340 = vsel %vm268, %v335, %v339
      %v342 = vshrl.u32 %v229, 16
      %v344 = vrot.slane %v342, 4
      %v345 = vshll.u32 %v229, 16
      %v347 = vrot.slane %v345, 5
      %v348 = vor.u32 %v344, %v347
      %v349 = vrot.slane %v348, 4
      %v351 = vshll.u32 %v230, 16
      %v353 = vrot.slane %v351, 5
      %v354 = vsel %vm268, %v349, %v353
      %v355 = vshrl.u32 %v230, 16
      %v357 = vrot.slane %v355, 4
      %v358 = vor.u32 %v357, %v353
      %v359 = vrot.slane %v358, 4
      %v361 = vshll.u32 %v231, 16
      %v363 = vrot.slane %v361, 5
      %v364 = vsel %vm268, %v359, %v363
      %v366 = vshrl.u32 %v232, 16
      %v368 = vrot.slane %v366, 4
      %v369 = vshll.u32 %v232, 16
      %v371 = vrot.slane %v369, 5
      %v372 = vor.u32 %v368, %v371
      %v373 = vrot.slane %v372, 4
      %v375 = vshll.u32 %v233, 16
      %v377 = vrot.slane %v375, 5
      %v378 = vsel %vm268, %v373, %v377
      %v379 = vshrl.u32 %v233, 16
      %v381 = vrot.slane %v379, 4
      %v382 = vor.u32 %v381, %v377
      %v383 = vrot.slane %v382, 4
      %v385 = vshll.u32 %v234, 16
      %v387 = vrot.slane %v385, 5
      %v388 = vsel %vm268, %v383, %v387
      %v390 = vshrl.u32 %v235, 16
      %v392 = vrot.slane %v390, 4
      %v393 = vshll.u32 %v235, 16
      %v395 = vrot.slane %v393, 5
      %v396 = vor.u32 %v392, %v395
      %v397 = vrot.slane %v396, 4
      %v399 = vshll.u32 %v236, 16
      %v401 = vrot.slane %v399, 5
      %v402 = vsel %vm268, %v397, %v401
      %v403 = vshrl.u32 %v236, 16
      %v405 = vrot.slane %v403, 4
      %v406 = vor.u32 %v405, %v401
      %v407 = vrot.slane %v406, 4
      %v409 = vshll.u32 %v237, 16
      %v411 = vrot.slane %v409, 5
      %v412 = vsel %vm268, %v407, %v411
      %v414 = vshrl.u32 %v238, 16
      %v416 = vrot.slane %v414, 4
      %v417 = vshll.u32 %v238, 16
      %v419 = vrot.slane %v417, 5
      %v420 = vor.u32 %v416, %v419
      %v421 = vrot.slane %v420, 4
      %v423 = vshll.u32 %v239, 16
      %v425 = vrot.slane %v423, 5
      %v426 = vsel %vm268, %v421, %v425
      %v427 = vshrl.u32 %v239, 16
      %v429 = vrot.slane %v427, 4
      %v430 = vor.u32 %v429, %v425
      %v431 = vrot.slane %v430, 4
      %v433 = vshll.u32 %v240, 16
      %v435 = vrot.slane %v433, 5
      %v436 = vsel %vm268, %v431, %v435
      %v438 = vshrl.u32 %v241, 16
      %v440 = vrot.slane %v438, 4
      %v441 = vshll.u32 %v241, 16
      %v443 = vrot.slane %v441, 5
      %v444 = vor.u32 %v440, %v443
      %v445 = vrot.slane %v444, 4
      %v447 = vshll.u32 %v242, 16
      %v449 = vrot.slane %v447, 5
      %v450 = vsel %vm268, %v445, %v449
      %v451 = vshrl.u32 %v242, 16
      %v453 = vrot.slane %v451, 4
      %v454 = vor.u32 %v453, %v449
      %v455 = vrot.slane %v454, 4
      %v457 = vshll.u32 %v243, 16
      %v459 = vrot.slane %v457, 5
      %v460 = vsel %vm268, %v455, %v459
      %s461 = scalar_lea.vmem %s1, 64
      %v462 = vld [vmem:[%s461] sm:$0xf]
      %v463 = vld [vmem:[%s461 + $0x4] sm:$0xf]
      %v464 = vld [vmem:[%s461 + $0x8] sm:$0xf]
      %v465 = vld [vmem:[%s461 + $0xc] sm:$0xf]
      %v466 = vld [vmem:[%s461 + $0x10] sm:$0xf]
      %v467 = vld [vmem:[%s461 + $0x14] sm:$0xf]
      %v468 = vld [vmem:[%s461 + $0x18] sm:$0xf]
      %v469 = vld [vmem:[%s461 + $0x1c] sm:$0xf]
      %v470 = vld [vmem:[%s461 + $0x20] sm:$0xf]
      %v471 = vld [vmem:[%s461 + $0x24] sm:$0xf]
      %v472 = vld [vmem:[%s461 + $0x28] sm:$0xf]
      %v473 = vld [vmem:[%s461 + $0x2c] sm:$0xf]
      %v474 = vld [vmem:[%s461 + $0x30] sm:$0xf]
      %v475 = vld [vmem:[%s461 + $0x34] sm:$0xf]
      %v476 = vld [vmem:[%s461 + $0x38] sm:$0xf]
      %v477 = vld [vmem:[%s461 + $0x3c] sm:$0xf]
      %v478 = vunpack.c.l.b16 %v282
      %v479 = vunpack.c.l.b16 %v292
      %v480 = vunpack.c.l.b16 %v306
      %v481 = vunpack.c.l.b16 %v316
      %v482 = vunpack.c.l.b16 %v330
      %v483 = vunpack.c.l.b16 %v340
      %v484 = vunpack.c.l.b16 %v354
      %v485 = vunpack.c.l.b16 %v364
      %v486 = vunpack.c.l.b16 %v378
      %v487 = vunpack.c.l.b16 %v388
      %v488 = vunpack.c.l.b16 %v402
      %v489 = vunpack.c.l.b16 %v412
      %v490 = vunpack.c.l.b16 %v426
      %v491 = vunpack.c.l.b16 %v436
      %v492 = vunpack.c.l.b16 %v450
      %v493 = vunpack.c.l.b16 %v460
      %v494 = vpack.c.b16 %v479, %v478
      %v495 = vpack.c.b16 %v481, %v480
      %v496 = vpack.c.b16 %v483, %v482
      %v497 = vpack.c.b16 %v485, %v484
      %v498 = vpack.c.b16 %v487, %v486
      %v499 = vpack.c.b16 %v489, %v488
      %v500 = vpack.c.b16 %v491, %v490
      %v501 = vpack.c.b16 %v493, %v492
      %v526 = vunpack.c.l.b16 %v462
      %v527 = vunpack.c.l.b16 %v463
      %v528 = vunpack.c.l.b16 %v464
      %v529 = vunpack.c.l.b16 %v465
      %v530 = vunpack.c.l.b16 %v466
      %v531 = vunpack.c.l.b16 %v467
      %v532 = vunpack.c.l.b16 %v468
      %v533 = vunpack.c.l.b16 %v469
      %v534 = vunpack.c.l.b16 %v470
      %v535 = vunpack.c.l.b16 %v471
      %v536 = vunpack.c.l.b16 %v472
      %v537 = vunpack.c.l.b16 %v473
      %v538 = vunpack.c.l.b16 %v474
      %v539 = vunpack.c.l.b16 %v475
      %v540 = vunpack.c.l.b16 %v476
      %v541 = vunpack.c.l.b16 %v477
      %v542 = vpack.c.b16 %v527, %v526
      %v543 = vpack.c.b16 %v529, %v528
      %v544 = vpack.c.b16 %v531, %v530
      %v545 = vpack.c.b16 %v533, %v532
      %v546 = vpack.c.b16 %v535, %v534
      %v547 = vpack.c.b16 %v537, %v536
      %v548 = vpack.c.b16 %v539, %v538
      %v549 = vpack.c.b16 %v541, %v540
      %558 = vmatprep.subr.bf16.mxu0 0
      %559 = vmatpush1.bf16.msra.mxu0 %v542
      %560 = vmatprep.subr.bf16.mxu0 0
      %561 = vmatpush1.bf16.msra.mxu0 %v543
      %562 = vmatprep.subr.bf16.mxu0 0
      %563 = vmatpush1.bf16.msra.mxu0 %v544
      %564 = vmatprep.subr.bf16.mxu0 0
      %565 = vmatpush1.bf16.msra.mxu0 %v545
      %566 = vmatprep.subr.bf16.mxu0 0
      %567 = vmatpush1.bf16.msra.mxu0 %v546
      %568 = vmatprep.subr.bf16.mxu0 0
      %569 = vmatpush1.bf16.msra.mxu0 %v547
      %570 = vmatprep.subr.bf16.mxu0 0
      %571 = vmatpush1.bf16.msra.mxu0 %v548
      %572 = vmatprep.subr.bf16.mxu0 0
      %573 = vmatpush1.bf16.msra.mxu0 %v549
      %574 = vmatprep.subr.bf16.mxu0 0
      %575 = vmatpush1.bf16.msra.mxu0 0
      %576 = vmatprep.subr.bf16.mxu0 0
      %577 = vmatpush1.bf16.msra.mxu0 0
      %578 = vmatprep.subr.bf16.mxu0 0
      %579 = vmatpush1.bf16.msra.mxu0 0
      %580 = vmatprep.subr.bf16.mxu0 0
      %581 = vmatpush1.bf16.msra.mxu0 0
      %582 = vmatprep.subr.bf16.mxu0 0
      %583 = vmatpush1.bf16.msra.mxu0 0
      %584 = vmatprep.subr.bf16.mxu0 0
      %585 = vmatpush1.bf16.msra.mxu0 0
      %586 = vmatprep.subr.bf16.mxu0 0
      %587 = vmatpush1.bf16.msra.mxu0 0
      %588 = vmatprep.subr.bf16.mxu0 0
      %589 = vmatpush1.bf16.msra.mxu0 0
      %590 = vmatprep.mubr.bf16.mxu0 0
      %591 = vmatmul.mubr.bf16.gmra.mrb[0].mxu0 %v494
      %v592 = vpop.f32.mrb[0].mxu0
      %v593 = vadd.f32 0.0, %v592
      %v594 = vpop.f32.mrb[0].mxu0
      %v595 = vpop.f32.mrb[0].mxu0
      %v596 = vadd.f32 0.0, %v595
      %v597 = vpop.f32.mrb[0].mxu0
      %598 = vmatprep.mubr.bf16.mxu0 0
      %599 = vmatmul.mubr.bf16.gmra.mrb[0].mxu0 %v495
      %v600 = vpop.f32.mrb[0].mxu0
      %v601 = vadd.f32 0.0, %v600
      %v602 = vpop.f32.mrb[0].mxu0
      %v603 = vpop.f32.mrb[0].mxu0
      %v604 = vadd.f32 0.0, %v603
      %v605 = vpop.f32.mrb[0].mxu0
      %606 = vmatprep.mubr.bf16.mxu0 0
      %607 = vmatmul.mubr.bf16.gmra.mrb[0].mxu0 %v496
      %v608 = vpop.f32.mrb[0].mxu0
      %v609 = vadd.f32 0.0, %v608
      %v610 = vpop.f32.mrb[0].mxu0
      %v611 = vpop.f32.mrb[0].mxu0
      %v612 = vadd.f32 0.0, %v611
      %v613 = vpop.f32.mrb[0].mxu0
      %614 = vmatprep.mubr.bf16.mxu0 0
      %615 = vmatmul.mubr.bf16.gmra.mrb[0].mxu0 %v497
      %v616 = vpop.f32.mrb[0].mxu0
      %v617 = vadd.f32 0.0, %v616
      %v618 = vpop.f32.mrb[0].mxu0
      %v619 = vpop.f32.mrb[0].mxu0
      %v620 = vadd.f32 0.0, %v619
      %v621 = vpop.f32.mrb[0].mxu0
      %622 = vmatprep.mubr.bf16.mxu0 0
      %623 = vmatmul.mubr.bf16.gmra.mrb[0].mxu0 %v498
      %v624 = vpop.f32.mrb[0].mxu0
      %v625 = vadd.f32 0.0, %v624
      %v626 = vpop.f32.mrb[0].mxu0
      %v627 = vpop.f32.mrb[0].mxu0
      %v628 = vadd.f32 0.0, %v627
      %v629 = vpop.f32.mrb[0].mxu0
      %630 = vmatprep.mubr.bf16.mxu0 0
      %631 = vmatmul.mubr.bf16.gmra.mrb[0].mxu0 %v499
      %v632 = vpop.f32.mrb[0].mxu0
      %v633 = vadd.f32 0.0, %v632
      %v634 = vpop.f32.mrb[0].mxu0
      %v635 = vpop.f32.mrb[0].mxu0
      %v636 = vadd.f32 0.0, %v635
      %v637 = vpop.f32.mrb[0].mxu0
      %638 = vmatprep.mubr.bf16.mxu0 0
      %639 = vmatmul.mubr.bf16.gmra.mrb[0].mxu0 %v500
      %v640 = vpop.f32.mrb[0].mxu0
      %v641 = vadd.f32 0.0, %v640
      %v642 = vpop.f32.mrb[0].mxu0
      %v643 = vpop.f32.mrb[0].mxu0
      %v644 = vadd.f32 0.0, %v643
      %v645 = vpop.f32.mrb[0].mxu0
      %646 = vmatprep.mubr.bf16.mxu0 0
      %647 = vmatmul.mubr.bf16.gmra.mrb[0].mxu0 %v501
      %v648 = vpop.f32.mrb[0].mxu0
      %v649 = vadd.f32 0.0, %v648
      %v650 = vpop.f32.mrb[0].mxu0
      %v651 = vpop.f32.mrb[0].mxu0
      %v652 = vadd.f32 0.0, %v651
      %v653 = vpop.f32.mrb[0].mxu0
      %654 = vdwg.mxu0
      %v671 = vunpack.c.l.b16 %v220
      %v672 = vunpack.c.l.b16 %v221
      %v673 = vunpack.c.l.b16 %v223
      %v674 = vunpack.c.l.b16 %v224
      %v675 = vunpack.c.l.b16 %v226
      %v676 = vunpack.c.l.b16 %v227
      %v677 = vunpack.c.l.b16 %v229
      %v678 = vunpack.c.l.b16 %v230
      %v679 = vunpack.c.l.b16 %v232
      %v680 = vunpack.c.l.b16 %v233
      %v681 = vunpack.c.l.b16 %v235
      %v682 = vunpack.c.l.b16 %v236
      %v683 = vunpack.c.l.b16 %v238
      %v684 = vunpack.c.l.b16 %v239
      %v685 = vunpack.c.l.b16 %v241
      %v686 = vunpack.c.l.b16 %v242
      %v687 = vpack.c.b16 %v672, %v671
      %v688 = vpack.c.b16 %v674, %v673
      %v689 = vpack.c.b16 %v676, %v675
      %v690 = vpack.c.b16 %v678, %v677
      %v691 = vpack.c.b16 %v680, %v679
      %v692 = vpack.c.b16 %v682, %v681
      %v693 = vpack.c.b16 %v684, %v683
      %v694 = vpack.c.b16 %v686, %v685
      %v719 = vunpack.c.l.b16 %v250
      %v720 = vunpack.c.l.b16 %v251
      %v721 = vunpack.c.l.b16 %v252
      %v722 = vunpack.c.l.b16 %v253
      %v723 = vunpack.c.l.b16 %v254
      %v724 = vunpack.c.l.b16 %v255
      %v725 = vunpack.c.l.b16 %v256
      %v726 = vunpack.c.l.b16 %v257
      %v727 = vunpack.c.l.b16 %v258
      %v728 = vunpack.c.l.b16 %v259
      %v729 = vunpack.c.l.b16 %v260
      %v730 = vunpack.c.l.b16 %v261
      %v731 = vunpack.c.l.b16 %v262
      %v732 = vunpack.c.l.b16 %v263
      %v733 = vunpack.c.l.b16 %v264
      %v734 = vunpack.c.l.b16 %v265
      %v735 = vpack.c.b16 %v720, %v719
      %v736 = vpack.c.b16 %v722, %v721
      %v737 = vpack.c.b16 %v724, %v723
      %v738 = vpack.c.b16 %v726, %v725
      %v739 = vpack.c.b16 %v728, %v727
      %v740 = vpack.c.b16 %v730, %v729
      %v741 = vpack.c.b16 %v732, %v731
      %v742 = vpack.c.b16 %v734, %v733
      %751 = vmatprep.subr.bf16.mxu0 0
      %752 = vmatpush1.bf16.msra.mxu0 %v735
      %753 = vmatprep.subr.bf16.mxu0 0
      %754 = vmatpush1.bf16.msra.mxu0 %v736
      %755 = vmatprep.subr.bf16.mxu0 0
      %756 = vmatpush1.bf16.msra.mxu0 %v737
      %757 = vmatprep.subr.bf16.mxu0 0
      %758 = vmatpush1.bf16.msra.mxu0 %v738
      %759 = vmatprep.subr.bf16.mxu0 0
      %760 = vmatpush1.bf16.msra.mxu0 %v739
      %761 = vmatprep.subr.bf16.mxu0 0
      %762 = vmatpush1.bf16.msra.mxu0 %v740
      %763 = vmatprep.subr.bf16.mxu0 0
      %764 = vmatpush1.bf16.msra.mxu0 %v741
      %765 = vmatprep.subr.bf16.mxu0 0
      %766 = vmatpush1.bf16.msra.mxu0 %v742
      %767 = vmatprep.subr.bf16.mxu0 0
      %768 = vmatpush1.bf16.msra.mxu0 0
      %769 = vmatprep.subr.bf16.mxu0 0
      %770 = vmatpush1.bf16.msra.mxu0 0
      %771 = vmatprep.subr.bf16.mxu0 0
      %772 = vmatpush1.bf16.msra.mxu0 0
      %773 = vmatprep.subr.bf16.mxu0 0
      %774 = vmatpush1.bf16.msra.mxu0 0
      %775 = vmatprep.subr.bf16.mxu0 0
      %776 = vmatpush1.bf16.msra.mxu0 0
      %777 = vmatprep.subr.bf16.mxu0 0
      %778 = vmatpush1.bf16.msra.mxu0 0
      %779 = vmatprep.subr.bf16.mxu0 0
      %780 = vmatpush1.bf16.msra.mxu0 0
      %781 = vmatprep.subr.bf16.mxu0 0
      %782 = vmatpush1.bf16.msra.mxu0 0
      %783 = vmatprep.mubr.bf16.mxu0 0
      %784 = vmatmul.mubr.bf16.gmra.mrb[0].mxu0 %v687
      %v785 = vpop.f32.mrb[0].mxu0
      %v786 = vadd.f32 %v593, %v785
      %v787 = vpop.f32.mrb[0].mxu0
      %v788 = vpop.f32.mrb[0].mxu0
      %v789 = vadd.f32 %v596, %v788
      %v790 = vpop.f32.mrb[0].mxu0
      %791 = vmatprep.mubr.bf16.mxu0 0
      %792 = vmatmul.mubr.bf16.gmra.mrb[0].mxu0 %v688
      %v793 = vpop.f32.mrb[0].mxu0
      %v794 = vadd.f32 %v601, %v793
      %v795 = vpop.f32.mrb[0].mxu0
      %v796 = vpop.f32.mrb[0].mxu0
      %v797 = vadd.f32 %v604, %v796
      %v798 = vpop.f32.mrb[0].mxu0
      %799 = vmatprep.mubr.bf16.mxu0 0
      %800 = vmatmul.mubr.bf16.gmra.mrb[0].mxu0 %v689
      %v801 = vpop.f32.mrb[0].mxu0
      %v802 = vadd.f32 %v609, %v801
      %v803 = vpop.f32.mrb[0].mxu0
      %v804 = vpop.f32.mrb[0].mxu0
      %v805 = vadd.f32 %v612, %v804
      %v806 = vpop.f32.mrb[0].mxu0
      %807 = vmatprep.mubr.bf16.mxu0 0
      %808 = vmatmul.mubr.bf16.gmra.mrb[0].mxu0 %v690
      %v809 = vpop.f32.mrb[0].mxu0
      %v810 = vadd.f32 %v617, %v809
      %v811 = vpop.f32.mrb[0].mxu0
      %v812 = vpop.f32.mrb[0].mxu0
      %v813 = vadd.f32 %v620, %v812
      %v814 = vpop.f32.mrb[0].mxu0
      %815 = vmatprep.mubr.bf16.mxu0 0
      %816 = vmatmul.mubr.bf16.gmra.mrb[0].mxu0 %v691
      %v817 = vpop.f32.mrb[0].mxu0
      %v818 = vadd.f32 %v625, %v817
      %v819 = vpop.f32.mrb[0].mxu0
      %v820 = vpop.f32.mrb[0].mxu0
      %v821 = vadd.f32 %v628, %v820
      %v822 = vpop.f32.mrb[0].mxu0
      %823 = vmatprep.mubr.bf16.mxu0 0
      %824 = vmatmul.mubr.bf16.gmra.mrb[0].mxu0 %v692
      %v825 = vpop.f32.mrb[0].mxu0
      %v826 = vadd.f32 %v633, %v825
      %v827 = vpop.f32.mrb[0].mxu0
      %v828 = vpop.f32.mrb[0].mxu0
      %v829 = vadd.f32 %v636, %v828
      %v830 = vpop.f32.mrb[0].mxu0
      %831 = vmatprep.mubr.bf16.mxu0 0
      %832 = vmatmul.mubr.bf16.gmra.mrb[0].mxu0 %v693
      %v833 = vpop.f32.mrb[0].mxu0
      %v834 = vadd.f32 %v641, %v833
      %v835 = vpop.f32.mrb[0].mxu0
      %v836 = vpop.f32.mrb[0].mxu0
      %v837 = vadd.f32 %v644, %v836
      %v838 = vpop.f32.mrb[0].mxu0
      %839 = vmatprep.mubr.bf16.mxu0 0
      %840 = vmatmul.mubr.bf16.gmra.mrb[0].mxu0 %v694
      %v841 = vpop.f32.mrb[0].mxu0
      %v842 = vadd.f32 %v649, %v841
      %v843 = vpop.f32.mrb[0].mxu0
      %v844 = vpop.f32.mrb[0].mxu0
      %v845 = vadd.f32 %v652, %v844
      %v846 = vpop.f32.mrb[0].mxu0
      %847 = vdwg.mxu0
      %vm856 = vcmask 1042432
      %vm857 = vcmask 1046532
      %vm858 = vmor %vm856, %vm857
      %v859 = vrot.slane %v220, 5
      %v860 = vrot.slane %v859, 4
      %v861 = vrot.slane %v221, 5
      %v862 = vsel %vm858, %v860, %v861
      %v863 = vrot.slane %v861, 4
      %v864 = vrot.slane %v222, 5
      %v865 = vsel %vm858, %v863, %v864
      %v866 = vrot.slane %v223, 5
      %v867 = vrot.slane %v866, 4
      %v868 = vrot.slane %v224, 5
      %v869 = vsel %vm858, %v867, %v868
      %v870 = vrot.slane %v868, 4
      %v871 = vrot.slane %v225, 5
      %v872 = vsel %vm858, %v870, %v871
      %v873 = vrot.slane %v226, 5
      %v874 = vrot.slane %v873, 4
      %v875 = vrot.slane %v227, 5
      %v876 = vsel %vm858, %v874, %v875
      %v877 = vrot.slane %v875, 4
      %v878 = vrot.slane %v228, 5
      %v879 = vsel %vm858, %v877, %v878
      %v880 = vrot.slane %v229, 5
      %v881 = vrot.slane %v880, 4
      %v882 = vrot.slane %v230, 5
      %v883 = vsel %vm858, %v881, %v882
      %v884 = vrot.slane %v882, 4
      %v885 = vrot.slane %v231, 5
      %v886 = vsel %vm858, %v884, %v885
      %v887 = vrot.slane %v232, 5
      %v888 = vrot.slane %v887, 4
      %v889 = vrot.slane %v233, 5
      %v890 = vsel %vm858, %v888, %v889
      %v891 = vrot.slane %v889, 4
      %v892 = vrot.slane %v234, 5
      %v893 = vsel %vm858, %v891, %v892
      %v894 = vrot.slane %v235, 5
      %v895 = vrot.slane %v894, 4
      %v896 = vrot.slane %v236, 5
      %v897 = vsel %vm858, %v895, %v896
      %v898 = vrot.slane %v896, 4
      %v899 = vrot.slane %v237, 5
      %v900 = vsel %vm858, %v898, %v899
      %v901 = vrot.slane %v238, 5
      %v902 = vrot.slane %v901, 4
      %v903 = vrot.slane %v239, 5
      %v904 = vsel %vm858, %v902, %v903
      %v905 = vrot.slane %v903, 4
      %v906 = vrot.slane %v240, 5
      %v907 = vsel %vm858, %v905, %v906
      %v908 = vrot.slane %v241, 5
      %v909 = vrot.slane %v908, 4
      %v910 = vrot.slane %v242, 5
      %v911 = vsel %vm858, %v909, %v910
      %v912 = vrot.slane %v910, 4
      %v913 = vrot.slane %v243, 5
      %v914 = vsel %vm858, %v912, %v913
      %s915 = scalar_lea.vmem %s1, 128
      %v916 = vld [vmem:[%s915] sm:$0xf]
      %v917 = vld [vmem:[%s915 + $0x4] sm:$0xf]
      %v918 = vld [vmem:[%s915 + $0x8] sm:$0xf]
      %v919 = vld [vmem:[%s915 + $0xc] sm:$0xf]
      %v920 = vld [vmem:[%s915 + $0x10] sm:$0xf]
      %v921 = vld [vmem:[%s915 + $0x14] sm:$0xf]
      %v922 = vld [vmem:[%s915 + $0x18] sm:$0xf]
      %v923 = vld [vmem:[%s915 + $0x1c] sm:$0xf]
      %v924 = vld [vmem:[%s915 + $0x20] sm:$0xf]
      %v925 = vld [vmem:[%s915 + $0x24] sm:$0xf]
      %v926 = vld [vmem:[%s915 + $0x28] sm:$0xf]
      %v927 = vld [vmem:[%s915 + $0x2c] sm:$0xf]
      %v928 = vld [vmem:[%s915 + $0x30] sm:$0xf]
      %v929 = vld [vmem:[%s915 + $0x34] sm:$0xf]
      %v930 = vld [vmem:[%s915 + $0x38] sm:$0xf]
      %v931 = vld [vmem:[%s915 + $0x3c] sm:$0xf]
      %v932 = vunpack.c.l.b16 %v862
      %v933 = vunpack.c.l.b16 %v865
      %v934 = vunpack.c.l.b16 %v869
      %v935 = vunpack.c.l.b16 %v872
      %v936 = vunpack.c.l.b16 %v876
      %v937 = vunpack.c.l.b16 %v879
      %v938 = vunpack.c.l.b16 %v883
      %v939 = vunpack.c.l.b16 %v886
      %v940 = vunpack.c.l.b16 %v890
      %v941 = vunpack.c.l.b16 %v893
      %v942 = vunpack.c.l.b16 %v897
      %v943 = vunpack.c.l.b16 %v900
      %v944 = vunpack.c.l.b16 %v904
      %v945 = vunpack.c.l.b16 %v907
      %v946 = vunpack.c.l.b16 %v911
      %v947 = vunpack.c.l.b16 %v914
      %v948 = vpack.c.b16 %v933, %v932
      %v949 = vpack.c.b16 %v935, %v934
      %v950 = vpack.c.b16 %v937, %v936
      %v951 = vpack.c.b16 %v939, %v938
      %v952 = vpack.c.b16 %v941, %v940
      %v953 = vpack.c.b16 %v943, %v942
      %v954 = vpack.c.b16 %v945, %v944
      %v955 = vpack.c.b16 %v947, %v946
      %v980 = vunpack.c.l.b16 %v916
      %v981 = vunpack.c.l.b16 %v917
      %v982 = vunpack.c.l.b16 %v918
      %v983 = vunpack.c.l.b16 %v919
      %v984 = vunpack.c.l.b16 %v920
      %v985 = vunpack.c.l.b16 %v921
      %v986 = vunpack.c.l.b16 %v922
      %v987 = vunpack.c.l.b16 %v923
      %v988 = vunpack.c.l.b16 %v924
      %v989 = vunpack.c.l.b16 %v925
      %v990 = vunpack.c.l.b16 %v926
      %v991 = vunpack.c.l.b16 %v927
      %v992 = vunpack.c.l.b16 %v928
      %v993 = vunpack.c.l.b16 %v929
      %v994 = vunpack.c.l.b16 %v930
      %v995 = vunpack.c.l.b16 %v931
      %v996 = vpack.c.b16 %v981, %v980
      %v997 = vpack.c.b16 %v983, %v982
      %v998 = vpack.c.b16 %v985, %v984
      %v999 = vpack.c.b16 %v987, %v986
      %v1000 = vpack.c.b16 %v989, %v988
      %v1001 = vpack.c.b16 %v991, %v990
      %v1002 = vpack.c.b16 %v993, %v992
      %v1003 = vpack.c.b16 %v995, %v994
      %1012 = vmatprep.subr.bf16.mxu0 0
      %1013 = vmatpush1.bf16.msra.mxu0 %v996
      %1014 = vmatprep.subr.bf16.mxu0 0
      %1015 = vmatpush1.bf16.msra.mxu0 %v997
      %1016 = vmatprep.subr.bf16.mxu0 0
      %1017 = vmatpush1.bf16.msra.mxu0 %v998
      %1018 = vmatprep.subr.bf16.mxu0 0
      %1019 = vmatpush1.bf16.msra.mxu0 %v999
      %1020 = vmatprep.subr.bf16.mxu0 0
      %1021 = vmatpush1.bf16.msra.mxu0 %v1000
      %1022 = vmatprep.subr.bf16.mxu0 0
      %1023 = vmatpush1.bf16.msra.mxu0 %v1001
      %1024 = vmatprep.subr.bf16.mxu0 0
      %1025 = vmatpush1.bf16.msra.mxu0 %v1002
      %1026 = vmatprep.subr.bf16.mxu0 0
      %1027 = vmatpush1.bf16.msra.mxu0 %v1003
      %1028 = vmatprep.subr.bf16.mxu0 0
      %1029 = vmatpush1.bf16.msra.mxu0 0
      %1030 = vmatprep.subr.bf16.mxu0 0
      %1031 = vmatpush1.bf16.msra.mxu0 0
      %1032 = vmatprep.subr.bf16.mxu0 0
      %1033 = vmatpush1.bf16.msra.mxu0 0
      %1034 = vmatprep.subr.bf16.mxu0 0
      %1035 = vmatpush1.bf16.msra.mxu0 0
      %1036 = vmatprep.subr.bf16.mxu0 0
      %1037 = vmatpush1.bf16.msra.mxu0 0
      %1038 = vmatprep.subr.bf16.mxu0 0
      %1039 = vmatpush1.bf16.msra.mxu0 0
      %1040 = vmatprep.subr.bf16.mxu0 0
      %1041 = vmatpush1.bf16.msra.mxu0 0
      %1042 = vmatprep.subr.bf16.mxu0 0
      %1043 = vmatpush1.bf16.msra.mxu0 0
      %1044 = vmatprep.mubr.bf16.mxu0 0
      %1045 = vmatmul.mubr.bf16.gmra.mrb[0].mxu0 %v948
      %v1046 = vpop.f32.mrb[0].mxu0
      %v1047 = vadd.f32 0.0, %v1046
      %v1048 = vpop.f32.mrb[0].mxu0
      %v1049 = vpop.f32.mrb[0].mxu0
      %v1050 = vadd.f32 0.0, %v1049
      %v1051 = vpop.f32.mrb[0].mxu0
      %1052 = vmatprep.mubr.bf16.mxu0 0
      %1053 = vmatmul.mubr.bf16.gmra.mrb[0].mxu0 %v949
      %v1054 = vpop.f32.mrb[0].mxu0
      %v1055 = vadd.f32 0.0, %v1054
      %v1056 = vpop.f32.mrb[0].mxu0
      %v1057 = vpop.f32.mrb[0].mxu0
      %v1058 = vadd.f32 0.0, %v1057
      %v1059 = vpop.f32.mrb[0].mxu0
      %1060 = vmatprep.mubr.bf16.mxu0 0
      %1061 = vmatmul.mubr.bf16.gmra.mrb[0].mxu0 %v950
      %v1062 = vpop.f32.mrb[0].mxu0
      %v1063 = vadd.f32 0.0, %v1062
      %v1064 = vpop.f32.mrb[0].mxu0
      %v1065 = vpop.f32.mrb[0].mxu0
      %v1066 = vadd.f32 0.0, %v1065
      %v1067 = vpop.f32.mrb[0].mxu0
      %1068 = vmatprep.mubr.bf16.mxu0 0
      %1069 = vmatmul.mubr.bf16.gmra.mrb[0].mxu0 %v951
      %v1070 = vpop.f32.mrb[0].mxu0
      %v1071 = vadd.f32 0.0, %v1070
      %v1072 = vpop.f32.mrb[0].mxu0
      %v1073 = vpop.f32.mrb[0].mxu0
      %v1074 = vadd.f32 0.0, %v1073
      %v1075 = vpop.f32.mrb[0].mxu0
      %1076 = vmatprep.mubr.bf16.mxu0 0
      %1077 = vmatmul.mubr.bf16.gmra.mrb[0].mxu0 %v952
      %v1078 = vpop.f32.mrb[0].mxu0
      %v1079 = vadd.f32 0.0, %v1078
      %v1080 = vpop.f32.mrb[0].mxu0
      %v1081 = vpop.f32.mrb[0].mxu0
      %v1082 = vadd.f32 0.0, %v1081
      %v1083 = vpop.f32.mrb[0].mxu0
      %1084 = vmatprep.mubr.bf16.mxu0 0
      %1085 = vmatmul.mubr.bf16.gmra.mrb[0].mxu0 %v953
      %v1086 = vpop.f32.mrb[0].mxu0
      %v1087 = vadd.f32 0.0, %v1086
      %v1088 = vpop.f32.mrb[0].mxu0
      %v1089 = vpop.f32.mrb[0].mxu0
      %v1090 = vadd.f32 0.0, %v1089
      %v1091 = vpop.f32.mrb[0].mxu0
      %1092 = vmatprep.mubr.bf16.mxu0 0
      %1093 = vmatmul.mubr.bf16.gmra.mrb[0].mxu0 %v954
      %v1094 = vpop.f32.mrb[0].mxu0
      %v1095 = vadd.f32 0.0, %v1094
      %v1096 = vpop.f32.mrb[0].mxu0
      %v1097 = vpop.f32.mrb[0].mxu0
      %v1098 = vadd.f32 0.0, %v1097
      %v1099 = vpop.f32.mrb[0].mxu0
      %1100 = vmatprep.mubr.bf16.mxu0 0
      %1101 = vmatmul.mubr.bf16.gmra.mrb[0].mxu0 %v955
      %v1102 = vpop.f32.mrb[0].mxu0
      %v1103 = vadd.f32 0.0, %v1102
      %v1104 = vpop.f32.mrb[0].mxu0
      %v1105 = vpop.f32.mrb[0].mxu0
      %v1106 = vadd.f32 0.0, %v1105
      %v1107 = vpop.f32.mrb[0].mxu0
      %1108 = vdwg.mxu0
      %v1109 = vadd.f32 %v786, %v1047
      %v1110 = vadd.f32 %v789, %v1050
      %v1111 = vadd.f32 %v794, %v1055
      %v1112 = vadd.f32 %v797, %v1058
      %v1113 = vadd.f32 %v802, %v1063
      %v1114 = vadd.f32 %v805, %v1066
      %v1115 = vadd.f32 %v810, %v1071
      %v1116 = vadd.f32 %v813, %v1074
      %v1117 = vadd.f32 %v818, %v1079
      %v1118 = vadd.f32 %v821, %v1082
      %v1119 = vadd.f32 %v826, %v1087
      %v1120 = vadd.f32 %v829, %v1090
      %v1121 = vadd.f32 %v834, %v1095
      %v1122 = vadd.f32 %v837, %v1098
      %v1123 = vadd.f32 %v842, %v1103
      %v1124 = vadd.f32 %v845, %v1106
      %s1125 = scalar_lea.vmem %s1, 192
      %v1126 = vld [vmem:[%s1125] sm:$0xf]
      %v1127 = vld [vmem:[%s1125 + $0x4] sm:$0xf]
      %v1128 = vld [vmem:[%s1125 + $0x8] sm:$0xf]
      %v1129 = vld [vmem:[%s1125 + $0xc] sm:$0xf]
      %v1130 = vld [vmem:[%s1125 + $0x10] sm:$0xf]
      %v1131 = vld [vmem:[%s1125 + $0x14] sm:$0xf]
      %v1132 = vld [vmem:[%s1125 + $0x18] sm:$0xf]
      %v1133 = vld [vmem:[%s1125 + $0x1c] sm:$0xf]
      %v1134 = vld [vmem:[%s1125 + $0x20] sm:$0xf]
      %v1135 = vld [vmem:[%s1125 + $0x24] sm:$0xf]
      %v1136 = vld [vmem:[%s1125 + $0x28] sm:$0xf]
      %v1137 = vld [vmem:[%s1125 + $0x2c] sm:$0xf]
      %v1138 = vld [vmem:[%s1125 + $0x30] sm:$0xf]
      %v1139 = vld [vmem:[%s1125 + $0x34] sm:$0xf]
      %v1140 = vld [vmem:[%s1125 + $0x38] sm:$0xf]
      %v1141 = vld [vmem:[%s1125 + $0x3c] sm:$0xf]
      %v1144 = vunpack.c.l.b16 %v244
      %v1145 = vunpack.c.l.b16 %v245
      %v1146 = vpack.c.b16 %v1145, %v1144
      %v1164 = vunpack.c.l.b16 %v1126
      %v1165 = vunpack.c.l.b16 %v1127
      %v1166 = vunpack.c.l.b16 %v1128
      %v1167 = vunpack.c.l.b16 %v1129
      %v1168 = vunpack.c.l.b16 %v1130
      %v1169 = vunpack.c.l.b16 %v1131
      %v1170 = vunpack.c.l.b16 %v1132
      %v1171 = vunpack.c.l.b16 %v1133
      %v1172 = vunpack.c.l.b16 %v1134
      %v1173 = vunpack.c.l.b16 %v1135
      %v1174 = vunpack.c.l.b16 %v1136
      %v1175 = vunpack.c.l.b16 %v1137
      %v1176 = vunpack.c.l.b16 %v1138
      %v1177 = vunpack.c.l.b16 %v1139
      %v1178 = vunpack.c.l.b16 %v1140
      %v1179 = vunpack.c.l.b16 %v1141
      %v1180 = vpack.c.b16 %v1165, %v1164
      %v1181 = vpack.c.b16 %v1167, %v1166
      %v1182 = vpack.c.b16 %v1169, %v1168
      %v1183 = vpack.c.b16 %v1171, %v1170
      %v1184 = vpack.c.b16 %v1173, %v1172
      %v1185 = vpack.c.b16 %v1175, %v1174
      %v1186 = vpack.c.b16 %v1177, %v1176
      %v1187 = vpack.c.b16 %v1179, %v1178
      %1196 = vmatprep.subr.bf16.mxu0 0
      %1197 = vmatpush1.bf16.msra.mxu0 %v1180
      %1198 = vmatprep.subr.bf16.mxu0 0
      %1199 = vmatpush1.bf16.msra.mxu0 %v1181
      %1200 = vmatprep.subr.bf16.mxu0 0
      %1201 = vmatpush1.bf16.msra.mxu0 %v1182
      %1202 = vmatprep.subr.bf16.mxu0 0
      %1203 = vmatpush1.bf16.msra.mxu0 %v1183
      %1204 = vmatprep.subr.bf16.mxu0 0
      %1205 = vmatpush1.bf16.msra.mxu0 %v1184
      %1206 = vmatprep.subr.bf16.mxu0 0
      %1207 = vmatpush1.bf16.msra.mxu0 %v1185
      %1208 = vmatprep.subr.bf16.mxu0 0
      %1209 = vmatpush1.bf16.msra.mxu0 %v1186
      %1210 = vmatprep.subr.bf16.mxu0 0
      %1211 = vmatpush1.bf16.msra.mxu0 %v1187
      %1212 = vmatprep.subr.bf16.mxu0 0
      %1213 = vmatpush1.bf16.msra.mxu0 0
      %1214 = vmatprep.subr.bf16.mxu0 0
      %1215 = vmatpush1.bf16.msra.mxu0 0
      %1216 = vmatprep.subr.bf16.mxu0 0
      %1217 = vmatpush1.bf16.msra.mxu0 0
      %1218 = vmatprep.subr.bf16.mxu0 0
      %1219 = vmatpush1.bf16.msra.mxu0 0
      %1220 = vmatprep.subr.bf16.mxu0 0
      %1221 = vmatpush1.bf16.msra.mxu0 0
      %1222 = vmatprep.subr.bf16.mxu0 0
      %1223 = vmatpush1.bf16.msra.mxu0 0
      %1224 = vmatprep.subr.bf16.mxu0 0
      %1225 = vmatpush1.bf16.msra.mxu0 0
      %1226 = vmatprep.subr.bf16.mxu0 0
      %1227 = vmatpush1.bf16.msra.mxu0 0
      %1228 = vmatprep.mubr.bf16.mxu0 0
      %1229 = vmatmul.mubr.bf16.gmra.mrb[0].mxu0 %v688
      %v1230 = vpop.f32.mrb[0].mxu0
      %v1231 = vadd.f32 0.0, %v1230
      %v1232 = vpop.f32.mrb[0].mxu0
      %v1233 = vpop.f32.mrb[0].mxu0
      %v1234 = vadd.f32 0.0, %v1233
      %v1235 = vpop.f32.mrb[0].mxu0
      %1236 = vmatprep.mubr.bf16.mxu0 0
      %1237 = vmatmul.mubr.bf16.gmra.mrb[0].mxu0 %v689
      %v1238 = vpop.f32.mrb[0].mxu0
      %v1239 = vadd.f32 0.0, %v1238
      %v1240 = vpop.f32.mrb[0].mxu0
      %v1241 = vpop.f32.mrb[0].mxu0
      %v1242 = vadd.f32 0.0, %v1241
      %v1243 = vpop.f32.mrb[0].mxu0
      %1244 = vmatprep.mubr.bf16.mxu0 0
      %1245 = vmatmul.mubr.bf16.gmra.mrb[0].mxu0 %v690
      %v1246 = vpop.f32.mrb[0].mxu0
      %v1247 = vadd.f32 0.0, %v1246
      %v1248 = vpop.f32.mrb[0].mxu0
      %v1249 = vpop.f32.mrb[0].mxu0
      %v1250 = vadd.f32 0.0, %v1249
      %v1251 = vpop.f32.mrb[0].mxu0
      %1252 = vmatprep.mubr.bf16.mxu0 0
      %1253 = vmatmul.mubr.bf16.gmra.mrb[0].mxu0 %v691
      %v1254 = vpop.f32.mrb[0].mxu0
      %v1255 = vadd.f32 0.0, %v1254
      %v1256 = vpop.f32.mrb[0].mxu0
      %v1257 = vpop.f32.mrb[0].mxu0
      %v1258 = vadd.f32 0.0, %v1257
      %v1259 = vpop.f32.mrb[0].mxu0
      %1260 = vmatprep.mubr.bf16.mxu0 0
      %1261 = vmatmul.mubr.bf16.gmra.mrb[0].mxu0 %v692
      %v1262 = vpop.f32.mrb[0].mxu0
      %v1263 = vadd.f32 0.0, %v1262
      %v1264 = vpop.f32.mrb[0].mxu0
      %v1265 = vpop.f32.mrb[0].mxu0
      %v1266 = vadd.f32 0.0, %v1265
      %v1267 = vpop.f32.mrb[0].mxu0
      %1268 = vmatprep.mubr.bf16.mxu0 0
      %1269 = vmatmul.mubr.bf16.gmra.mrb[0].mxu0 %v693
      %v1270 = vpop.f32.mrb[0].mxu0
      %v1271 = vadd.f32 0.0, %v1270
      %v1272 = vpop.f32.mrb[0].mxu0
      %v1273 = vpop.f32.mrb[0].mxu0
      %v1274 = vadd.f32 0.0, %v1273
      %v1275 = vpop.f32.mrb[0].mxu0
      %1276 = vmatprep.mubr.bf16.mxu0 0
      %1277 = vmatmul.mubr.bf16.gmra.mrb[0].mxu0 %v694
      %v1278 = vpop.f32.mrb[0].mxu0
      %v1279 = vadd.f32 0.0, %v1278
      %v1280 = vpop.f32.mrb[0].mxu0
      %v1281 = vpop.f32.mrb[0].mxu0
      %v1282 = vadd.f32 0.0, %v1281
      %v1283 = vpop.f32.mrb[0].mxu0
      %1284 = vmatprep.mubr.bf16.mxu0 0
      %1285 = vmatmul.mubr.bf16.gmra.mrb[0].mxu0 %v1146
      %v1286 = vpop.f32.mrb[0].mxu0
      %v1287 = vadd.f32 0.0, %v1286
      %v1288 = vpop.f32.mrb[0].mxu0
      %v1289 = vpop.f32.mrb[0].mxu0
      %v1290 = vadd.f32 0.0, %v1289
      %v1291 = vpop.f32.mrb[0].mxu0
      %1292 = vdwg.mxu0
      %v1293 = vadd.f32 %v1109, %v1231
      %v1294 = vadd.f32 %v1110, %v1234
      %v1295 = vadd.f32 %v1111, %v1239
      %v1296 = vadd.f32 %v1112, %v1242
      %v1297 = vadd.f32 %v1113, %v1247
      %v1298 = vadd.f32 %v1114, %v1250
      %v1299 = vadd.f32 %v1115, %v1255
      %v1300 = vadd.f32 %v1116, %v1258
      %v1301 = vadd.f32 %v1117, %v1263
      %v1302 = vadd.f32 %v1118, %v1266
      %v1303 = vadd.f32 %v1119, %v1271
      %v1304 = vadd.f32 %v1120, %v1274
      %v1305 = vadd.f32 %v1121, %v1279
      %v1306 = vadd.f32 %v1122, %v1282
      %v1307 = vadd.f32 %v1123, %v1287
      %v1308 = vadd.f32 %v1124, %v1290
      %v1310 = vshrl.u32 %v244, 16
      %v1312 = vrot.slane %v1310, 4
      %v1313 = vshll.u32 %v244, 16
      %v1315 = vrot.slane %v1313, 5
      %v1316 = vor.u32 %v1312, %v1315
      %v1317 = vrot.slane %v1316, 4
      %v1319 = vshll.u32 %v245, 16
      %v1321 = vrot.slane %v1319, 5
      %v1322 = vsel %vm268, %v1317, %v1321
      %v1323 = vshrl.u32 %v245, 16
      %v1325 = vrot.slane %v1323, 4
      %v1326 = vor.u32 %v1325, %v1321
      %v1327 = vrot.slane %v1326, 4
      %v1329 = vshll.u32 %v246, 16
      %v1331 = vrot.slane %v1329, 5
      %v1332 = vsel %vm268, %v1327, %v1331
      %s1333 = scalar_lea.vmem %s1, 256
      %v1334 = vld [vmem:[%s1333] sm:$0xf]
      %v1335 = vld [vmem:[%s1333 + $0x4] sm:$0xf]
      %v1336 = vld [vmem:[%s1333 + $0x8] sm:$0xf]
      %v1337 = vld [vmem:[%s1333 + $0xc] sm:$0xf]
      %v1338 = vld [vmem:[%s1333 + $0x10] sm:$0xf]
      %v1339 = vld [vmem:[%s1333 + $0x14] sm:$0xf]
      %v1340 = vld [vmem:[%s1333 + $0x18] sm:$0xf]
      %v1341 = vld [vmem:[%s1333 + $0x1c] sm:$0xf]
      %v1342 = vld [vmem:[%s1333 + $0x20] sm:$0xf]
      %v1343 = vld [vmem:[%s1333 + $0x24] sm:$0xf]
      %v1344 = vld [vmem:[%s1333 + $0x28] sm:$0xf]
      %v1345 = vld [vmem:[%s1333 + $0x2c] sm:$0xf]
      %v1346 = vld [vmem:[%s1333 + $0x30] sm:$0xf]
      %v1347 = vld [vmem:[%s1333 + $0x34] sm:$0xf]
      %v1348 = vld [vmem:[%s1333 + $0x38] sm:$0xf]
      %v1349 = vld [vmem:[%s1333 + $0x3c] sm:$0xf]
      %v1350 = vunpack.c.l.b16 %v1322
      %v1351 = vunpack.c.l.b16 %v1332
      %v1352 = vpack.c.b16 %v1351, %v1350
      %v1370 = vunpack.c.l.b16 %v1334
      %v1371 = vunpack.c.l.b16 %v1335
      %v1372 = vunpack.c.l.b16 %v1336
      %v1373 = vunpack.c.l.b16 %v1337
      %v1374 = vunpack.c.l.b16 %v1338
      %v1375 = vunpack.c.l.b16 %v1339
      %v1376 = vunpack.c.l.b16 %v1340
      %v1377 = vunpack.c.l.b16 %v1341
      %v1378 = vunpack.c.l.b16 %v1342
      %v1379 = vunpack.c.l.b16 %v1343
      %v1380 = vunpack.c.l.b16 %v1344
      %v1381 = vunpack.c.l.b16 %v1345
      %v1382 = vunpack.c.l.b16 %v1346
      %v1383 = vunpack.c.l.b16 %v1347
      %v1384 = vunpack.c.l.b16 %v1348
      %v1385 = vunpack.c.l.b16 %v1349
      %v1386 = vpack.c.b16 %v1371, %v1370
      %v1387 = vpack.c.b16 %v1373, %v1372
      %v1388 = vpack.c.b16 %v1375, %v1374
      %v1389 = vpack.c.b16 %v1377, %v1376
      %v1390 = vpack.c.b16 %v1379, %v1378
      %v1391 = vpack.c.b16 %v1381, %v1380
      %v1392 = vpack.c.b16 %v1383, %v1382
      %v1393 = vpack.c.b16 %v1385, %v1384
      %1402 = vmatprep.subr.bf16.mxu0 0
      %1403 = vmatpush1.bf16.msra.mxu0 %v1386
      %1404 = vmatprep.subr.bf16.mxu0 0
      %1405 = vmatpush1.bf16.msra.mxu0 %v1387
      %1406 = vmatprep.subr.bf16.mxu0 0
      %1407 = vmatpush1.bf16.msra.mxu0 %v1388
      %1408 = vmatprep.subr.bf16.mxu0 0
      %1409 = vmatpush1.bf16.msra.mxu0 %v1389
      %1410 = vmatprep.subr.bf16.mxu0 0
      %1411 = vmatpush1.bf16.msra.mxu0 %v1390
      %1412 = vmatprep.subr.bf16.mxu0 0
      %1413 = vmatpush1.bf16.msra.mxu0 %v1391
      %1414 = vmatprep.subr.bf16.mxu0 0
      %1415 = vmatpush1.bf16.msra.mxu0 %v1392
      %1416 = vmatprep.subr.bf16.mxu0 0
      %1417 = vmatpush1.bf16.msra.mxu0 %v1393
      %1418 = vmatprep.subr.bf16.mxu0 0
      %1419 = vmatpush1.bf16.msra.mxu0 0
      %1420 = vmatprep.subr.bf16.mxu0 0
      %1421 = vmatpush1.bf16.msra.mxu0 0
      %1422 = vmatprep.subr.bf16.mxu0 0
      %1423 = vmatpush1.bf16.msra.mxu0 0
      %1424 = vmatprep.subr.bf16.mxu0 0
      %1425 = vmatpush1.bf16.msra.mxu0 0
      %1426 = vmatprep.subr.bf16.mxu0 0
      %1427 = vmatpush1.bf16.msra.mxu0 0
      %1428 = vmatprep.subr.bf16.mxu0 0
      %1429 = vmatpush1.bf16.msra.mxu0 0
      %1430 = vmatprep.subr.bf16.mxu0 0
      %1431 = vmatpush1.bf16.msra.mxu0 0
      %1432 = vmatprep.subr.bf16.mxu0 0
      %1433 = vmatpush1.bf16.msra.mxu0 0
      %1434 = vmatprep.mubr.bf16.mxu0 0
      %1435 = vmatmul.mubr.bf16.gmra.mrb[0].mxu0 %v495
      %v1436 = vpop.f32.mrb[0].mxu0
      %v1437 = vadd.f32 0.0, %v1436
      %v1438 = vpop.f32.mrb[0].mxu0
      %v1439 = vpop.f32.mrb[0].mxu0
      %v1440 = vadd.f32 0.0, %v1439
      %v1441 = vpop.f32.mrb[0].mxu0
      %1442 = vmatprep.mubr.bf16.mxu0 0
      %1443 = vmatmul.mubr.bf16.gmra.mrb[0].mxu0 %v496
      %v1444 = vpop.f32.mrb[0].mxu0
      %v1445 = vadd.f32 0.0, %v1444
      %v1446 = vpop.f32.mrb[0].mxu0
      %v1447 = vpop.f32.mrb[0].mxu0
      %v1448 = vadd.f32 0.0, %v1447
      %v1449 = vpop.f32.mrb[0].mxu0
      %1450 = vmatprep.mubr.bf16.mxu0 0
      %1451 = vmatmul.mubr.bf16.gmra.mrb[0].mxu0 %v497
      %v1452 = vpop.f32.mrb[0].mxu0
      %v1453 = vadd.f32 0.0, %v1452
      %v1454 = vpop.f32.mrb[0].mxu0
      %v1455 = vpop.f32.mrb[0].mxu0
      %v1456 = vadd.f32 0.0, %v1455
      %v1457 = vpop.f32.mrb[0].mxu0
      %1458 = vmatprep.mubr.bf16.mxu0 0
      %1459 = vmatmul.mubr.bf16.gmra.mrb[0].mxu0 %v498
      %v1460 = vpop.f32.mrb[0].mxu0
      %v1461 = vadd.f32 0.0, %v1460
      %v1462 = vpop.f32.mrb[0].mxu0
      %v1463 = vpop.f32.mrb[0].mxu0
      %v1464 = vadd.f32 0.0, %v1463
      %v1465 = vpop.f32.mrb[0].mxu0
      %1466 = vmatprep.mubr.bf16.mxu0 0
      %1467 = vmatmul.mubr.bf16.gmra.mrb[0].mxu0 %v499
      %v1468 = vpop.f32.mrb[0].mxu0
      %v1469 = vadd.f32 0.0, %v1468
      %v1470 = vpop.f32.mrb[0].mxu0
      %v1471 = vpop.f32.mrb[0].mxu0
      %v1472 = vadd.f32 0.0, %v1471
      %v1473 = vpop.f32.mrb[0].mxu0
      %1474 = vmatprep.mubr.bf16.mxu0 0
      %1475 = vmatmul.mubr.bf16.gmra.mrb[0].mxu0 %v500
      %v1476 = vpop.f32.mrb[0].mxu0
      %v1477 = vadd.f32 0.0, %v1476
      %v1478 = vpop.f32.mrb[0].mxu0
      %v1479 = vpop.f32.mrb[0].mxu0
      %v1480 = vadd.f32 0.0, %v1479
      %v1481 = vpop.f32.mrb[0].mxu0
      %1482 = vmatprep.mubr.bf16.mxu0 0
      %1483 = vmatmul.mubr.bf16.gmra.mrb[0].mxu0 %v501
      %v1484 = vpop.f32.mrb[0].mxu0
      %v1485 = vadd.f32 0.0, %v1484
      %v1486 = vpop.f32.mrb[0].mxu0
      %v1487 = vpop.f32.mrb[0].mxu0
      %v1488 = vadd.f32 0.0, %v1487
      %v1489 = vpop.f32.mrb[0].mxu0
      %1490 = vmatprep.mubr.bf16.mxu0 0
      %1491 = vmatmul.mubr.bf16.gmra.mrb[0].mxu0 %v1352
      %v1492 = vpop.f32.mrb[0].mxu0
      %v1493 = vadd.f32 0.0, %v1492
      %v1494 = vpop.f32.mrb[0].mxu0
      %v1495 = vpop.f32.mrb[0].mxu0
      %v1496 = vadd.f32 0.0, %v1495
      %v1497 = vpop.f32.mrb[0].mxu0
      %1498 = vdwg.mxu0
      %v1499 = vadd.f32 %v1293, %v1437
      %v1500 = vadd.f32 %v1294, %v1440
      %v1501 = vadd.f32 %v1295, %v1445
      %v1502 = vadd.f32 %v1296, %v1448
      %v1503 = vadd.f32 %v1297, %v1453
      %v1504 = vadd.f32 %v1298, %v1456
      %v1505 = vadd.f32 %v1299, %v1461
      %v1506 = vadd.f32 %v1300, %v1464
      %v1507 = vadd.f32 %v1301, %v1469
      %v1508 = vadd.f32 %v1302, %v1472
      %v1509 = vadd.f32 %v1303, %v1477
      %v1510 = vadd.f32 %v1304, %v1480
      %v1511 = vadd.f32 %v1305, %v1485
      %v1512 = vadd.f32 %v1306, %v1488
      %v1513 = vadd.f32 %v1307, %v1493
      %v1514 = vadd.f32 %v1308, %v1496
      %v1516 = vrot.slane %v244, 5
      %v1517 = vrot.slane %v1516, 4
      %v1518 = vrot.slane %v245, 5
      %v1519 = vsel %vm858, %v1517, %v1518
      %v1520 = vrot.slane %v1518, 4
      %v1521 = vrot.slane %v246, 5
      %v1522 = vsel %vm858, %v1520, %v1521
      %s1523 = scalar_lea.vmem %s1, 320
      %v1524 = vld [vmem:[%s1523] sm:$0xf]
      %v1525 = vld [vmem:[%s1523 + $0x4] sm:$0xf]
      %v1526 = vld [vmem:[%s1523 + $0x8] sm:$0xf]
      %v1527 = vld [vmem:[%s1523 + $0xc] sm:$0xf]
      %v1528 = vld [vmem:[%s1523 + $0x10] sm:$0xf]
      %v1529 = vld [vmem:[%s1523 + $0x14] sm:$0xf]
      %v1530 = vld [vmem:[%s1523 + $0x18] sm:$0xf]
      %v1531 = vld [vmem:[%s1523 + $0x1c] sm:$0xf]
      %v1532 = vld [vmem:[%s1523 + $0x20] sm:$0xf]
      %v1533 = vld [vmem:[%s1523 + $0x24] sm:$0xf]
      %v1534 = vld [vmem:[%s1523 + $0x28] sm:$0xf]
      %v1535 = vld [vmem:[%s1523 + $0x2c] sm:$0xf]
      %v1536 = vld [vmem:[%s1523 + $0x30] sm:$0xf]
      %v1537 = vld [vmem:[%s1523 + $0x34] sm:$0xf]
      %v1538 = vld [vmem:[%s1523 + $0x38] sm:$0xf]
      %v1539 = vld [vmem:[%s1523 + $0x3c] sm:$0xf]
      %v1540 = vunpack.c.l.b16 %v1519
      %v1541 = vunpack.c.l.b16 %v1522
      %v1542 = vpack.c.b16 %v1541, %v1540
      %v1560 = vunpack.c.l.b16 %v1524
      %v1561 = vunpack.c.l.b16 %v1525
      %v1562 = vunpack.c.l.b16 %v1526
      %v1563 = vunpack.c.l.b16 %v1527
      %v1564 = vunpack.c.l.b16 %v1528
      %v1565 = vunpack.c.l.b16 %v1529
      %v1566 = vunpack.c.l.b16 %v1530
      %v1567 = vunpack.c.l.b16 %v1531
      %v1568 = vunpack.c.l.b16 %v1532
      %v1569 = vunpack.c.l.b16 %v1533
      %v1570 = vunpack.c.l.b16 %v1534
      %v1571 = vunpack.c.l.b16 %v1535
      %v1572 = vunpack.c.l.b16 %v1536
      %v1573 = vunpack.c.l.b16 %v1537
      %v1574 = vunpack.c.l.b16 %v1538
      %v1575 = vunpack.c.l.b16 %v1539
      %v1576 = vpack.c.b16 %v1561, %v1560
      %v1577 = vpack.c.b16 %v1563, %v1562
      %v1578 = vpack.c.b16 %v1565, %v1564
      %v1579 = vpack.c.b16 %v1567, %v1566
      %v1580 = vpack.c.b16 %v1569, %v1568
      %v1581 = vpack.c.b16 %v1571, %v1570
      %v1582 = vpack.c.b16 %v1573, %v1572
      %v1583 = vpack.c.b16 %v1575, %v1574
      %1592 = vmatprep.subr.bf16.mxu0 0
      %1593 = vmatpush1.bf16.msra.mxu0 %v1576
      %1594 = vmatprep.subr.bf16.mxu0 0
      %1595 = vmatpush1.bf16.msra.mxu0 %v1577
      %1596 = vmatprep.subr.bf16.mxu0 0
      %1597 = vmatpush1.bf16.msra.mxu0 %v1578
      %1598 = vmatprep.subr.bf16.mxu0 0
      %1599 = vmatpush1.bf16.msra.mxu0 %v1579
      %1600 = vmatprep.subr.bf16.mxu0 0
      %1601 = vmatpush1.bf16.msra.mxu0 %v1580
      %1602 = vmatprep.subr.bf16.mxu0 0
      %1603 = vmatpush1.bf16.msra.mxu0 %v1581
      %1604 = vmatprep.subr.bf16.mxu0 0
      %1605 = vmatpush1.bf16.msra.mxu0 %v1582
      %1606 = vmatprep.subr.bf16.mxu0 0
      %1607 = vmatpush1.bf16.msra.mxu0 %v1583
      %1608 = vmatprep.subr.bf16.mxu0 0
      %1609 = vmatpush1.bf16.msra.mxu0 0
      %1610 = vmatprep.subr.bf16.mxu0 0
      %1611 = vmatpush1.bf16.msra.mxu0 0
      %1612 = vmatprep.subr.bf16.mxu0 0
      %1613 = vmatpush1.bf16.msra.mxu0 0
      %1614 = vmatprep.subr.bf16.mxu0 0
      %1615 = vmatpush1.bf16.msra.mxu0 0
      %1616 = vmatprep.subr.bf16.mxu0 0
      %1617 = vmatpush1.bf16.msra.mxu0 0
      %1618 = vmatprep.subr.bf16.mxu0 0
      %1619 = vmatpush1.bf16.msra.mxu0 0
      %1620 = vmatprep.subr.bf16.mxu0 0
      %1621 = vmatpush1.bf16.msra.mxu0 0
      %1622 = vmatprep.subr.bf16.mxu0 0
      %1623 = vmatpush1.bf16.msra.mxu0 0
      %1624 = vmatprep.mubr.bf16.mxu0 0
      %1625 = vmatmul.mubr.bf16.gmra.mrb[0].mxu0 %v949
      %v1626 = vpop.f32.mrb[0].mxu0
      %v1627 = vadd.f32 0.0, %v1626
      %v1628 = vpop.f32.mrb[0].mxu0
      %v1629 = vpop.f32.mrb[0].mxu0
      %v1630 = vadd.f32 0.0, %v1629
      %v1631 = vpop.f32.mrb[0].mxu0
      %1632 = vmatprep.mubr.bf16.mxu0 0
      %1633 = vmatmul.mubr.bf16.gmra.mrb[0].mxu0 %v950
      %v1634 = vpop.f32.mrb[0].mxu0
      %v1635 = vadd.f32 0.0, %v1634
      %v1636 = vpop.f32.mrb[0].mxu0
      %v1637 = vpop.f32.mrb[0].mxu0
      %v1638 = vadd.f32 0.0, %v1637
      %v1639 = vpop.f32.mrb[0].mxu0
      %1640 = vmatprep.mubr.bf16.mxu0 0
      %1641 = vmatmul.mubr.bf16.gmra.mrb[0].mxu0 %v951
      %v1642 = vpop.f32.mrb[0].mxu0
      %v1643 = vadd.f32 0.0, %v1642
      %v1644 = vpop.f32.mrb[0].mxu0
      %v1645 = vpop.f32.mrb[0].mxu0
      %v1646 = vadd.f32 0.0, %v1645
      %v1647 = vpop.f32.mrb[0].mxu0
      %1648 = vmatprep.mubr.bf16.mxu0 0
      %1649 = vmatmul.mubr.bf16.gmra.mrb[0].mxu0 %v952
      %v1650 = vpop.f32.mrb[0].mxu0
      %v1651 = vadd.f32 0.0, %v1650
      %v1652 = vpop.f32.mrb[0].mxu0
      %v1653 = vpop.f32.mrb[0].mxu0
      %v1654 = vadd.f32 0.0, %v1653
      %v1655 = vpop.f32.mrb[0].mxu0
      %1656 = vmatprep.mubr.bf16.mxu0 0
      %1657 = vmatmul.mubr.bf16.gmra.mrb[0].mxu0 %v953
      %v1658 = vpop.f32.mrb[0].mxu0
      %v1659 = vadd.f32 0.0, %v1658
      %v1660 = vpop.f32.mrb[0].mxu0
      %v1661 = vpop.f32.mrb[0].mxu0
      %v1662 = vadd.f32 0.0, %v1661
      %v1663 = vpop.f32.mrb[0].mxu0
      %1664 = vmatprep.mubr.bf16.mxu0 0
      %1665 = vmatmul.mubr.bf16.gmra.mrb[0].mxu0 %v954
      %v1666 = vpop.f32.mrb[0].mxu0
      %v1667 = vadd.f32 0.0, %v1666
      %v1668 = vpop.f32.mrb[0].mxu0
      %v1669 = vpop.f32.mrb[0].mxu0
      %v1670 = vadd.f32 0.0, %v1669
      %v1671 = vpop.f32.mrb[0].mxu0
      %1672 = vmatprep.mubr.bf16.mxu0 0
      %1673 = vmatmul.mubr.bf16.gmra.mrb[0].mxu0 %v955
      %v1674 = vpop.f32.mrb[0].mxu0
      %v1675 = vadd.f32 0.0, %v1674
      %v1676 = vpop.f32.mrb[0].mxu0
      %v1677 = vpop.f32.mrb[0].mxu0
      %v1678 = vadd.f32 0.0, %v1677
      %v1679 = vpop.f32.mrb[0].mxu0
      %1680 = vmatprep.mubr.bf16.mxu0 0
      %1681 = vmatmul.mubr.bf16.gmra.mrb[0].mxu0 %v1542
      %v1682 = vpop.f32.mrb[0].mxu0
      %v1683 = vadd.f32 0.0, %v1682
      %v1684 = vpop.f32.mrb[0].mxu0
      %v1685 = vpop.f32.mrb[0].mxu0
      %v1686 = vadd.f32 0.0, %v1685
      %v1687 = vpop.f32.mrb[0].mxu0
      %1688 = vdwg.mxu0
      %v1689 = vadd.f32 %v1499, %v1627
      %v1690 = vadd.f32 %v1500, %v1630
      %v1691 = vadd.f32 %v1501, %v1635
      %v1692 = vadd.f32 %v1502, %v1638
      %v1693 = vadd.f32 %v1503, %v1643
      %v1694 = vadd.f32 %v1504, %v1646
      %v1695 = vadd.f32 %v1505, %v1651
      %v1696 = vadd.f32 %v1506, %v1654
      %v1697 = vadd.f32 %v1507, %v1659
      %v1698 = vadd.f32 %v1508, %v1662
      %v1699 = vadd.f32 %v1509, %v1667
      %v1700 = vadd.f32 %v1510, %v1670
      %v1701 = vadd.f32 %v1511, %v1675
      %v1702 = vadd.f32 %v1512, %v1678
      %v1703 = vadd.f32 %v1513, %v1683
      %v1704 = vadd.f32 %v1514, %v1686
      %s1705 = scalar_lea.vmem %s1, 384
      %v1706 = vld [vmem:[%s1705] sm:$0xf]
      %v1707 = vld [vmem:[%s1705 + $0x4] sm:$0xf]
      %v1708 = vld [vmem:[%s1705 + $0x8] sm:$0xf]
      %v1709 = vld [vmem:[%s1705 + $0xc] sm:$0xf]
      %v1710 = vld [vmem:[%s1705 + $0x10] sm:$0xf]
      %v1711 = vld [vmem:[%s1705 + $0x14] sm:$0xf]
      %v1712 = vld [vmem:[%s1705 + $0x18] sm:$0xf]
      %v1713 = vld [vmem:[%s1705 + $0x1c] sm:$0xf]
      %v1714 = vld [vmem:[%s1705 + $0x20] sm:$0xf]
      %v1715 = vld [vmem:[%s1705 + $0x24] sm:$0xf]
      %v1716 = vld [vmem:[%s1705 + $0x28] sm:$0xf]
      %v1717 = vld [vmem:[%s1705 + $0x2c] sm:$0xf]
      %v1718 = vld [vmem:[%s1705 + $0x30] sm:$0xf]
      %v1719 = vld [vmem:[%s1705 + $0x34] sm:$0xf]
      %v1720 = vld [vmem:[%s1705 + $0x38] sm:$0xf]
      %v1721 = vld [vmem:[%s1705 + $0x3c] sm:$0xf]
      %v1724 = vunpack.c.l.b16 %v247
      %v1725 = vunpack.c.l.b16 %v248
      %v1726 = vpack.c.b16 %v1725, %v1724
      %v1744 = vunpack.c.l.b16 %v1706
      %v1745 = vunpack.c.l.b16 %v1707
      %v1746 = vunpack.c.l.b16 %v1708
      %v1747 = vunpack.c.l.b16 %v1709
      %v1748 = vunpack.c.l.b16 %v1710
      %v1749 = vunpack.c.l.b16 %v1711
      %v1750 = vunpack.c.l.b16 %v1712
      %v1751 = vunpack.c.l.b16 %v1713
      %v1752 = vunpack.c.l.b16 %v1714
      %v1753 = vunpack.c.l.b16 %v1715
      %v1754 = vunpack.c.l.b16 %v1716
      %v1755 = vunpack.c.l.b16 %v1717
      %v1756 = vunpack.c.l.b16 %v1718
      %v1757 = vunpack.c.l.b16 %v1719
      %v1758 = vunpack.c.l.b16 %v1720
      %v1759 = vunpack.c.l.b16 %v1721
      %v1760 = vpack.c.b16 %v1745, %v1744
      %v1761 = vpack.c.b16 %v1747, %v1746
      %v1762 = vpack.c.b16 %v1749, %v1748
      %v1763 = vpack.c.b16 %v1751, %v1750
      %v1764 = vpack.c.b16 %v1753, %v1752
      %v1765 = vpack.c.b16 %v1755, %v1754
      %v1766 = vpack.c.b16 %v1757, %v1756
      %v1767 = vpack.c.b16 %v1759, %v1758
      %1776 = vmatprep.subr.bf16.mxu0 0
      %1777 = vmatpush1.bf16.msra.mxu0 %v1760
      %1778 = vmatprep.subr.bf16.mxu0 0
      %1779 = vmatpush1.bf16.msra.mxu0 %v1761
      %1780 = vmatprep.subr.bf16.mxu0 0
      %1781 = vmatpush1.bf16.msra.mxu0 %v1762
      %1782 = vmatprep.subr.bf16.mxu0 0
      %1783 = vmatpush1.bf16.msra.mxu0 %v1763
      %1784 = vmatprep.subr.bf16.mxu0 0
      %1785 = vmatpush1.bf16.msra.mxu0 %v1764
      %1786 = vmatprep.subr.bf16.mxu0 0
      %1787 = vmatpush1.bf16.msra.mxu0 %v1765
      %1788 = vmatprep.subr.bf16.mxu0 0
      %1789 = vmatpush1.bf16.msra.mxu0 %v1766
      %1790 = vmatprep.subr.bf16.mxu0 0
      %1791 = vmatpush1.bf16.msra.mxu0 %v1767
      %1792 = vmatprep.subr.bf16.mxu0 0
      %1793 = vmatpush1.bf16.msra.mxu0 0
      %1794 = vmatprep.subr.bf16.mxu0 0
      %1795 = vmatpush1.bf16.msra.mxu0 0
      %1796 = vmatprep.subr.bf16.mxu0 0
      %1797 = vmatpush1.bf16.msra.mxu0 0
      %1798 = vmatprep.subr.bf16.mxu0 0
      %1799 = vmatpush1.bf16.msra.mxu0 0
      %1800 = vmatprep.subr.bf16.mxu0 0
      %1801 = vmatpush1.bf16.msra.mxu0 0
      %1802 = vmatprep.subr.bf16.mxu0 0
      %1803 = vmatpush1.bf16.msra.mxu0 0
      %1804 = vmatprep.subr.bf16.mxu0 0
      %1805 = vmatpush1.bf16.msra.mxu0 0
      %1806 = vmatprep.subr.bf16.mxu0 0
      %1807 = vmatpush1.bf16.msra.mxu0 0
      %1808 = vmatprep.mubr.bf16.mxu0 0
      %1809 = vmatmul.mubr.bf16.gmra.mrb[0].mxu0 %v689
      %v1810 = vpop.f32.mrb[0].mxu0
      %v1811 = vadd.f32 0.0, %v1810
      %v1812 = vpop.f32.mrb[0].mxu0
      %v1813 = vpop.f32.mrb[0].mxu0
      %v1814 = vadd.f32 0.0, %v1813
      %v1815 = vpop.f32.mrb[0].mxu0
      %1816 = vmatprep.mubr.bf16.mxu0 0
      %1817 = vmatmul.mubr.bf16.gmra.mrb[0].mxu0 %v690
      %v1818 = vpop.f32.mrb[0].mxu0
      %v1819 = vadd.f32 0.0, %v1818
      %v1820 = vpop.f32.mrb[0].mxu0
      %v1821 = vpop.f32.mrb[0].mxu0
      %v1822 = vadd.f32 0.0, %v1821
      %v1823 = vpop.f32.mrb[0].mxu0
      %1824 = vmatprep.mubr.bf16.mxu0 0
      %1825 = vmatmul.mubr.bf16.gmra.mrb[0].mxu0 %v691
      %v1826 = vpop.f32.mrb[0].mxu0
      %v1827 = vadd.f32 0.0, %v1826
      %v1828 = vpop.f32.mrb[0].mxu0
      %v1829 = vpop.f32.mrb[0].mxu0
      %v1830 = vadd.f32 0.0, %v1829
      %v1831 = vpop.f32.mrb[0].mxu0
      %1832 = vmatprep.mubr.bf16.mxu0 0
      %1833 = vmatmul.mubr.bf16.gmra.mrb[0].mxu0 %v692
      %v1834 = vpop.f32.mrb[0].mxu0
      %v1835 = vadd.f32 0.0, %v1834
      %v1836 = vpop.f32.mrb[0].mxu0
      %v1837 = vpop.f32.mrb[0].mxu0
      %v1838 = vadd.f32 0.0, %v1837
      %v1839 = vpop.f32.mrb[0].mxu0
      %1840 = vmatprep.mubr.bf16.mxu0 0
      %1841 = vmatmul.mubr.bf16.gmra.mrb[0].mxu0 %v693
      %v1842 = vpop.f32.mrb[0].mxu0
      %v1843 = vadd.f32 0.0, %v1842
      %v1844 = vpop.f32.mrb[0].mxu0
      %v1845 = vpop.f32.mrb[0].mxu0
      %v1846 = vadd.f32 0.0, %v1845
      %v1847 = vpop.f32.mrb[0].mxu0
      %1848 = vmatprep.mubr.bf16.mxu0 0
      %1849 = vmatmul.mubr.bf16.gmra.mrb[0].mxu0 %v694
      %v1850 = vpop.f32.mrb[0].mxu0
      %v1851 = vadd.f32 0.0, %v1850
      %v1852 = vpop.f32.mrb[0].mxu0
      %v1853 = vpop.f32.mrb[0].mxu0
      %v1854 = vadd.f32 0.0, %v1853
      %v1855 = vpop.f32.mrb[0].mxu0
      %1856 = vmatprep.mubr.bf16.mxu0 0
      %1857 = vmatmul.mubr.bf16.gmra.mrb[0].mxu0 %v1146
      %v1858 = vpop.f32.mrb[0].mxu0
      %v1859 = vadd.f32 0.0, %v1858
      %v1860 = vpop.f32.mrb[0].mxu0
      %v1861 = vpop.f32.mrb[0].mxu0
      %v1862 = vadd.f32 0.0, %v1861
      %v1863 = vpop.f32.mrb[0].mxu0
      %1864 = vmatprep.mubr.bf16.mxu0 0
      %1865 = vmatmul.mubr.bf16.gmra.mrb[0].mxu0 %v1726
      %v1866 = vpop.f32.mrb[0].mxu0
      %v1867 = vadd.f32 0.0, %v1866
      %v1868 = vpop.f32.mrb[0].mxu0
      %v1869 = vpop.f32.mrb[0].mxu0
      %v1870 = vadd.f32 0.0, %v1869
      %v1871 = vpop.f32.mrb[0].mxu0
      %1872 = vdwg.mxu0
      %v1873 = vadd.f32 %v1689, %v1811
      %v1874 = vadd.f32 %v1690, %v1814
      %v1875 = vadd.f32 %v1691, %v1819
      %v1876 = vadd.f32 %v1692, %v1822
      %v1877 = vadd.f32 %v1693, %v1827
      %v1878 = vadd.f32 %v1694, %v1830
      %v1879 = vadd.f32 %v1695, %v1835
      %v1880 = vadd.f32 %v1696, %v1838
      %v1881 = vadd.f32 %v1697, %v1843
      %v1882 = vadd.f32 %v1698, %v1846
      %v1883 = vadd.f32 %v1699, %v1851
      %v1884 = vadd.f32 %v1700, %v1854
      %v1885 = vadd.f32 %v1701, %v1859
      %v1886 = vadd.f32 %v1702, %v1862
      %v1887 = vadd.f32 %v1703, %v1867
      %v1888 = vadd.f32 %v1704, %v1870
      %v1890 = vshrl.u32 %v247, 16
      %v1892 = vrot.slane %v1890, 4
      %v1893 = vshll.u32 %v247, 16
      %v1895 = vrot.slane %v1893, 5
      %v1896 = vor.u32 %v1892, %v1895
      %v1897 = vrot.slane %v1896, 4
      %v1899 = vshll.u32 %v248, 16
      %v1901 = vrot.slane %v1899, 5
      %v1902 = vsel %vm268, %v1897, %v1901
      %v1903 = vshrl.u32 %v248, 16
      %v1905 = vrot.slane %v1903, 4
      %v1906 = vor.u32 %v1905, %v1901
      %v1907 = vrot.slane %v1906, 4
      %v1909 = vshll.u32 %v249, 16
      %v1911 = vrot.slane %v1909, 5
      %v1912 = vsel %vm268, %v1907, %v1911
      %s1913 = scalar_lea.vmem %s1, 448
      %v1914 = vld [vmem:[%s1913] sm:$0xf]
      %v1915 = vld [vmem:[%s1913 + $0x4] sm:$0xf]
      %v1916 = vld [vmem:[%s1913 + $0x8] sm:$0xf]
      %v1917 = vld [vmem:[%s1913 + $0xc] sm:$0xf]
      %v1918 = vld [vmem:[%s1913 + $0x10] sm:$0xf]
      %v1919 = vld [vmem:[%s1913 + $0x14] sm:$0xf]
      %v1920 = vld [vmem:[%s1913 + $0x18] sm:$0xf]
      %v1921 = vld [vmem:[%s1913 + $0x1c] sm:$0xf]
      %v1922 = vld [vmem:[%s1913 + $0x20] sm:$0xf]
      %v1923 = vld [vmem:[%s1913 + $0x24] sm:$0xf]
      %v1924 = vld [vmem:[%s1913 + $0x28] sm:$0xf]
      %v1925 = vld [vmem:[%s1913 + $0x2c] sm:$0xf]
      %v1926 = vld [vmem:[%s1913 + $0x30] sm:$0xf]
      %v1927 = vld [vmem:[%s1913 + $0x34] sm:$0xf]
      %v1928 = vld [vmem:[%s1913 + $0x38] sm:$0xf]
      %v1929 = vld [vmem:[%s1913 + $0x3c] sm:$0xf]
      %v1930 = vunpack.c.l.b16 %v1902
      %v1931 = vunpack.c.l.b16 %v1912
      %v1932 = vpack.c.b16 %v1931, %v1930
      %v1950 = vunpack.c.l.b16 %v1914
      %v1951 = vunpack.c.l.b16 %v1915
      %v1952 = vunpack.c.l.b16 %v1916
      %v1953 = vunpack.c.l.b16 %v1917
      %v1954 = vunpack.c.l.b16 %v1918
      %v1955 = vunpack.c.l.b16 %v1919
      %v1956 = vunpack.c.l.b16 %v1920
      %v1957 = vunpack.c.l.b16 %v1921
      %v1958 = vunpack.c.l.b16 %v1922
      %v1959 = vunpack.c.l.b16 %v1923
      %v1960 = vunpack.c.l.b16 %v1924
      %v1961 = vunpack.c.l.b16 %v1925
      %v1962 = vunpack.c.l.b16 %v1926
      %v1963 = vunpack.c.l.b16 %v1927
      %v1964 = vunpack.c.l.b16 %v1928
      %v1965 = vunpack.c.l.b16 %v1929
      %v1966 = vpack.c.b16 %v1951, %v1950
      %v1967 = vpack.c.b16 %v1953, %v1952
      %v1968 = vpack.c.b16 %v1955, %v1954
      %v1969 = vpack.c.b16 %v1957, %v1956
      %v1970 = vpack.c.b16 %v1959, %v1958
      %v1971 = vpack.c.b16 %v1961, %v1960
      %v1972 = vpack.c.b16 %v1963, %v1962
      %v1973 = vpack.c.b16 %v1965, %v1964
      %1982 = vmatprep.subr.bf16.mxu0 0
      %1983 = vmatpush1.bf16.msra.mxu0 %v1966
      %1984 = vmatprep.subr.bf16.mxu0 0
      %1985 = vmatpush1.bf16.msra.mxu0 %v1967
      %1986 = vmatprep.subr.bf16.mxu0 0
      %1987 = vmatpush1.bf16.msra.mxu0 %v1968
      %1988 = vmatprep.subr.bf16.mxu0 0
      %1989 = vmatpush1.bf16.msra.mxu0 %v1969
      %1990 = vmatprep.subr.bf16.mxu0 0
      %1991 = vmatpush1.bf16.msra.mxu0 %v1970
      %1992 = vmatprep.subr.bf16.mxu0 0
      %1993 = vmatpush1.bf16.msra.mxu0 %v1971
      %1994 = vmatprep.subr.bf16.mxu0 0
      %1995 = vmatpush1.bf16.msra.mxu0 %v1972
      %1996 = vmatprep.subr.bf16.mxu0 0
      %1997 = vmatpush1.bf16.msra.mxu0 %v1973
      %1998 = vmatprep.subr.bf16.mxu0 0
      %1999 = vmatpush1.bf16.msra.mxu0 0
      %2000 = vmatprep.subr.bf16.mxu0 0
      %2001 = vmatpush1.bf16.msra.mxu0 0
      %2002 = vmatprep.subr.bf16.mxu0 0
      %2003 = vmatpush1.bf16.msra.mxu0 0
      %2004 = vmatprep.subr.bf16.mxu0 0
      %2005 = vmatpush1.bf16.msra.mxu0 0
      %2006 = vmatprep.subr.bf16.mxu0 0
      %2007 = vmatpush1.bf16.msra.mxu0 0
      %2008 = vmatprep.subr.bf16.mxu0 0
      %2009 = vmatpush1.bf16.msra.mxu0 0
      %2010 = vmatprep.subr.bf16.mxu0 0
      %2011 = vmatpush1.bf16.msra.mxu0 0
      %2012 = vmatprep.subr.bf16.mxu0 0
      %2013 = vmatpush1.bf16.msra.mxu0 0
      %2014 = vmatprep.mubr.bf16.mxu0 0
      %2015 = vmatmul.mubr.bf16.gmra.mrb[0].mxu0 %v496
      %v2016 = vpop.f32.mrb[0].mxu0
      %v2017 = vadd.f32 0.0, %v2016
      %v2018 = vpop.f32.mrb[0].mxu0
      %v2019 = vpop.f32.mrb[0].mxu0
      %v2020 = vadd.f32 0.0, %v2019
      %v2021 = vpop.f32.mrb[0].mxu0
      %2022 = vmatprep.mubr.bf16.mxu0 0
      %2023 = vmatmul.mubr.bf16.gmra.mrb[0].mxu0 %v497
      %v2024 = vpop.f32.mrb[0].mxu0
      %v2025 = vadd.f32 0.0, %v2024
      %v2026 = vpop.f32.mrb[0].mxu0
      %v2027 = vpop.f32.mrb[0].mxu0
      %v2028 = vadd.f32 0.0, %v2027
      %v2029 = vpop.f32.mrb[0].mxu0
      %2030 = vmatprep.mubr.bf16.mxu0 0
      %2031 = vmatmul.mubr.bf16.gmra.mrb[0].mxu0 %v498
      %v2032 = vpop.f32.mrb[0].mxu0
      %v2033 = vadd.f32 0.0, %v2032
      %v2034 = vpop.f32.mrb[0].mxu0
      %v2035 = vpop.f32.mrb[0].mxu0
      %v2036 = vadd.f32 0.0, %v2035
      %v2037 = vpop.f32.mrb[0].mxu0
      %2038 = vmatprep.mubr.bf16.mxu0 0
      %2039 = vmatmul.mubr.bf16.gmra.mrb[0].mxu0 %v499
      %v2040 = vpop.f32.mrb[0].mxu0
      %v2041 = vadd.f32 0.0, %v2040
      %v2042 = vpop.f32.mrb[0].mxu0
      %v2043 = vpop.f32.mrb[0].mxu0
      %v2044 = vadd.f32 0.0, %v2043
      %v2045 = vpop.f32.mrb[0].mxu0
      %2046 = vmatprep.mubr.bf16.mxu0 0
      %2047 = vmatmul.mubr.bf16.gmra.mrb[0].mxu0 %v500
      %v2048 = vpop.f32.mrb[0].mxu0
      %v2049 = vadd.f32 0.0, %v2048
      %v2050 = vpop.f32.mrb[0].mxu0
      %v2051 = vpop.f32.mrb[0].mxu0
      %v2052 = vadd.f32 0.0, %v2051
      %v2053 = vpop.f32.mrb[0].mxu0
      %2054 = vmatprep.mubr.bf16.mxu0 0
      %2055 = vmatmul.mubr.bf16.gmra.mrb[0].mxu0 %v501
      %v2056 = vpop.f32.mrb[0].mxu0
      %v2057 = vadd.f32 0.0, %v2056
      %v2058 = vpop.f32.mrb[0].mxu0
      %v2059 = vpop.f32.mrb[0].mxu0
      %v2060 = vadd.f32 0.0, %v2059
      %v2061 = vpop.f32.mrb[0].mxu0
      %2062 = vmatprep.mubr.bf16.mxu0 0
      %2063 = vmatmul.mubr.bf16.gmra.mrb[0].mxu0 %v1352
      %v2064 = vpop.f32.mrb[0].mxu0
      %v2065 = vadd.f32 0.0, %v2064
      %v2066 = vpop.f32.mrb[0].mxu0
      %v2067 = vpop.f32.mrb[0].mxu0
      %v2068 = vadd.f32 0.0, %v2067
      %v2069 = vpop.f32.mrb[0].mxu0
      %2070 = vmatprep.mubr.bf16.mxu0 0
      %2071 = vmatmul.mubr.bf16.gmra.mrb[0].mxu0 %v1932
      %v2072 = vpop.f32.mrb[0].mxu0
      %v2073 = vadd.f32 0.0, %v2072
      %v2074 = vpop.f32.mrb[0].mxu0
      %v2075 = vpop.f32.mrb[0].mxu0
      %v2076 = vadd.f32 0.0, %v2075
      %v2077 = vpop.f32.mrb[0].mxu0
      %2078 = vdwg.mxu0
      %v2079 = vadd.f32 %v1873, %v2017
      %v2080 = vadd.f32 %v1874, %v2020
      %v2081 = vadd.f32 %v1875, %v2025
      %v2082 = vadd.f32 %v1876, %v2028
      %v2083 = vadd.f32 %v1877, %v2033
      %v2084 = vadd.f32 %v1878, %v2036
      %v2085 = vadd.f32 %v1879, %v2041
      %v2086 = vadd.f32 %v1880, %v2044
      %v2087 = vadd.f32 %v1881, %v2049
      %v2088 = vadd.f32 %v1882, %v2052
      %v2089 = vadd.f32 %v1883, %v2057
      %v2090 = vadd.f32 %v1884, %v2060
      %v2091 = vadd.f32 %v1885, %v2065
      %v2092 = vadd.f32 %v1886, %v2068
      %v2093 = vadd.f32 %v1887, %v2073
      %v2094 = vadd.f32 %v1888, %v2076
      %v2096 = vrot.slane %v247, 5
      %v2097 = vrot.slane %v2096, 4
      %v2098 = vrot.slane %v248, 5
      %v2099 = vsel %vm858, %v2097, %v2098
      %v2100 = vrot.slane %v2098, 4
      %v2101 = vrot.slane %v249, 5
      %v2102 = vsel %vm858, %v2100, %v2101
      %s2103 = scalar_lea.vmem %s1, 512
      %v2104 = vld [vmem:[%s2103] sm:$0xf]
      %v2105 = vld [vmem:[%s2103 + $0x4] sm:$0xf]
      %v2106 = vld [vmem:[%s2103 + $0x8] sm:$0xf]
      %v2107 = vld [vmem:[%s2103 + $0xc] sm:$0xf]
      %v2108 = vld [vmem:[%s2103 + $0x10] sm:$0xf]
      %v2109 = vld [vmem:[%s2103 + $0x14] sm:$0xf]
      %v2110 = vld [vmem:[%s2103 + $0x18] sm:$0xf]
      %v2111 = vld [vmem:[%s2103 + $0x1c] sm:$0xf]
      %v2112 = vld [vmem:[%s2103 + $0x20] sm:$0xf]
      %v2113 = vld [vmem:[%s2103 + $0x24] sm:$0xf]
      %v2114 = vld [vmem:[%s2103 + $0x28] sm:$0xf]
      %v2115 = vld [vmem:[%s2103 + $0x2c] sm:$0xf]
      %v2116 = vld [vmem:[%s2103 + $0x30] sm:$0xf]
      %v2117 = vld [vmem:[%s2103 + $0x34] sm:$0xf]
      %v2118 = vld [vmem:[%s2103 + $0x38] sm:$0xf]
      %v2119 = vld [vmem:[%s2103 + $0x3c] sm:$0xf]
      %v2120 = vunpack.c.l.b16 %v2099
      %v2121 = vunpack.c.l.b16 %v2102
      %v2122 = vpack.c.b16 %v2121, %v2120
      %v2140 = vunpack.c.l.b16 %v2104
      %v2141 = vunpack.c.l.b16 %v2105
      %v2142 = vunpack.c.l.b16 %v2106
      %v2143 = vunpack.c.l.b16 %v2107
      %v2144 = vunpack.c.l.b16 %v2108
      %v2145 = vunpack.c.l.b16 %v2109
      %v2146 = vunpack.c.l.b16 %v2110
      %v2147 = vunpack.c.l.b16 %v2111
      %v2148 = vunpack.c.l.b16 %v2112
      %v2149 = vunpack.c.l.b16 %v2113
      %v2150 = vunpack.c.l.b16 %v2114
      %v2151 = vunpack.c.l.b16 %v2115
      %v2152 = vunpack.c.l.b16 %v2116
      %v2153 = vunpack.c.l.b16 %v2117
      %v2154 = vunpack.c.l.b16 %v2118
      %v2155 = vunpack.c.l.b16 %v2119
      %v2156 = vpack.c.b16 %v2141, %v2140
      %v2157 = vpack.c.b16 %v2143, %v2142
      %v2158 = vpack.c.b16 %v2145, %v2144
      %v2159 = vpack.c.b16 %v2147, %v2146
      %v2160 = vpack.c.b16 %v2149, %v2148
      %v2161 = vpack.c.b16 %v2151, %v2150
      %v2162 = vpack.c.b16 %v2153, %v2152
      %v2163 = vpack.c.b16 %v2155, %v2154
      %2172 = vmatprep.subr.bf16.mxu0 0
      %2173 = vmatpush1.bf16.msra.mxu0 %v2156
      %2174 = vmatprep.subr.bf16.mxu0 0
      %2175 = vmatpush1.bf16.msra.mxu0 %v2157
      %2176 = vmatprep.subr.bf16.mxu0 0
      %2177 = vmatpush1.bf16.msra.mxu0 %v2158
      %2178 = vmatprep.subr.bf16.mxu0 0
      %2179 = vmatpush1.bf16.msra.mxu0 %v2159
      %2180 = vmatprep.subr.bf16.mxu0 0
      %2181 = vmatpush1.bf16.msra.mxu0 %v2160
      %2182 = vmatprep.subr.bf16.mxu0 0
      %2183 = vmatpush1.bf16.msra.mxu0 %v2161
      %2184 = vmatprep.subr.bf16.mxu0 0
      %2185 = vmatpush1.bf16.msra.mxu0 %v2162
      %2186 = vmatprep.subr.bf16.mxu0 0
      %2187 = vmatpush1.bf16.msra.mxu0 %v2163
      %2188 = vmatprep.subr.bf16.mxu0 0
      %2189 = vmatpush1.bf16.msra.mxu0 0
      %2190 = vmatprep.subr.bf16.mxu0 0
      %2191 = vmatpush1.bf16.msra.mxu0 0
      %2192 = vmatprep.subr.bf16.mxu0 0
      %2193 = vmatpush1.bf16.msra.mxu0 0
      %2194 = vmatprep.subr.bf16.mxu0 0
      %2195 = vmatpush1.bf16.msra.mxu0 0
      %2196 = vmatprep.subr.bf16.mxu0 0
      %2197 = vmatpush1.bf16.msra.mxu0 0
      %2198 = vmatprep.subr.bf16.mxu0 0
      %2199 = vmatpush1.bf16.msra.mxu0 0
      %2200 = vmatprep.subr.bf16.mxu0 0
      %2201 = vmatpush1.bf16.msra.mxu0 0
      %2202 = vmatprep.subr.bf16.mxu0 0
      %2203 = vmatpush1.bf16.msra.mxu0 0
      %2204 = vmatprep.mubr.bf16.mxu0 0
      %2205 = vmatmul.mubr.bf16.gmra.mrb[0].mxu0 %v950
      %v2206 = vpop.f32.mrb[0].mxu0
      %v2207 = vadd.f32 0.0, %v2206
      %v2208 = vpop.f32.mrb[0].mxu0
      %v2209 = vpop.f32.mrb[0].mxu0
      %v2210 = vadd.f32 0.0, %v2209
      %v2211 = vpop.f32.mrb[0].mxu0
      %2212 = vmatprep.mubr.bf16.mxu0 0
      %2213 = vmatmul.mubr.bf16.gmra.mrb[0].mxu0 %v951
      %v2214 = vpop.f32.mrb[0].mxu0
      %v2215 = vadd.f32 0.0, %v2214
      %v2216 = vpop.f32.mrb[0].mxu0
      %v2217 = vpop.f32.mrb[0].mxu0
      %v2218 = vadd.f32 0.0, %v2217
      %v2219 = vpop.f32.mrb[0].mxu0
      %2220 = vmatprep.mubr.bf16.mxu0 0
      %2221 = vmatmul.mubr.bf16.gmra.mrb[0].mxu0 %v952
      %v2222 = vpop.f32.mrb[0].mxu0
      %v2223 = vadd.f32 0.0, %v2222
      %v2224 = vpop.f32.mrb[0].mxu0
      %v2225 = vpop.f32.mrb[0].mxu0
      %v2226 = vadd.f32 0.0, %v2225
      %v2227 = vpop.f32.mrb[0].mxu0
      %2228 = vmatprep.mubr.bf16.mxu0 0
      %2229 = vmatmul.mubr.bf16.gmra.mrb[0].mxu0 %v953
      %v2230 = vpop.f32.mrb[0].mxu0
      %v2231 = vadd.f32 0.0, %v2230
      %v2232 = vpop.f32.mrb[0].mxu0
      %v2233 = vpop.f32.mrb[0].mxu0
      %v2234 = vadd.f32 0.0, %v2233
      %v2235 = vpop.f32.mrb[0].mxu0
      %2236 = vmatprep.mubr.bf16.mxu0 0
      %2237 = vmatmul.mubr.bf16.gmra.mrb[0].mxu0 %v954
      %v2238 = vpop.f32.mrb[0].mxu0
      %v2239 = vadd.f32 0.0, %v2238
      %v2240 = vpop.f32.mrb[0].mxu0
      %v2241 = vpop.f32.mrb[0].mxu0
      %v2242 = vadd.f32 0.0, %v2241
      %v2243 = vpop.f32.mrb[0].mxu0
      %2244 = vmatprep.mubr.bf16.mxu0 0
      %2245 = vmatmul.mubr.bf16.gmra.mrb[0].mxu0 %v955
      %v2246 = vpop.f32.mrb[0].mxu0
      %v2247 = vadd.f32 0.0, %v2246
      %v2248 = vpop.f32.mrb[0].mxu0
      %v2249 = vpop.f32.mrb[0].mxu0
      %v2250 = vadd.f32 0.0, %v2249
      %v2251 = vpop.f32.mrb[0].mxu0
      %2252 = vmatprep.mubr.bf16.mxu0 0
      %2253 = vmatmul.mubr.bf16.gmra.mrb[0].mxu0 %v1542
      %v2254 = vpop.f32.mrb[0].mxu0
      %v2255 = vadd.f32 0.0, %v2254
      %v2256 = vpop.f32.mrb[0].mxu0
      %v2257 = vpop.f32.mrb[0].mxu0
      %v2258 = vadd.f32 0.0, %v2257
      %v2259 = vpop.f32.mrb[0].mxu0
      %2260 = vmatprep.mubr.bf16.mxu0 0
      %2261 = vmatmul.mubr.bf16.gmra.mrb[0].mxu0 %v2122
      %v2262 = vpop.f32.mrb[0].mxu0
      %v2263 = vadd.f32 0.0, %v2262
      %v2264 = vpop.f32.mrb[0].mxu0
      %v2265 = vpop.f32.mrb[0].mxu0
      %v2266 = vadd.f32 0.0, %v2265
      %v2267 = vpop.f32.mrb[0].mxu0
      %2268 = vdwg.mxu0
      %v2269 = vadd.f32 %v2079, %v2207
      %v2270 = vadd.f32 %v2080, %v2210
      %v2271 = vadd.f32 %v2081, %v2215
      %v2272 = vadd.f32 %v2082, %v2218
      %v2273 = vadd.f32 %v2083, %v2223
      %v2274 = vadd.f32 %v2084, %v2226
      %v2275 = vadd.f32 %v2085, %v2231
      %v2276 = vadd.f32 %v2086, %v2234
      %v2277 = vadd.f32 %v2087, %v2239
      %v2278 = vadd.f32 %v2088, %v2242
      %v2279 = vadd.f32 %v2089, %v2247
      %v2280 = vadd.f32 %v2090, %v2250
      %v2281 = vadd.f32 %v2091, %v2255
      %v2282 = vadd.f32 %v2092, %v2258
      %v2283 = vadd.f32 %v2093, %v2263
      %v2284 = vadd.f32 %v2094, %v2266
      %2285 = vst [vmem:[%s203] sm:$0xff] %v2269
      %2286 = vst [vmem:[%s203 + $0x8] sm:$0xff] %v2270
      %2287 = vst [vmem:[%s203 + $0x10] sm:$0xff] %v2271
      %2288 = vst [vmem:[%s203 + $0x18] sm:$0xff] %v2272
      %2289 = vst [vmem:[%s203 + $0x20] sm:$0xff] %v2273
      %2290 = vst [vmem:[%s203 + $0x28] sm:$0xff] %v2274
      %2291 = vst [vmem:[%s203 + $0x30] sm:$0xff] %v2275
      %2292 = vst [vmem:[%s203 + $0x38] sm:$0xff] %v2276
      %2293 = vst [vmem:[%s203 + $0x40] sm:$0xff] %v2277
      %2294 = vst [vmem:[%s203 + $0x48] sm:$0xff] %v2278
      %2295 = vst [vmem:[%s203 + $0x50] sm:$0xff] %v2279
      %2296 = vst [vmem:[%s203 + $0x58] sm:$0xff] %v2280
      %2297 = vst [vmem:[%s203 + $0x60] sm:$0xff] %v2281
      %2298 = vst [vmem:[%s203 + $0x68] sm:$0xff] %v2282
      %2299 = vst [vmem:[%s203 + $0x70] sm:$0xff] %v2283
      %2300 = vst [vmem:[%s203 + $0x78] sm:$0xff] %v2284
      %v2301 = vadd.f32 %v2269, %v2270
      %v2302 = vadd.f32 %v2301, %v2271
      %v2303 = vadd.f32 %v2302, %v2272
      %v2304 = vadd.f32 %v2303, %v2273
      %v2305 = vadd.f32 %v2304, %v2274
      %v2306 = vadd.f32 %v2305, %v2275
      %v2307 = vadd.f32 %v2306, %v2276
      %v2308 = vadd.f32 %v2307, %v2277
      %v2309 = vadd.f32 %v2308, %v2278
      %v2310 = vadd.f32 %v2309, %v2279
      %v2311 = vadd.f32 %v2310, %v2280
      %v2312 = vadd.f32 %v2311, %v2281
      %v2313 = vadd.f32 %v2312, %v2282
      %v2314 = vadd.f32 %v2313, %v2283
      %v2315 = vadd.f32 %v2314, %v2284
      %v2316 = vrot.slane %v2315, 4
      %v2317 = vadd.f32 %v2315, %v2316
      %v2318 = vrot.slane %v2317, 2
      %v2319 = vadd.f32 %v2317, %v2318
      %v2320 = vrot.slane %v2319, 1
      %v2321 = vadd.f32 %v2319, %v2320
      %v2322 = vmul.f32 %v2269, %v2269
      %v2323 = vmul.f32 %v2270, %v2270
      %v2324 = vmul.f32 %v2271, %v2271
      %v2325 = vmul.f32 %v2272, %v2272
      %v2326 = vmul.f32 %v2273, %v2273
      %v2327 = vmul.f32 %v2274, %v2274
      %v2328 = vmul.f32 %v2275, %v2275
      %v2329 = vmul.f32 %v2276, %v2276
      %v2330 = vmul.f32 %v2277, %v2277
      %v2331 = vmul.f32 %v2278, %v2278
      %v2332 = vmul.f32 %v2279, %v2279
      %v2333 = vmul.f32 %v2280, %v2280
      %v2334 = vmul.f32 %v2281, %v2281
      %v2335 = vmul.f32 %v2282, %v2282
      %v2336 = vmul.f32 %v2283, %v2283
      %v2337 = vmul.f32 %v2284, %v2284
      %v2338 = vadd.f32 %v2322, %v2323
      %v2339 = vadd.f32 %v2338, %v2324
      %v2340 = vadd.f32 %v2339, %v2325
      %v2341 = vadd.f32 %v2340, %v2326
      %v2342 = vadd.f32 %v2341, %v2327
      %v2343 = vadd.f32 %v2342, %v2328
      %v2344 = vadd.f32 %v2343, %v2329
      %v2345 = vadd.f32 %v2344, %v2330
      %v2346 = vadd.f32 %v2345, %v2331
      %v2347 = vadd.f32 %v2346, %v2332
      %v2348 = vadd.f32 %v2347, %v2333
      %v2349 = vadd.f32 %v2348, %v2334
      %v2350 = vadd.f32 %v2349, %v2335
      %v2351 = vadd.f32 %v2350, %v2336
      %v2352 = vadd.f32 %v2351, %v2337
      %v2353 = vrot.slane %v2352, 4
      %v2354 = vadd.f32 %v2352, %v2353
      %v2355 = vrot.slane %v2354, 2
      %v2356 = vadd.f32 %v2354, %v2355
      %v2357 = vrot.slane %v2356, 1
      %v2358 = vadd.f32 %v2356, %v2357
      %vm2359 = vcmask 1040384
      %v2360 = vsel %vm2359, %v2321, %v2358
      %vm2361 = vcmask 1041408
      %v2362 = vsel %vm2361, %v2360, 0.0
      %2363 = vst [vmem:[%s212] sm:$0xff] %v2362
      %s2364 = smul.u32 %s19, 2
      %s2365 = sadd.s32 %s2364, %s20
      %s2366 = smul.u32 16, %s2365
      %p2367 = scmp.lt.s32.totalorder %s2366, 63
      %s2368 = scalar_select %p2367, %s2366, 63
      %s2369 = smul.addr %s2368, 8
      %s2370 = scalar_lea.vmem %s2, %s2369
      %s2371 = smul.u32 %s19, 2
      %s2372 = sadd.s32 %s2371, %s20
      %p2373 = scmp.lt.s32.totalorder %s2372, 3
      %s2374 = scalar_select %p2373, %s2372, 3
      %s2375 = smul.addr %s2374, 8
      %s2376 = scalar_lea.vmem %s3, %s2375
      // Predicated region
      $region29: #{residual_layer_forward.6} parent=27 // pred_check
        %p2377 = pneg %p96
      $region30: #{residual_layer_forward.6} parent=27 // pred_check_branch
        %2379 = sbr.rel (%p2377) target = $region32
      $region31: #{residual_layer_forward.6} parent=27 // pred_region
        %s2380 = smul.u32 %s19, 2
        %s2381 = sadd.s32 %s2380, %s20
        %s2382 = smul.u32 16, %s2381
      $region32: #{residual_layer_forward.6} parent=27 // pred_fallthru
        _
      // Predicated region
      $region33: #{residual_layer_forward.6} parent=27 // pred_check
        %p2383 = pneg %p126
      $region34: #{residual_layer_forward.6} parent=27 // pred_check_branch
        %2385 = sbr.rel (%p2383) target = $region36
      $region35: #{residual_layer_forward.6} parent=27 // pred_region
        %s2386 = smul.u32 %s19, 2
        %s2387 = sadd.s32 %s2386, %s20
      $region36: #{residual_layer_forward.6} parent=27 // pred_fallthru
        _
    $region28: #{residual_layer_forward.6} parent=5 // pred_fallthru
      _
    %p2388 = scmp.le.s32.totalorder 2, %s10
    // Predicated region
    $region37: #{residual_layer_forward.6} parent=5 // pred_check
      %p2389 = pneg %p2388
    $region38: #{residual_layer_forward.6} parent=5 // pred_check_branch
      %2391 = sbr.rel (%p2389) target = $region40
    $region39: #{residual_layer_forward.6} parent=5 // pred_region
      %s2392 = ssub.s32 %s10, 2
      // Predicated region
      $region41: #{residual_layer_forward.6} parent=39 // pred_check
        %p2393 = pneg %p102
      $region42: #{residual_layer_forward.6} parent=39 // pred_check_branch
        %2395 = sbr.rel (%p2393) target = $region44
      $region43: #{residual_layer_forward.6} parent=39 // pred_region
        %s2396 = smul.u32 %s21, 2
        %s2397 = sadd.s32 %s2396, %s22
        %s2398 = smul.u32 16, %s2397
        %p2399 = scmp.lt.s32.totalorder %s2398, 63
        %s2400 = scalar_select %p2399, %s2398, 63
        %s2401 = smul.addr %s2400, 8
        %s2402 = scalar_lea.vmem %s2, %s2401
      $region44: #{residual_layer_forward.6} parent=39 // pred_fallthru
        _
      // Predicated region
      $region45: #{residual_layer_forward.6} parent=39 // pred_check
        %p2403 = pneg %p132
      $region46: #{residual_layer_forward.6} parent=39 // pred_check_branch
        %2405 = sbr.rel (%p2403) target = $region48
      $region47: #{residual_layer_forward.6} parent=39 // pred_region
        %s2406 = smul.u32 %s21, 2
        %s2407 = sadd.s32 %s2406, %s22
        %p2408 = scmp.lt.s32.totalorder %s2407, 3
        %s2409 = scalar_select %p2408, %s2407, 3
        %s2410 = smul.addr %s2409, 8
        %s2411 = scalar_lea.vmem %s3, %s2410
      $region48: #{residual_layer_forward.6} parent=39 // pred_fallthru
        _
    $region40: #{residual_layer_forward.6} parent=5 // pred_fallthru
      _
  $region6: #{residual_layer_forward.6} parent=0 // loop_footer
    %s14 = sadd.s32 1, %s10
  $region7: #{residual_layer_forward.6} parent=0 // loop_footer_branch
    %9 = sbr.rel target = $region3
  $region8: #{residual_layer_forward.6} parent=0 // loop_exit
    _

</llo_original>
